<compile_context>
chip_gen: v7x
topology: tpu7x:2x2x1
jax: 0.10.0
libtpu: 0.0.40
codegen_flags: <defaults>
</compile_context>

<pallas_src>
import functools

import jax
import jax.numpy as jnp
from jax import lax
from jax.experimental import pallas as pl
from jax.experimental.pallas import tpu as pltpu


def _silu(x):
    return x * jax.nn.sigmoid(x)


def _round_up(x, m):
    return ((x + m - 1) // m) * m


def egcl_kernel(
    # per-edge-chunk data (chunks are grouped by destination node tile)
    idx_ref,            # (TE, 2) int32  [row | col]; padded edges are -1
    rowl_ref,           # (1, TE) int32  row indices, lane-oriented (for the scatter mask)
    # resident data
    hc_ref,             # (Np, D+4) f32  [h | coord | inv_count]
    # edge MLP (first layer split: h_row / h_col / radial; h weights zero-padded to D+4)
    eW1h_ref, eW1c_ref, eW1r_ref, eb1_ref, eW2_ref, eb2_ref,
    # node MLP (first layer split: h / node_agg)
    nW1h_ref, nW1a_ref, nb1_ref, nW2_ref, nb2_ref,
    # coord MLP (cw2 stored as (1, H) for a VPU dot)
    cW1_ref, cb1_ref, cw2_ref,
    # output
    out_ref,            # (TN, D+3) f32  [h_out | coord_out] for this node tile
    # scratch
    acc_ref,            # (TN, ACC_W) f32  [node_agg(H) | diff*phi(D+4) | zero pad]
):
    i = pl.program_id(0)        # node tile  ("parallel")
    e = pl.program_id(1)        # edge chunk ("arbitrary" reduction axis)

    @pl.when(e == 0)
    def _init():
        acc_ref[...] = jnp.zeros_like(acc_ref)

    hc = hc_ref[...]                              # (Np, D+4)
    n_pad = hc.shape[0]
    d = hc.shape[1] - 4
    tn = out_ref.shape[0]
    te = idx_ref.shape[0]
    h_hidden = eb1_ref.shape[1]
    acc_w = acc_ref.shape[1]

    dot = functools.partial(jnp.dot, preferred_element_type=jnp.float32)

    # bf16 hi/lo split of node features (recombined error ~2^-18 relative).
    hc_hi = hc.astype(jnp.bfloat16)
    hc_lo = (hc - hc_hi.astype(jnp.float32)).astype(jnp.bfloat16)

    # --- fused gather: one (2*TE, Np) one-hot, one hi/lo matmul pair ---
    idx = idx_ref[...]                            # (TE, 2)
    rc = jnp.concatenate([idx[:, 0:1], idx[:, 1:2]], axis=0)        # (2*TE, 1)
    iota_g = lax.broadcasted_iota(jnp.int32, (2 * te, n_pad), 1)
    # padded edges (index -1) -> all-zero one-hot row -> gather 0, scatter nothing
    gmat = (iota_g == rc).astype(jnp.float32).astype(jnp.bfloat16)  # (2*TE, Np)
    hc_rc = dot(gmat, hc_hi) + dot(gmat, hc_lo)                     # (2*TE, D+4) f32
    hc_row = hc_rc[:te]
    hc_col = hc_rc[te:]

    diff = hc_row - hc_col                                          # (TE, D+4)
    lane = lax.broadcasted_iota(jnp.int32, (1, d + 4), 1)
    cmask = ((lane >= d) & (lane < d + 3)).astype(jnp.float32)      # coord lanes only
    radial = jnp.sum(diff * diff * cmask, axis=1, keepdims=True)    # (TE, 1)

    # --- edge MLP (zero-padded weights consume the full [h|coord|inv] width) ---
    e1 = _silu(dot(hc_row, eW1h_ref[...]) + dot(hc_col, eW1c_ref[...])
               + radial * eW1r_ref[...] + eb1_ref[...])
    edge_feat = _silu(dot(e1, eW2_ref[...]) + eb2_ref[...])         # (TE, H)

    # --- coord MLP; final (H -> 1) head as VPU multiply + lane reduce ---
    c1 = _silu(dot(edge_feat, cW1_ref[...]) + cb1_ref[...])         # (TE, H)
    phi = jnp.sum(c1 * cw2_ref[...], axis=1, keepdims=True)         # (TE, 1)
    trans = diff * phi                                              # (TE, D+4); only coord lanes read back

    # --- scatter: transposed one-hot built directly from lane-oriented row ids ---
    # payload = [edge_feat | diff*phi | 0-pad], edge_feat at lane 0, width a multiple of 128
    pad_w = acc_w - (h_hidden + d + 4)
    pieces = [edge_feat, trans]
    if pad_w:
        pieces.append(jnp.zeros((te, pad_w), jnp.float32))
    payload = jnp.concatenate(pieces, axis=1)                       # (TE, ACC_W)
    p_hi = payload.astype(jnp.bfloat16)
    p_lo = (payload - p_hi.astype(jnp.float32)).astype(jnp.bfloat16)

    rowl = rowl_ref[...]                                            # (1, TE)
    iota_s = lax.broadcasted_iota(jnp.int32, (tn, te), 0) + i * tn
    # NOTE: padded edges rely on row == -1 never matching a node id (all-zero column).
    gscat = (iota_s == rowl).astype(jnp.float32).astype(jnp.bfloat16)  # (TN, TE)
    acc_ref[...] += dot(gscat, p_hi) + dot(gscat, p_lo)             # unmasked full-width RMW

    @pl.when(e == pl.num_programs(1) - 1)
    def _finalize():
        start = pl.multiple_of(i * tn, 8)
        hc_t = hc_ref[pl.ds(start, tn), :]                          # (TN, D+4)
        h_t = hc_t[:, :d]
        coord_t = hc_t[:, d:d + 3]
        inv_cnt = hc_t[:, d + 3:d + 4]                              # 1/max(count,1)
        acc = acc_ref[...]
        node_agg = acc[:, :h_hidden]
        coord_sum = acc[:, h_hidden + d:h_hidden + d + 3]
        coord_out = coord_t + coord_sum * inv_cnt                   # segment mean
        n1 = _silu(dot(h_t, nW1h_ref[...]) + dot(node_agg, nW1a_ref[...])
                   + nb1_ref[...])
        h_out = h_t + dot(n1, nW2_ref[...]) + nb2_ref[...]          # residual
        out_ref[...] = jnp.concatenate([h_out, coord_out], axis=1)  # single packed store


def _vmem_limit_bytes(n_pad, d, h, te, tn, acc_w):
    """Rough per-core VMEM estimate -> explicit limit (capped for v7x's 64 MiB)."""
    f32, bf16 = 4, 2
    w = d + 4
    resident = n_pad * w * f32 + 2 * tn * (d + 3) * f32 + tn * acc_w * f32
    weights = (2 * w * h + 3 * h * h + 2 * d * h + 8 * h + d) * f32
    streamed = 2 * (te * 2 + te) * 4                   # idx + row_lane blocks (double-buffered)
    interm = (2 * te * n_pad * (f32 + bf16)            # gather one-hot (f32 tmp + bf16)
              + 2 * te * w * f32                        # gathered rows
              + n_pad * w * 2 * bf16                    # hc hi/lo
              + te * (4 * h + acc_w) * f32              # MLP activations + payload
              + 2 * te * acc_w * bf16                   # payload hi/lo
              + tn * te * (f32 + bf16)                  # scatter one-hot
              + 2 * tn * acc_w * f32)                   # seg
    est = resident + weights + streamed + interm
    return int(min(max(2 * est, 16 * 2 ** 20), 48 * 2 ** 20))


def egcl_forward(h, coord, row, col, params, *, edge_tile=512, node_tile=256):
    """E_GCL forward pass; returns (h_out, coord_out)."""
    N, D = h.shape
    H = params["eb1"].shape[1]
    E = row.shape[0]
    assert E > 0, "graph must have at least one edge"

    row = row.astype(jnp.int32)
    col = col.astype(jnp.int32)

    # ---- node tiling (leading "parallel" grid axis) ----
    TN = _round_up(min(node_tile, N), 8)
    N_pad = _round_up(N, TN)
    num_tiles = N_pad // TN

    # ---- edge tiling (multiple of 128 for the lane-oriented row-index block) ----
    TE = _round_up(min(edge_tile, E), 128)

    # ---- group edges by destination node tile, pad each tile to `cap` edges ----
    tile_id = row // TN
    order = jnp.argsort(tile_id)
    row_s, col_s, tile_s = row[order], col[order], tile_id[order]
    counts_per_tile = jnp.zeros((num_tiles,), jnp.int32).at[tile_id].add(1)
    max_per_tile = int(jnp.max(counts_per_tile))
    cap = _round_up(max(max_per_tile, 1), TE)
    chunks = cap // TE
    starts = jnp.concatenate(
        [jnp.zeros((1,), jnp.int32), jnp.cumsum(counts_per_tile)[:-1].astype(jnp.int32)])
    pos = jnp.arange(E, dtype=jnp.int32) - starts[tile_s]
    dest = tile_s * cap + pos
    idx_pad = jnp.full((num_tiles * cap, 2), -1, jnp.int32).at[dest].set(
        jnp.stack([row_s, col_s], axis=1))                      # (tiles*cap, 2), pad = -1
    row_lane = idx_pad[:, 0].reshape(1, num_tiles * cap)        # lane-oriented copy

    # ---- node features: [h | coord | inv_count], padded to N_pad rows ----
    counts = jnp.zeros((N,), jnp.float32).at[row].add(1.0)
    inv_count = 1.0 / jnp.maximum(counts, 1.0)
    hc = jnp.concatenate([h, coord, inv_count[:, None]], axis=1)        # (N, D+4)
    if N_pad > N:
        pad_rows = jnp.zeros((N_pad - N, D + 4), jnp.float32).at[:, D + 3].set(1.0)
        hc = jnp.concatenate([hc, pad_rows], axis=0)

    # ---- split / zero-pad weights in the wrapper (no in-kernel concats or lane slices) ----
    eW1 = params["eW1"]
    eW1h = jnp.zeros((D + 4, H), jnp.float32).at[:D].set(eW1[:D])
    eW1c = jnp.zeros((D + 4, H), jnp.float32).at[:D].set(eW1[D:2 * D])
    eW1r = eW1[2 * D:2 * D + 1]                                 # (1, H)
    nW1 = params["nW1"]
    nW1h, nW1a = nW1[:D], nW1[D:]
    cw2 = params["cW2"].reshape(1, H)

    ACC_W = _round_up(H + D + 4, 128)

    def const2(shape):
        return pl.BlockSpec(shape, lambda i, e: (0, 0))

    # TODO(synk): resident constant-index inputs could use pipeline_mode=pl.Buffered(1)
    # to drop their pointless second buffer once that path is validated on this JAX build.
    in_specs = [
        pl.BlockSpec((TE, 2), lambda i, e: (i * chunks + e, 0)),     # idx
        pl.BlockSpec((1, TE), lambda i, e: (0, i * chunks + e)),     # row_lane
        const2((N_pad, D + 4)),                                      # hc
        const2(eW1h.shape), const2(eW1c.shape), const2(eW1r.shape),
        const2(params["eb1"].shape),
        const2(params["eW2"].shape), const2(params["eb2"].shape),
        const2(nW1h.shape), const2(nW1a.shape), const2(params["nb1"].shape),
        const2(params["nW2"].shape), const2(params["nb2"].shape),
        const2(params["cW1"].shape), const2(params["cb1"].shape), const2(cw2.shape),
    ]

    out = pl.pallas_call(
        egcl_kernel,
        out_shape=jax.ShapeDtypeStruct((N_pad, D + 3), jnp.float32),
        grid=(num_tiles, chunks),
        in_specs=in_specs,
        out_specs=pl.BlockSpec((TN, D + 3), lambda i, e: (i, 0)),
        scratch_shapes=[pltpu.VMEM((TN, ACC_W), jnp.float32)],
        compiler_params=pltpu.CompilerParams(
            dimension_semantics=("parallel", "arbitrary"),
            vmem_limit_bytes=_vmem_limit_bytes(N_pad, D, H, TE, TN, ACC_W),
        ),
    )(idx_pad, row_lane, hc,
      eW1h, eW1c, eW1r, params["eb1"], params["eW2"], params["eb2"],
      nW1h, nW1a, params["nb1"], params["nW2"], params["nb2"],
      params["cW1"], params["cb1"], cw2)

    # TODO(synk): for graphs with N in the many thousands, additionally block the gather /
    # scatter contractions over node chunks inside the kernel (lax.fori_loop) so the
    # (TE, N)-sized one-hots never exceed the vreg file / VMEM.
    return out[:N, :D], out[:N, D:]


# ---------------- deterministic parameter construction ----------------
def _linear(key, fan_in, fan_out, bias=True):
    k1, k2 = jax.random.split(key)
    bound = 1.0 / jnp.sqrt(jnp.float32(fan_in))
    W = jax.random.uniform(k1, (fan_in, fan_out), jnp.float32, -bound, bound)
    b = (jax.random.uniform(k2, (1, fan_out), jnp.float32, -bound, bound)
         if bias else None)
    return W, b


def make_params(key, input_nf, output_nf, hidden_nf, edges_in_d=0):
    input_edge = 2 * input_nf + 1 + edges_in_d
    keys = jax.random.split(key, 8)
    eW1, eb1 = _linear(keys[0], input_edge, hidden_nf)
    eW2, eb2 = _linear(keys[1], hidden_nf, hidden_nf)
    nW1, nb1 = _linear(keys[2], hidden_nf + input_nf, hidden_nf)
    nW2, nb2 = _linear(keys[3], hidden_nf, output_nf)
    cW1, cb1 = _linear(keys[4], hidden_nf, hidden_nf)
    # final coord layer: xavier_uniform with gain=0.001, no bias
    xbound = 0.001 * jnp.sqrt(6.0 / jnp.float32(hidden_nf + 1))
    cW2 = jax.random.uniform(keys[5], (hidden_nf, 1), jnp.float32, -xbound, xbound)
    return dict(eW1=eW1, eb1=eb1, eW2=eW2, eb2=eb2,
                nW1=nW1, nb1=nb1, nW2=nW2, nb2=nb2,
                cW1=cW1, cb1=cb1, cW2=cW2)


# ---------------- pure-JAX reference for verification ----------------
def egcl_reference(h, coord, row, col, p):
    mm = functools.partial(jnp.matmul, precision=jax.lax.Precision.HIGHEST)
    coord_diff = coord[row] - coord[col]
    radial = jnp.sum(coord_diff ** 2, axis=1, keepdims=True)
    edge_in = jnp.concatenate([h[row], h[col], radial], axis=1)
    e1 = _silu(mm(edge_in, p["eW1"]) + p["eb1"])
    edge_feat = _silu(mm(e1, p["eW2"]) + p["eb2"])

    c1 = _silu(mm(edge_feat, p["cW1"]) + p["cb1"])
    trans = coord_diff * mm(c1, p["cW2"])
    N = h.shape[0]
    coord_sum = jnp.zeros((N, 3), jnp.float32).at[row].add(trans)
    counts = jnp.zeros((N, 3), jnp.float32).at[row].add(jnp.ones_like(trans))
    coord_out = coord + coord_sum / jnp.maximum(counts, 1.0)

    node_agg = jnp.zeros((N, edge_feat.shape[1]), jnp.float32).at[row].add(edge_feat)
    node_in = jnp.concatenate([h, node_agg], axis=1)
    n1 = _silu(mm(node_in, p["nW1"]) + p["nb1"])
    h_out = h + (mm(n1, p["nW2"]) + p["nb2"])
    return h_out, coord_out


def _fully_connected(n):
    src, dst = jnp.meshgrid(jnp.arange(n), jnp.arange(n), indexing="ij")
    m = src != dst
    return src[m].astype(jnp.int32), dst[m].astype(jnp.int32)


if __name__ == "__main__":
    D, H = 16, 32                         # input_nf(==output_nf, residual), hidden_nf
    key = jax.random.PRNGKey(0)
    k_h1, k_c1, k_p, k_h2, k_c2 = jax.random.split(key, 5)
    params = make_params(k_p, input_nf=D, output_nf=D, hidden_nf=H)

    # Tolerance note: the kernel uses bf16 hi/lo-split MXU contractions (error budget
    # ~1e-4 after segment sums), so compare at 1e-3 against the f32 HIGHEST-precision
    # reference; any indexing/segmentation bug would blow far past this.
    TOL = dict(atol=1e-3, rtol=1e-3)

    # ---- graph 1: N=32 fully connected (E=992) ----
    N1 = 32
    h1 = jax.random.normal(k_h1, (N1, D), jnp.float32)
    c1 = jax.random.normal(k_c1, (N1, 3), jnp.float32)
    r1, d1 = _fully_connected(N1)
    h_ref1, c_ref1 = egcl_reference(h1, c1, r1, d1, params)

    # (a) multi node-tile ("parallel" axis) x multi edge-chunk path
    ho, co = egcl_forward(h1, c1, r1, d1, params, edge_tile=128, node_tile=8)
    jax.block_until_ready((ho, co))
    assert jnp.allclose(ho, h_ref1, **TOL)
    assert jnp.allclose(co, c_ref1, **TOL)

    # (b) default tiles: single node tile, two 512-edge chunks
    ho, co = egcl_forward(h1, c1, r1, d1, params)
    jax.block_until_ready((ho, co))
    assert jnp.allclose(ho, h_ref1, **TOL)
    assert jnp.allclose(co, c_ref1, **TOL)

    # ---- graph 2: N=20 (not a multiple of 8) exercises node padding ----
    N2 = 20
    h2 = jax.random.normal(k_h2, (N2, D), jnp.float32)
    c2 = jax.random.normal(k_c2, (N2, 3), jnp.float32)
    r2, d2 = _fully_connected(N2)
    h_ref2, c_ref2 = egcl_reference(h2, c2, r2, d2, params)

    ho, co = egcl_forward(h2, c2, r2, d2, params, edge_tile=128, node_tile=8)
    jax.block_until_ready((ho, co))
    assert jnp.allclose(ho, h_ref2, **TOL)
    assert jnp.allclose(co, c_ref2, **TOL)

    print("KERNEL_OK")
</pallas_src>

<mosaic_0001>
module attributes {stable_mosaic.version = 11 : i64} {
  func.func @egcl_kernel(%arg0: i32, %arg1: i32, %arg2: memref<128x2xi32, #tpu.memory_space<vmem>>, %arg3: memref<1x128xi32, #tpu.memory_space<vmem>>, %arg4: memref<32x20xf32, #tpu.memory_space<vmem>>, %arg5: memref<20x32xf32, #tpu.memory_space<vmem>>, %arg6: memref<20x32xf32, #tpu.memory_space<vmem>>, %arg7: memref<1x32xf32, #tpu.memory_space<vmem>>, %arg8: memref<1x32xf32, #tpu.memory_space<vmem>>, %arg9: memref<32x32xf32, #tpu.memory_space<vmem>>, %arg10: memref<1x32xf32, #tpu.memory_space<vmem>>, %arg11: memref<16x32xf32, #tpu.memory_space<vmem>>, %arg12: memref<32x32xf32, #tpu.memory_space<vmem>>, %arg13: memref<1x32xf32, #tpu.memory_space<vmem>>, %arg14: memref<32x16xf32, #tpu.memory_space<vmem>>, %arg15: memref<1x16xf32, #tpu.memory_space<vmem>>, %arg16: memref<32x32xf32, #tpu.memory_space<vmem>>, %arg17: memref<1x32xf32, #tpu.memory_space<vmem>>, %arg18: memref<1x32xf32, #tpu.memory_space<vmem>>, %arg19: memref<8x19xf32, #tpu.memory_space<vmem>>, %arg20: memref<8x128xf32, #tpu.memory_space<vmem>>) attributes {dimension_semantics = [#tpu.dimension_semantics<parallel>, #tpu.dimension_semantics<arbitrary>], iteration_bounds = array<i64: 4, 2>, scalar_prefetch = 0 : i64, scratch_operands = 1 : i64, tpu.core_type = #tpu.core_type<tc>, window_params = [{transform_indices = @transform_0, window_bounds = array<i64: 128, 2>}, {transform_indices = @transform_1, window_bounds = array<i64: 1, 128>}, {pipeline_mode = #tpu.pipeline_mode<synchronous>, transform_indices = @transform_2, window_bounds = array<i64: 32, 20>}, {pipeline_mode = #tpu.pipeline_mode<synchronous>, transform_indices = @transform_3, window_bounds = array<i64: 20, 32>}, {pipeline_mode = #tpu.pipeline_mode<synchronous>, transform_indices = @transform_4, window_bounds = array<i64: 20, 32>}, {pipeline_mode = #tpu.pipeline_mode<synchronous>, transform_indices = @transform_5, window_bounds = array<i64: 1, 32>}, {pipeline_mode = #tpu.pipeline_mode<synchronous>, transform_indices = @transform_6, window_bounds = array<i64: 1, 32>}, {pipeline_mode = #tpu.pipeline_mode<synchronous>, transform_indices = @transform_7, window_bounds = array<i64: 32, 32>}, {pipeline_mode = #tpu.pipeline_mode<synchronous>, transform_indices = @transform_8, window_bounds = array<i64: 1, 32>}, {pipeline_mode = #tpu.pipeline_mode<synchronous>, transform_indices = @transform_9, window_bounds = array<i64: 16, 32>}, {pipeline_mode = #tpu.pipeline_mode<synchronous>, transform_indices = @transform_10, window_bounds = array<i64: 32, 32>}, {pipeline_mode = #tpu.pipeline_mode<synchronous>, transform_indices = @transform_11, window_bounds = array<i64: 1, 32>}, {pipeline_mode = #tpu.pipeline_mode<synchronous>, transform_indices = @transform_12, window_bounds = array<i64: 32, 16>}, {pipeline_mode = #tpu.pipeline_mode<synchronous>, transform_indices = @transform_13, window_bounds = array<i64: 1, 16>}, {pipeline_mode = #tpu.pipeline_mode<synchronous>, transform_indices = @transform_14, window_bounds = array<i64: 32, 32>}, {pipeline_mode = #tpu.pipeline_mode<synchronous>, transform_indices = @transform_15, window_bounds = array<i64: 1, 32>}, {pipeline_mode = #tpu.pipeline_mode<synchronous>, transform_indices = @transform_16, window_bounds = array<i64: 1, 32>}, {transform_indices = @transform_17, window_bounds = array<i64: 8, 19>}]} {
    %c0_i32 = arith.constant 0 : i32
    %0 = arith.cmpi eq, %arg1, %c0_i32 : i32
    %1 = arith.extui %0 : i1 to i32
    %c0_i32_0 = arith.constant 0 : i32
    %2 = arith.cmpi ne, %1, %c0_i32_0 : i32
    scf.if %2 {
      %cst_42 = arith.constant 0.000000e+00 : f32
      %110 = vector.broadcast %cst_42 : f32 to vector<8x128xf32>
      %c0_43 = arith.constant 0 : index
      %c0_44 = arith.constant 0 : index
      %111 = vector.load %arg20[%c0_43, %c0_44] : memref<8x128xf32, #tpu.memory_space<vmem>>, vector<8x128xf32>
      tpu.vector_store %arg20[%c0_43, %c0_44], %110 {strides = array<i32>} : memref<8x128xf32, #tpu.memory_space<vmem>>, vector<8x128xf32>,
    } else {
    }
    %c0 = arith.constant 0 : index
    %c0_1 = arith.constant 0 : index
    %3 = vector.load %arg4[%c0, %c0_1] : memref<32x20xf32, #tpu.memory_space<vmem>>, vector<32x20xf32>
    %4 = arith.truncf %3 : vector<32x20xf32> to vector<32x20xbf16>
    %5 = arith.extf %4 : vector<32x20xbf16> to vector<32x20xf32>
    %6 = arith.subf %3, %5 : vector<32x20xf32>
    %7 = arith.truncf %6 : vector<32x20xf32> to vector<32x20xbf16>
    %c0_2 = arith.constant 0 : index
    %c0_3 = arith.constant 0 : index
    %8 = vector.load %arg2[%c0_2, %c0_3] : memref<128x2xi32, #tpu.memory_space<vmem>>, vector<128x2xi32>
    %9 = vector.extract_strided_slice %8 {offsets = [0, 0], sizes = [128, 1], strides = [1, 1]} : vector<128x2xi32> to vector<128x1xi32>
    %10 = vector.extract_strided_slice %8 {offsets = [0, 1], sizes = [128, 1], strides = [1, 1]} : vector<128x2xi32> to vector<128x1xi32>
    %11 = tpu.concatenate %9, %10 in 0 : vector<128x1xi32>, vector<128x1xi32> -> vector<256x1xi32>
    %12 = tpu.iota {dimensions = array<i32: 1>} : vector<256x32xi32>
    %13 = vector.broadcast %11 : vector<256x1xi32> to vector<256x32xi32>
    %14 = arith.cmpi eq, %12, %13 : vector<256x32xi32>
    %15 = arith.extui %14 : vector<256x32xi1> to vector<256x32xi32>
    %16 = arith.sitofp %15 : vector<256x32xi32> to vector<256x32xf32>
    %17 = arith.truncf %16 : vector<256x32xf32> to vector<256x32xbf16>
    %cst = arith.constant dense<0.000000e+00> : vector<256x20xf32>
    %18 = tpu.matmul %17, %4, %cst {dimension_numbers = #tpu.dot_dimension_numbers<[1], [0], [0], [1], [0, 0, 1, 1], [], []>} : vector<256x32xbf16>, vector<32x20xbf16>, vector<256x20xf32> -> vector<256x20xf32>
    %cst_4 = arith.constant dense<0.000000e+00> : vector<256x20xf32>
    %19 = tpu.matmul %17, %7, %cst_4 {dimension_numbers = #tpu.dot_dimension_numbers<[1], [0], [0], [1], [0, 0, 1, 1], [], []>} : vector<256x32xbf16>, vector<32x20xbf16>, vector<256x20xf32> -> vector<256x20xf32>
    %20 = arith.addf %18, %19 : vector<256x20xf32>
    %21 = vector.extract_strided_slice %20 {offsets = [0, 0], sizes = [128, 20], strides = [1, 1]} : vector<256x20xf32> to vector<128x20xf32>
    %22 = vector.extract_strided_slice %20 {offsets = [128, 0], sizes = [128, 20], strides = [1, 1]} : vector<256x20xf32> to vector<128x20xf32>
    %23 = arith.subf %21, %22 : vector<128x20xf32>
    %24 = tpu.iota {dimensions = array<i32: 1>} : vector<1x20xi32>
    %c16_i32 = arith.constant 16 : i32
    %25 = vector.broadcast %c16_i32 : i32 to vector<1x20xi32>
    %26 = arith.cmpi sge, %24, %25 : vector<1x20xi32>
    %c19_i32 = arith.constant 19 : i32
    %27 = vector.broadcast %c19_i32 : i32 to vector<1x20xi32>
    %28 = arith.cmpi slt, %24, %27 : vector<1x20xi32>
    %29 = arith.andi %26, %28 : vector<1x20xi1>
    %30 = arith.extui %29 : vector<1x20xi1> to vector<1x20xi32>
    %31 = arith.sitofp %30 : vector<1x20xi32> to vector<1x20xf32>
    %32 = arith.mulf %23, %23 : vector<128x20xf32>
    %33 = vector.broadcast %31 : vector<1x20xf32> to vector<128x20xf32>
    %34 = arith.mulf %32, %33 : vector<128x20xf32>
    %cst_5 = arith.constant dense<0.000000e+00> : vector<128xf32>
    %35 = vector.multi_reduction <add>, %34, %cst_5 [1] : vector<128x20xf32> to vector<128xf32>
    %36 = vector.shape_cast %35 : vector<128xf32> to vector<128x1xf32>
    %c0_6 = arith.constant 0 : index
    %c0_7 = arith.constant 0 : index
    %37 = vector.load %arg5[%c0_6, %c0_7] : memref<20x32xf32, #tpu.memory_space<vmem>>, vector<20x32xf32>
    %cst_8 = arith.constant dense<0.000000e+00> : vector<128x32xf32>
    %38 = tpu.matmul %21, %37, %cst_8 {dimension_numbers = #tpu.dot_dimension_numbers<[1], [0], [0], [1], [0, 0, 1, 1], [], []>} : vector<128x20xf32>, vector<20x32xf32>, vector<128x32xf32> -> vector<128x32xf32>
    %c0_9 = arith.constant 0 : index
    %c0_10 = arith.constant 0 : index
    %39 = vector.load %arg6[%c0_9, %c0_10] : memref<20x32xf32, #tpu.memory_space<vmem>>, vector<20x32xf32>
    %cst_11 = arith.constant dense<0.000000e+00> : vector<128x32xf32>
    %40 = tpu.matmul %22, %39, %cst_11 {dimension_numbers = #tpu.dot_dimension_numbers<[1], [0], [0], [1], [0, 0, 1, 1], [], []>} : vector<128x20xf32>, vector<20x32xf32>, vector<128x32xf32> -> vector<128x32xf32>
    %41 = arith.addf %38, %40 : vector<128x32xf32>
    %c0_12 = arith.constant 0 : index
    %c0_13 = arith.constant 0 : index
    %42 = vector.load %arg7[%c0_12, %c0_13] : memref<1x32xf32, #tpu.memory_space<vmem>>, vector<1x32xf32>
    %43 = vector.broadcast %36 : vector<128x1xf32> to vector<128x32xf32>
    %44 = vector.broadcast %42 : vector<1x32xf32> to vector<128x32xf32>
    %45 = arith.mulf %43, %44 : vector<128x32xf32>
    %46 = arith.addf %41, %45 : vector<128x32xf32>
    %c0_14 = arith.constant 0 : index
    %c0_15 = arith.constant 0 : index
    %47 = vector.load %arg8[%c0_14, %c0_15] : memref<1x32xf32, #tpu.memory_space<vmem>>, vector<1x32xf32>
    %48 = vector.broadcast %47 : vector<1x32xf32> to vector<128x32xf32>
    %49 = arith.addf %46, %48 : vector<128x32xf32>
    %50 = arith.negf %49 : vector<128x32xf32>
    %51 = math.exp %50 : vector<128x32xf32>
    %cst_16 = arith.constant 1.000000e+00 : f32
    %52 = vector.broadcast %cst_16 : f32 to vector<128x32xf32>
    %53 = arith.addf %52, %51 : vector<128x32xf32>
    %54 = arith.divf %52, %53 : vector<128x32xf32>
    %55 = arith.mulf %49, %54 : vector<128x32xf32>
    %c0_17 = arith.constant 0 : index
    %c0_18 = arith.constant 0 : index
    %56 = vector.load %arg9[%c0_17, %c0_18] : memref<32x32xf32, #tpu.memory_space<vmem>>, vector<32x32xf32>
    %cst_19 = arith.constant dense<0.000000e+00> : vector<128x32xf32>
    %57 = tpu.matmul %55, %56, %cst_19 {dimension_numbers = #tpu.dot_dimension_numbers<[1], [0], [0], [1], [0, 0, 1, 1], [], []>} : vector<128x32xf32>, vector<32x32xf32>, vector<128x32xf32> -> vector<128x32xf32>
    %c0_20 = arith.constant 0 : index
    %c0_21 = arith.constant 0 : index
    %58 = vector.load %arg10[%c0_20, %c0_21] : memref<1x32xf32, #tpu.memory_space<vmem>>, vector<1x32xf32>
    %59 = vector.broadcast %58 : vector<1x32xf32> to vector<128x32xf32>
    %60 = arith.addf %57, %59 : vector<128x32xf32>
    %61 = arith.negf %60 : vector<128x32xf32>
    %62 = math.exp %61 : vector<128x32xf32>
    %cst_22 = arith.constant 1.000000e+00 : f32
    %63 = vector.broadcast %cst_22 : f32 to vector<128x32xf32>
    %64 = arith.addf %63, %62 : vector<128x32xf32>
    %65 = arith.divf %63, %64 : vector<128x32xf32>
    %66 = arith.mulf %60, %65 : vector<128x32xf32>
    %c0_23 = arith.constant 0 : index
    %c0_24 = arith.constant 0 : index
    %67 = vector.load %arg16[%c0_23, %c0_24] : memref<32x32xf32, #tpu.memory_space<vmem>>, vector<32x32xf32>
    %cst_25 = arith.constant dense<0.000000e+00> : vector<128x32xf32>
    %68 = tpu.matmul %66, %67, %cst_25 {dimension_numbers = #tpu.dot_dimension_numbers<[1], [0], [0], [1], [0, 0, 1, 1], [], []>} : vector<128x32xf32>, vector<32x32xf32>, vector<128x32xf32> -> vector<128x32xf32>
    %c0_26 = arith.constant 0 : index
    %c0_27 = arith.constant 0 : index
    %69 = vector.load %arg17[%c0_26, %c0_27] : memref<1x32xf32, #tpu.memory_space<vmem>>, vector<1x32xf32>
    %70 = vector.broadcast %69 : vector<1x32xf32> to vector<128x32xf32>
    %71 = arith.addf %68, %70 : vector<128x32xf32>
    %72 = arith.negf %71 : vector<128x32xf32>
    %73 = math.exp %72 : vector<128x32xf32>
    %cst_28 = arith.constant 1.000000e+00 : f32
    %74 = vector.broadcast %cst_28 : f32 to vector<128x32xf32>
    %75 = arith.addf %74, %73 : vector<128x32xf32>
    %76 = arith.divf %74, %75 : vector<128x32xf32>
    %77 = arith.mulf %71, %76 : vector<128x32xf32>
    %c0_29 = arith.constant 0 : index
    %c0_30 = arith.constant 0 : index
    %78 = vector.load %arg18[%c0_29, %c0_30] : memref<1x32xf32, #tpu.memory_space<vmem>>, vector<1x32xf32>
    %79 = vector.broadcast %78 : vector<1x32xf32> to vector<128x32xf32>
    %80 = arith.mulf %77, %79 : vector<128x32xf32>
    %cst_31 = arith.constant dense<0.000000e+00> : vector<128xf32>
    %81 = vector.multi_reduction <add>, %80, %cst_31 [1] : vector<128x32xf32> to vector<128xf32>
    %82 = vector.shape_cast %81 : vector<128xf32> to vector<128x1xf32>
    %83 = vector.broadcast %82 : vector<128x1xf32> to vector<128x20xf32>
    %84 = arith.mulf %23, %83 : vector<128x20xf32>
    %cst_32 = arith.constant 0.000000e+00 : f32
    %85 = vector.broadcast %cst_32 : f32 to vector<128x76xf32>
    %86 = tpu.concatenate %66, %84, %85 in 1 : vector<128x32xf32>, vector<128x20xf32>, vector<128x76xf32> -> vector<128x128xf32>
    %87 = arith.truncf %86 : vector<128x128xf32> to vector<128x128xbf16>
    %88 = arith.extf %87 : vector<128x128xbf16> to vector<128x128xf32>
    %89 = arith.subf %86, %88 : vector<128x128xf32>
    %90 = arith.truncf %89 : vector<128x128xf32> to vector<128x128xbf16>
    %c0_33 = arith.constant 0 : index
    %c0_34 = arith.constant 0 : index
    %91 = vector.load %arg3[%c0_33, %c0_34] : memref<1x128xi32, #tpu.memory_space<vmem>>, vector<1x128xi32>
    %92 = tpu.iota {dimensions = array<i32: 0>} : vector<8x128xi32>
    %c8_i32 = arith.constant 8 : i32
    %93 = arith.muli %arg0, %c8_i32 : i32
    %94 = vector.broadcast %93 : i32 to vector<8x128xi32>
    %95 = arith.addi %92, %94 : vector<8x128xi32>
    %96 = vector.broadcast %91 : vector<1x128xi32> to vector<8x128xi32>
    %97 = arith.cmpi eq, %95, %96 : vector<8x128xi32>
    %98 = arith.extui %97 : vector<8x128xi1> to vector<8x128xi32>
    %99 = arith.sitofp %98 : vector<8x128xi32> to vector<8x128xf32>
    %100 = arith.truncf %99 : vector<8x128xf32> to vector<8x128xbf16>
    %c0_35 = arith.constant 0 : index
    %c0_36 = arith.constant 0 : index
    %101 = vector.load %arg20[%c0_35, %c0_36] : memref<8x128xf32, #tpu.memory_space<vmem>>, vector<8x128xf32>
    %cst_37 = arith.constant dense<0.000000e+00> : vector<8x128xf32>
    %102 = tpu.matmul %100, %87, %cst_37 {dimension_numbers = #tpu.dot_dimension_numbers<[1], [0], [0], [1], [0, 0, 1, 1], [], []>} : vector<8x128xbf16>, vector<128x128xbf16>, vector<8x128xf32> -> vector<8x128xf32>
    %cst_38 = arith.constant dense<0.000000e+00> : vector<8x128xf32>
    %103 = tpu.matmul %100, %90, %cst_38 {dimension_numbers = #tpu.dot_dimension_numbers<[1], [0], [0], [1], [0, 0, 1, 1], [], []>} : vector<8x128xbf16>, vector<128x128xbf16>, vector<8x128xf32> -> vector<8x128xf32>
    %104 = arith.addf %102, %103 : vector<8x128xf32>
    %105 = arith.addf %101, %104 : vector<8x128xf32>
    %c0_39 = arith.constant 0 : index
    %c0_40 = arith.constant 0 : index
    %106 = vector.load %arg20[%c0_39, %c0_40] : memref<8x128xf32, #tpu.memory_space<vmem>>, vector<8x128xf32>
    tpu.vector_store %arg20[%c0_39, %c0_40], %105 {strides = array<i32>} : memref<8x128xf32, #tpu.memory_space<vmem>>, vector<8x128xf32>,
    %c1_i32 = arith.constant 1 : i32
    %107 = arith.cmpi eq, %arg1, %c1_i32 : i32
    %108 = arith.extui %107 : i1 to i32
    %c0_i32_41 = arith.constant 0 : i32
    %109 = arith.cmpi ne, %108, %c0_i32_41 : i32
    scf.if %109 {
      %c8_i32_42 = arith.constant 8 : i32
      %110 = arith.muli %arg0, %c8_i32_42 : i32
      %111 = tpu.assume_multiple %110, 8 : i32
      %112 = arith.index_cast %111 : i32 to index
      %c0_43 = arith.constant 0 : index
      %113 = vector.load %arg4[%112, %c0_43] : memref<32x20xf32, #tpu.memory_space<vmem>>, vector<8x20xf32>
      %114 = vector.extract_strided_slice %113 {offsets = [0, 0], sizes = [8, 16], strides = [1, 1]} : vector<8x20xf32> to vector<8x16xf32>
      %115 = vector.extract_strided_slice %113 {offsets = [0, 16], sizes = [8, 3], strides = [1, 1]} : vector<8x20xf32> to vector<8x3xf32>
      %116 = vector.extract_strided_slice %113 {offsets = [0, 19], sizes = [8, 1], strides = [1, 1]} : vector<8x20xf32> to vector<8x1xf32>
      %c0_44 = arith.constant 0 : index
      %c0_45 = arith.constant 0 : index
      %117 = vector.load %arg20[%c0_44, %c0_45] : memref<8x128xf32, #tpu.memory_space<vmem>>, vector<8x128xf32>
      %118 = vector.extract_strided_slice %117 {offsets = [0, 0], sizes = [8, 32], strides = [1, 1]} : vector<8x128xf32> to vector<8x32xf32>
      %119 = vector.extract_strided_slice %117 {offsets = [0, 48], sizes = [8, 3], strides = [1, 1]} : vector<8x128xf32> to vector<8x3xf32>
      %120 = vector.broadcast %116 : vector<8x1xf32> to vector<8x3xf32>
      %121 = arith.mulf %119, %120 : vector<8x3xf32>
      %122 = arith.addf %115, %121 : vector<8x3xf32>
      %c0_46 = arith.constant 0 : index
      %c0_47 = arith.constant 0 : index
      %123 = vector.load %arg11[%c0_46, %c0_47] : memref<16x32xf32, #tpu.memory_space<vmem>>, vector<16x32xf32>
      %cst_48 = arith.constant dense<0.000000e+00> : vector<8x32xf32>
      %124 = tpu.matmul %114, %123, %cst_48 {dimension_numbers = #tpu.dot_dimension_numbers<[1], [0], [0], [1], [0, 0, 1, 1], [], []>} : vector<8x16xf32>, vector<16x32xf32>, vector<8x32xf32> -> vector<8x32xf32>
      %c0_49 = arith.constant 0 : index
      %c0_50 = arith.constant 0 : index
      %125 = vector.load %arg12[%c0_49, %c0_50] : memref<32x32xf32, #tpu.memory_space<vmem>>, vector<32x32xf32>
      %cst_51 = arith.constant dense<0.000000e+00> : vector<8x32xf32>
      %126 = tpu.matmul %118, %125, %cst_51 {dimension_numbers = #tpu.dot_dimension_numbers<[1], [0], [0], [1], [0, 0, 1, 1], [], []>} : vector<8x32xf32>, vector<32x32xf32>, vector<8x32xf32> -> vector<8x32xf32>
      %127 = arith.addf %124, %126 : vector<8x32xf32>
      %c0_52 = arith.constant 0 : index
      %c0_53 = arith.constant 0 : index
      %128 = vector.load %arg13[%c0_52, %c0_53] : memref<1x32xf32, #tpu.memory_space<vmem>>, vector<1x32xf32>
      %129 = vector.broadcast %128 : vector<1x32xf32> to vector<8x32xf32>
      %130 = arith.addf %127, %129 : vector<8x32xf32>
      %131 = arith.negf %130 : vector<8x32xf32>
      %132 = math.exp %131 : vector<8x32xf32>
      %cst_54 = arith.constant 1.000000e+00 : f32
      %133 = vector.broadcast %cst_54 : f32 to vector<8x32xf32>
      %134 = arith.addf %133, %132 : vector<8x32xf32>
      %135 = arith.divf %133, %134 : vector<8x32xf32>
      %136 = arith.mulf %130, %135 : vector<8x32xf32>
      %c0_55 = arith.constant 0 : index
      %c0_56 = arith.constant 0 : index
      %137 = vector.load %arg14[%c0_55, %c0_56] : memref<32x16xf32, #tpu.memory_space<vmem>>, vector<32x16xf32>
      %cst_57 = arith.constant dense<0.000000e+00> : vector<8x16xf32>
      %138 = tpu.matmul %136, %137, %cst_57 {dimension_numbers = #tpu.dot_dimension_numbers<[1], [0], [0], [1], [0, 0, 1, 1], [], []>} : vector<8x32xf32>, vector<32x16xf32>, vector<8x16xf32> -> vector<8x16xf32>
      %139 = arith.addf %114, %138 : vector<8x16xf32>
      %c0_58 = arith.constant 0 : index
      %c0_59 = arith.constant 0 : index
      %140 = vector.load %arg15[%c0_58, %c0_59] : memref<1x16xf32, #tpu.memory_space<vmem>>, vector<1x16xf32>
      %141 = vector.broadcast %140 : vector<1x16xf32> to vector<8x16xf32>
      %142 = arith.addf %139, %141 : vector<8x16xf32>
      %143 = tpu.concatenate %142, %122 in 1 : vector<8x16xf32>, vector<8x3xf32> -> vector<8x19xf32>
      %c0_60 = arith.constant 0 : index
      %c0_61 = arith.constant 0 : index
      %144 = vector.load %arg19[%c0_60, %c0_61] : memref<8x19xf32, #tpu.memory_space<vmem>>, vector<8x19xf32>
      tpu.vector_store %arg19[%c0_60, %c0_61], %143 {strides = array<i32>} : memref<8x19xf32, #tpu.memory_space<vmem>>, vector<8x19xf32>,
    } else {
    }
    return
  }
  func.func @transform_0(%arg0: i32, %arg1: i32) -> (i32, i32) {
    %c2_i32 = arith.constant 2 : i32
    %0 = arith.muli %arg0, %c2_i32 : i32
    %1 = arith.addi %0, %arg1 : i32
    %c0_i32 = arith.constant 0 : i32
    %c0_i32_0 = arith.constant 0 : i32
    return %1, %c0_i32 : i32, i32
  }
  func.func @transform_1(%arg0: i32, %arg1: i32) -> (i32, i32) {
    %c2_i32 = arith.constant 2 : i32
    %0 = arith.muli %arg0, %c2_i32 : i32
    %1 = arith.addi %0, %arg1 : i32
    %c0_i32 = arith.constant 0 : i32
    %c0_i32_0 = arith.constant 0 : i32
    return %c0_i32, %1 : i32, i32
  }
  func.func @transform_2(%arg0: i32, %arg1: i32) -> (i32, i32) {
    %c0_i32 = arith.constant 0 : i32
    %c0_i32_0 = arith.constant 0 : i32
    %c0_i32_1 = arith.constant 0 : i32
    return %c0_i32, %c0_i32_0 : i32, i32
  }
  func.func @transform_3(%arg0: i32, %arg1: i32) -> (i32, i32) {
    %c0_i32 = arith.constant 0 : i32
    %c0_i32_0 = arith.constant 0 : i32
    %c0_i32_1 = arith.constant 0 : i32
    return %c0_i32, %c0_i32_0 : i32, i32
  }
  func.func @transform_4(%arg0: i32, %arg1: i32) -> (i32, i32) {
    %c0_i32 = arith.constant 0 : i32
    %c0_i32_0 = arith.constant 0 : i32
    %c0_i32_1 = arith.constant 0 : i32
    return %c0_i32, %c0_i32_0 : i32, i32
  }
  func.func @transform_5(%arg0: i32, %arg1: i32) -> (i32, i32) {
    %c0_i32 = arith.constant 0 : i32
    %c0_i32_0 = arith.constant 0 : i32
    %c0_i32_1 = arith.constant 0 : i32
    return %c0_i32, %c0_i32_0 : i32, i32
  }
  func.func @transform_6(%arg0: i32, %arg1: i32) -> (i32, i32) {
    %c0_i32 = arith.constant 0 : i32
    %c0_i32_0 = arith.constant 0 : i32
    %c0_i32_1 = arith.constant 0 : i32
    return %c0_i32, %c0_i32_0 : i32, i32
  }
  func.func @transform_7(%arg0: i32, %arg1: i32) -> (i32, i32) {
    %c0_i32 = arith.constant 0 : i32
    %c0_i32_0 = arith.constant 0 : i32
    %c0_i32_1 = arith.constant 0 : i32
    return %c0_i32, %c0_i32_0 : i32, i32
  }
  func.func @transform_8(%arg0: i32, %arg1: i32) -> (i32, i32) {
    %c0_i32 = arith.constant 0 : i32
    %c0_i32_0 = arith.constant 0 : i32
    %c0_i32_1 = arith.constant 0 : i32
    return %c0_i32, %c0_i32_0 : i32, i32
  }
  func.func @transform_9(%arg0: i32, %arg1: i32) -> (i32, i32) {
    %c0_i32 = arith.constant 0 : i32
    %c0_i32_0 = arith.constant 0 : i32
    %c0_i32_1 = arith.constant 0 : i32
    return %c0_i32, %c0_i32_0 : i32, i32
  }
  func.func @transform_10(%arg0: i32, %arg1: i32) -> (i32, i32) {
    %c0_i32 = arith.constant 0 : i32
    %c0_i32_0 = arith.constant 0 : i32
    %c0_i32_1 = arith.constant 0 : i32
    return %c0_i32, %c0_i32_0 : i32, i32
  }
  func.func @transform_11(%arg0: i32, %arg1: i32) -> (i32, i32) {
    %c0_i32 = arith.constant 0 : i32
    %c0_i32_0 = arith.constant 0 : i32
    %c0_i32_1 = arith.constant 0 : i32
    return %c0_i32, %c0_i32_0 : i32, i32
  }
  func.func @transform_12(%arg0: i32, %arg1: i32) -> (i32, i32) {
    %c0_i32 = arith.constant 0 : i32
    %c0_i32_0 = arith.constant 0 : i32
    %c0_i32_1 = arith.constant 0 : i32
    return %c0_i32, %c0_i32_0 : i32, i32
  }
  func.func @transform_13(%arg0: i32, %arg1: i32) -> (i32, i32) {
    %c0_i32 = arith.constant 0 : i32
    %c0_i32_0 = arith.constant 0 : i32
    %c0_i32_1 = arith.constant 0 : i32
    return %c0_i32, %c0_i32_0 : i32, i32
  }
  func.func @transform_14(%arg0: i32, %arg1: i32) -> (i32, i32) {
    %c0_i32 = arith.constant 0 : i32
    %c0_i32_0 = arith.constant 0 : i32
    %c0_i32_1 = arith.constant 0 : i32
    return %c0_i32, %c0_i32_0 : i32, i32
  }
  func.func @transform_15(%arg0: i32, %arg1: i32) -> (i32, i32) {
    %c0_i32 = arith.constant 0 : i32
    %c0_i32_0 = arith.constant 0 : i32
    %c0_i32_1 = arith.constant 0 : i32
    return %c0_i32, %c0_i32_0 : i32, i32
  }
  func.func @transform_16(%arg0: i32, %arg1: i32) -> (i32, i32) {
    %c0_i32 = arith.constant 0 : i32
    %c0_i32_0 = arith.constant 0 : i32
    %c0_i32_1 = arith.constant 0 : i32
    return %c0_i32, %c0_i32_0 : i32, i32
  }
  func.func @transform_17(%arg0: i32, %arg1: i32) -> (i32, i32) {
    %c0_i32 = arith.constant 0 : i32
    %c0_i32_0 = arith.constant 0 : i32
    return %arg0, %c0_i32 : i32, i32
  }
}

</mosaic_0001>

<llo_original>
// kernel: tpu_custom_call.1
$region0: #{tpu_custom_call.1}
  #allocation0 [shape = 'u32[]', space=smem, size = 0x4, offset = 0x4, fixed_abs, tag = 'smem constant byte address 0x4 - core index']
  #allocation1 [shape = 'u32[144,128]{1,0:T(1,128)}', space=vmem, size = 0x12000, scoped, tag = 'internal scratch']
  #allocation2 [shape = 'f32[8,128]{1,0:T(8,128)}', space=vmem, size = 0x1000, scoped, tag = 'scratch operand']
  %s0 = inlined_call_operand.vmem [shape: s32[1024,2], index: 0, kind: input, shape index: {}]
  %s1 = inlined_call_operand.vmem [shape: s32[1,1024], index: 1, kind: input, shape index: {}]
  %s2 = inlined_call_operand.vmem [shape: f32[32,20], index: 2, kind: input, shape index: {}]
  %s3 = inlined_call_operand.vmem [shape: f32[20,32], index: 3, kind: input, shape index: {}]
  %s4 = inlined_call_operand.vmem [shape: f32[20,32], index: 4, kind: input, shape index: {}]
  %s5 = inlined_call_operand.vmem [shape: f32[1,32], index: 5, kind: input, shape index: {}]
  %s6 = inlined_call_operand.vmem [shape: f32[1,32], index: 6, kind: input, shape index: {}]
  %s7 = inlined_call_operand.vmem [shape: f32[32,32], index: 7, kind: input, shape index: {}]
  %s8 = inlined_call_operand.vmem [shape: f32[1,32], index: 8, kind: input, shape index: {}]
  %s9 = inlined_call_operand.vmem [shape: f32[16,32], index: 9, kind: input, shape index: {}]
  %s10 = inlined_call_operand.vmem [shape: f32[32,32], index: 10, kind: input, shape index: {}]
  %s11 = inlined_call_operand.vmem [shape: f32[1,32], index: 11, kind: input, shape index: {}]
  %s12 = inlined_call_operand.vmem [shape: f32[32,16], index: 12, kind: input, shape index: {}]
  %s13 = inlined_call_operand.vmem [shape: f32[1,16], index: 13, kind: input, shape index: {}]
  %s14 = inlined_call_operand.vmem [shape: f32[32,32], index: 14, kind: input, shape index: {}]
  %s15 = inlined_call_operand.vmem [shape: f32[1,32], index: 15, kind: input, shape index: {}]
  %s16 = inlined_call_operand.vmem [shape: f32[1,32], index: 16, kind: input, shape index: {}]
  %s17 = inlined_call_operand.vmem [shape: f32[32,19], index: 17, kind: output, shape index: {}]
  %s18 = sld [smem:[#allocation0]]
  $region109: #{tpu_custom_call.1} parent=0
    _
  %s20 = ssub.s32 1, %s18
  %s21 = scalar_select 0, %s20, %s18
  loop: start=0, step=1, limit=10
  $region2: #{tpu_custom_call.1} parent=0 // loop_pre_header
    _
  $region3: #{tpu_custom_call.1} parent=0 // loop_header
    %s23 = sphi 0, %s27
    %p24 = scmp.ge.s32.totalorder %s23, 10
    %s30 = sphi 0, %s42
    %s31 = sphi 0, %s38
    %s32 = sphi 0, %s30
    %s33 = sphi 0, %s31
    %s34 = sphi 0, %s32
    %s35 = sphi 0, %s33
    %s49 = sphi 0, %s51
    %s52 = sphi 0, %s49
    %s53 = sphi 0, %s52
    %s69 = sphi 0, %s53
    %s79 = sphi 0, %s81
    %s82 = sphi 0, %s79
    %s83 = sphi 0, %s82
    %s99 = sphi 0, %s83
    %s103 = sphi 0, %s103
    %s105 = sphi 0, %s103
    %s106 = sphi 0, %s105
    %s120 = sphi 0, %s106
    %s124 = sphi 0, %s124
    %s126 = sphi 0, %s124
    %s127 = sphi 0, %s126
    %s141 = sphi 0, %s127
    %s145 = sphi 0, %s145
    %s147 = sphi 0, %s145
    %s148 = sphi 0, %s147
    %s162 = sphi 0, %s148
    %s166 = sphi 0, %s166
    %s168 = sphi 0, %s166
    %s169 = sphi 0, %s168
    %s183 = sphi 0, %s169
    %s187 = sphi 0, %s187
    %s189 = sphi 0, %s187
    %s190 = sphi 0, %s189
    %s204 = sphi 0, %s190
    %s208 = sphi 0, %s208
    %s210 = sphi 0, %s208
    %s211 = sphi 0, %s210
    %s225 = sphi 0, %s211
    %s229 = sphi 0, %s229
    %s231 = sphi 0, %s229
    %s232 = sphi 0, %s231
    %s246 = sphi 0, %s232
    %s250 = sphi 0, %s250
    %s252 = sphi 0, %s250
    %s253 = sphi 0, %s252
    %s267 = sphi 0, %s253
    %s271 = sphi 0, %s271
    %s273 = sphi 0, %s271
    %s274 = sphi 0, %s273
    %s288 = sphi 0, %s274
    %s292 = sphi 0, %s292
    %s294 = sphi 0, %s292
    %s295 = sphi 0, %s294
    %s309 = sphi 0, %s295
    %s313 = sphi 0, %s313
    %s315 = sphi 0, %s313
    %s316 = sphi 0, %s315
    %s330 = sphi 0, %s316
    %s334 = sphi 0, %s334
    %s336 = sphi 0, %s334
    %s337 = sphi 0, %s336
    %s351 = sphi 0, %s337
    %s355 = sphi 0, %s355
    %s357 = sphi 0, %s355
    %s358 = sphi 0, %s357
    %s372 = sphi 0, %s358
    %s376 = sphi 0, %s376
    %s378 = sphi 0, %s376
    %s379 = sphi 0, %s378
    %s393 = sphi 0, %s379
    %s397 = sphi 0, %s397
    %s399 = sphi 0, %s397
    %s400 = sphi 0, %s399
    %s414 = sphi 0, %s400
    %s420 = sphi 0, %s422
    %s423 = sphi 0, %s420
    %s424 = sphi 0, %s423
    %s440 = sphi 0, %s424
  $region4: #{tpu_custom_call.1} parent=0 // loop_header_branch
    %26 = sbr.rel (%p24) target = $region8
  $region5: #{tpu_custom_call.1} parent=0 // loop_body
    %s28 = ssub.s32 %s23, 1
    %s29 = ssub.s32 %s23, 2
    %s36 = sadd.s32 1, %s31
    %p37 = scmp.ge.s32.totalorder %s36, 2
    %s38 = scalar_select %p37, 0, %s36
    %s39 = sadd.s32 1, %s30
    %s40 = scalar_select %p37, %s39, %s30
    %p41 = scmp.ge.s32.totalorder %s40, 4
    %s42 = scalar_select %p41, 0, %s40
    %s43 = smul.u32 %s30, 2
    %s44 = sadd.s32 %s43, %s31
    %s45 = smul.u32 %s42, 2
    %s46 = sadd.s32 %s45, %s38
    %s47 = ssub.s32 %s44, %s46
    %p48 = scmp.eq.s32.totalorder %s47, 0
    %s50 = sadd.s32 %s49, 1
    %s51 = scalar_select %p48, %s49, %s50
    %p54 = pneg %p48
    %p55 = scmp.eq.s32.totalorder %s23, 7
    %p56 = por %p54, %p55
    %p57 = scmp.ne.s32.totalorder %s49, %s52
    %p58 = scmp.eq.s32.totalorder %s23, 0
    %p59 = por %p57, %p58
    %p60 = scmp.ne.s32.totalorder %s49, %s52
    %p61 = scmp.eq.s32.totalorder %s28, 7
    %p62 = por %p60, %p61
    %p63 = scmp.ne.s32.totalorder %s52, %s53
    %p64 = scmp.eq.s32.totalorder %s28, 0
    %p65 = por %p63, %p64
    %p66 = scmp.ne.s32.totalorder %s52, %s53
    %p67 = scmp.eq.s32.totalorder %s29, 7
    %p68 = por %p66, %p67
    %p70 = scmp.ne.s32.totalorder %s53, %s69
    %p71 = scmp.eq.s32.totalorder %s29, 0
    %p72 = por %p70, %p71
    %s73 = smul.u32 %s30, 2
    %s74 = sadd.s32 %s73, %s31
    %s75 = smul.u32 %s42, 2
    %s76 = sadd.s32 %s75, %s38
    %s77 = ssub.s32 %s74, %s76
    %p78 = scmp.eq.s32.totalorder %s77, 0
    %s80 = sadd.s32 %s79, 1
    %s81 = scalar_select %p78, %s79, %s80
    %p84 = pneg %p78
    %p85 = scmp.eq.s32.totalorder %s23, 7
    %p86 = por %p84, %p85
    %p87 = scmp.ne.s32.totalorder %s79, %s82
    %p88 = scmp.eq.s32.totalorder %s23, 0
    %p89 = por %p87, %p88
    %p90 = scmp.ne.s32.totalorder %s79, %s82
    %p91 = scmp.eq.s32.totalorder %s28, 7
    %p92 = por %p90, %p91
    %p93 = scmp.ne.s32.totalorder %s82, %s83
    %p94 = scmp.eq.s32.totalorder %s28, 0
    %p95 = por %p93, %p94
    %p96 = scmp.ne.s32.totalorder %s82, %s83
    %p97 = scmp.eq.s32.totalorder %s29, 7
    %p98 = por %p96, %p97
    %p100 = scmp.ne.s32.totalorder %s83, %s99
    %p101 = scmp.eq.s32.totalorder %s29, 0
    %p102 = por %p100, %p101
    %s104 = sadd.s32 %s103, 1
    %p107 = scmp.eq.s32.totalorder %s23, 7
    %p108 = scmp.ne.s32.totalorder %s103, %s105
    %p109 = scmp.eq.s32.totalorder %s23, 0
    %p110 = por %p108, %p109
    %p111 = scmp.ne.s32.totalorder %s103, %s105
    %p112 = scmp.eq.s32.totalorder %s28, 7
    %p113 = por %p111, %p112
    %p114 = scmp.ne.s32.totalorder %s105, %s106
    %p115 = scmp.eq.s32.totalorder %s28, 0
    %p116 = por %p114, %p115
    %p117 = scmp.ne.s32.totalorder %s105, %s106
    %p118 = scmp.eq.s32.totalorder %s29, 7
    %p119 = por %p117, %p118
    %p121 = scmp.ne.s32.totalorder %s106, %s120
    %p122 = scmp.eq.s32.totalorder %s29, 0
    %p123 = por %p121, %p122
    %s125 = sadd.s32 %s124, 1
    %p128 = scmp.eq.s32.totalorder %s23, 7
    %p129 = scmp.ne.s32.totalorder %s124, %s126
    %p130 = scmp.eq.s32.totalorder %s23, 0
    %p131 = por %p129, %p130
    %p132 = scmp.ne.s32.totalorder %s124, %s126
    %p133 = scmp.eq.s32.totalorder %s28, 7
    %p134 = por %p132, %p133
    %p135 = scmp.ne.s32.totalorder %s126, %s127
    %p136 = scmp.eq.s32.totalorder %s28, 0
    %p137 = por %p135, %p136
    %p138 = scmp.ne.s32.totalorder %s126, %s127
    %p139 = scmp.eq.s32.totalorder %s29, 7
    %p140 = por %p138, %p139
    %p142 = scmp.ne.s32.totalorder %s127, %s141
    %p143 = scmp.eq.s32.totalorder %s29, 0
    %p144 = por %p142, %p143
    %s146 = sadd.s32 %s145, 1
    %p149 = scmp.eq.s32.totalorder %s23, 7
    %p150 = scmp.ne.s32.totalorder %s145, %s147
    %p151 = scmp.eq.s32.totalorder %s23, 0
    %p152 = por %p150, %p151
    %p153 = scmp.ne.s32.totalorder %s145, %s147
    %p154 = scmp.eq.s32.totalorder %s28, 7
    %p155 = por %p153, %p154
    %p156 = scmp.ne.s32.totalorder %s147, %s148
    %p157 = scmp.eq.s32.totalorder %s28, 0
    %p158 = por %p156, %p157
    %p159 = scmp.ne.s32.totalorder %s147, %s148
    %p160 = scmp.eq.s32.totalorder %s29, 7
    %p161 = por %p159, %p160
    %p163 = scmp.ne.s32.totalorder %s148, %s162
    %p164 = scmp.eq.s32.totalorder %s29, 0
    %p165 = por %p163, %p164
    %s167 = sadd.s32 %s166, 1
    %p170 = scmp.eq.s32.totalorder %s23, 7
    %p171 = scmp.ne.s32.totalorder %s166, %s168
    %p172 = scmp.eq.s32.totalorder %s23, 0
    %p173 = por %p171, %p172
    %p174 = scmp.ne.s32.totalorder %s166, %s168
    %p175 = scmp.eq.s32.totalorder %s28, 7
    %p176 = por %p174, %p175
    %p177 = scmp.ne.s32.totalorder %s168, %s169
    %p178 = scmp.eq.s32.totalorder %s28, 0
    %p179 = por %p177, %p178
    %p180 = scmp.ne.s32.totalorder %s168, %s169
    %p181 = scmp.eq.s32.totalorder %s29, 7
    %p182 = por %p180, %p181
    %p184 = scmp.ne.s32.totalorder %s169, %s183
    %p185 = scmp.eq.s32.totalorder %s29, 0
    %p186 = por %p184, %p185
    %s188 = sadd.s32 %s187, 1
    %p191 = scmp.eq.s32.totalorder %s23, 7
    %p192 = scmp.ne.s32.totalorder %s187, %s189
    %p193 = scmp.eq.s32.totalorder %s23, 0
    %p194 = por %p192, %p193
    %p195 = scmp.ne.s32.totalorder %s187, %s189
    %p196 = scmp.eq.s32.totalorder %s28, 7
    %p197 = por %p195, %p196
    %p198 = scmp.ne.s32.totalorder %s189, %s190
    %p199 = scmp.eq.s32.totalorder %s28, 0
    %p200 = por %p198, %p199
    %p201 = scmp.ne.s32.totalorder %s189, %s190
    %p202 = scmp.eq.s32.totalorder %s29, 7
    %p203 = por %p201, %p202
    %p205 = scmp.ne.s32.totalorder %s190, %s204
    %p206 = scmp.eq.s32.totalorder %s29, 0
    %p207 = por %p205, %p206
    %s209 = sadd.s32 %s208, 1
    %p212 = scmp.eq.s32.totalorder %s23, 7
    %p213 = scmp.ne.s32.totalorder %s208, %s210
    %p214 = scmp.eq.s32.totalorder %s23, 0
    %p215 = por %p213, %p214
    %p216 = scmp.ne.s32.totalorder %s208, %s210
    %p217 = scmp.eq.s32.totalorder %s28, 7
    %p218 = por %p216, %p217
    %p219 = scmp.ne.s32.totalorder %s210, %s211
    %p220 = scmp.eq.s32.totalorder %s28, 0
    %p221 = por %p219, %p220
    %p222 = scmp.ne.s32.totalorder %s210, %s211
    %p223 = scmp.eq.s32.totalorder %s29, 7
    %p224 = por %p222, %p223
    %p226 = scmp.ne.s32.totalorder %s211, %s225
    %p227 = scmp.eq.s32.totalorder %s29, 0
    %p228 = por %p226, %p227
    %s230 = sadd.s32 %s229, 1
    %p233 = scmp.eq.s32.totalorder %s23, 7
    %p234 = scmp.ne.s32.totalorder %s229, %s231
    %p235 = scmp.eq.s32.totalorder %s23, 0
    %p236 = por %p234, %p235
    %p237 = scmp.ne.s32.totalorder %s229, %s231
    %p238 = scmp.eq.s32.totalorder %s28, 7
    %p239 = por %p237, %p238
    %p240 = scmp.ne.s32.totalorder %s231, %s232
    %p241 = scmp.eq.s32.totalorder %s28, 0
    %p242 = por %p240, %p241
    %p243 = scmp.ne.s32.totalorder %s231, %s232
    %p244 = scmp.eq.s32.totalorder %s29, 7
    %p245 = por %p243, %p244
    %p247 = scmp.ne.s32.totalorder %s232, %s246
    %p248 = scmp.eq.s32.totalorder %s29, 0
    %p249 = por %p247, %p248
    %s251 = sadd.s32 %s250, 1
    %p254 = scmp.eq.s32.totalorder %s23, 7
    %p255 = scmp.ne.s32.totalorder %s250, %s252
    %p256 = scmp.eq.s32.totalorder %s23, 0
    %p257 = por %p255, %p256
    %p258 = scmp.ne.s32.totalorder %s250, %s252
    %p259 = scmp.eq.s32.totalorder %s28, 7
    %p260 = por %p258, %p259
    %p261 = scmp.ne.s32.totalorder %s252, %s253
    %p262 = scmp.eq.s32.totalorder %s28, 0
    %p263 = por %p261, %p262
    %p264 = scmp.ne.s32.totalorder %s252, %s253
    %p265 = scmp.eq.s32.totalorder %s29, 7
    %p266 = por %p264, %p265
    %p268 = scmp.ne.s32.totalorder %s253, %s267
    %p269 = scmp.eq.s32.totalorder %s29, 0
    %p270 = por %p268, %p269
    %s272 = sadd.s32 %s271, 1
    %p275 = scmp.eq.s32.totalorder %s23, 7
    %p276 = scmp.ne.s32.totalorder %s271, %s273
    %p277 = scmp.eq.s32.totalorder %s23, 0
    %p278 = por %p276, %p277
    %p279 = scmp.ne.s32.totalorder %s271, %s273
    %p280 = scmp.eq.s32.totalorder %s28, 7
    %p281 = por %p279, %p280
    %p282 = scmp.ne.s32.totalorder %s273, %s274
    %p283 = scmp.eq.s32.totalorder %s28, 0
    %p284 = por %p282, %p283
    %p285 = scmp.ne.s32.totalorder %s273, %s274
    %p286 = scmp.eq.s32.totalorder %s29, 7
    %p287 = por %p285, %p286
    %p289 = scmp.ne.s32.totalorder %s274, %s288
    %p290 = scmp.eq.s32.totalorder %s29, 0
    %p291 = por %p289, %p290
    %s293 = sadd.s32 %s292, 1
    %p296 = scmp.eq.s32.totalorder %s23, 7
    %p297 = scmp.ne.s32.totalorder %s292, %s294
    %p298 = scmp.eq.s32.totalorder %s23, 0
    %p299 = por %p297, %p298
    %p300 = scmp.ne.s32.totalorder %s292, %s294
    %p301 = scmp.eq.s32.totalorder %s28, 7
    %p302 = por %p300, %p301
    %p303 = scmp.ne.s32.totalorder %s294, %s295
    %p304 = scmp.eq.s32.totalorder %s28, 0
    %p305 = por %p303, %p304
    %p306 = scmp.ne.s32.totalorder %s294, %s295
    %p307 = scmp.eq.s32.totalorder %s29, 7
    %p308 = por %p306, %p307
    %p310 = scmp.ne.s32.totalorder %s295, %s309
    %p311 = scmp.eq.s32.totalorder %s29, 0
    %p312 = por %p310, %p311
    %s314 = sadd.s32 %s313, 1
    %p317 = scmp.eq.s32.totalorder %s23, 7
    %p318 = scmp.ne.s32.totalorder %s313, %s315
    %p319 = scmp.eq.s32.totalorder %s23, 0
    %p320 = por %p318, %p319
    %p321 = scmp.ne.s32.totalorder %s313, %s315
    %p322 = scmp.eq.s32.totalorder %s28, 7
    %p323 = por %p321, %p322
    %p324 = scmp.ne.s32.totalorder %s315, %s316
    %p325 = scmp.eq.s32.totalorder %s28, 0
    %p326 = por %p324, %p325
    %p327 = scmp.ne.s32.totalorder %s315, %s316
    %p328 = scmp.eq.s32.totalorder %s29, 7
    %p329 = por %p327, %p328
    %p331 = scmp.ne.s32.totalorder %s316, %s330
    %p332 = scmp.eq.s32.totalorder %s29, 0
    %p333 = por %p331, %p332
    %s335 = sadd.s32 %s334, 1
    %p338 = scmp.eq.s32.totalorder %s23, 7
    %p339 = scmp.ne.s32.totalorder %s334, %s336
    %p340 = scmp.eq.s32.totalorder %s23, 0
    %p341 = por %p339, %p340
    %p342 = scmp.ne.s32.totalorder %s334, %s336
    %p343 = scmp.eq.s32.totalorder %s28, 7
    %p344 = por %p342, %p343
    %p345 = scmp.ne.s32.totalorder %s336, %s337
    %p346 = scmp.eq.s32.totalorder %s28, 0
    %p347 = por %p345, %p346
    %p348 = scmp.ne.s32.totalorder %s336, %s337
    %p349 = scmp.eq.s32.totalorder %s29, 7
    %p350 = por %p348, %p349
    %p352 = scmp.ne.s32.totalorder %s337, %s351
    %p353 = scmp.eq.s32.totalorder %s29, 0
    %p354 = por %p352, %p353
    %s356 = sadd.s32 %s355, 1
    %p359 = scmp.eq.s32.totalorder %s23, 7
    %p360 = scmp.ne.s32.totalorder %s355, %s357
    %p361 = scmp.eq.s32.totalorder %s23, 0
    %p362 = por %p360, %p361
    %p363 = scmp.ne.s32.totalorder %s355, %s357
    %p364 = scmp.eq.s32.totalorder %s28, 7
    %p365 = por %p363, %p364
    %p366 = scmp.ne.s32.totalorder %s357, %s358
    %p367 = scmp.eq.s32.totalorder %s28, 0
    %p368 = por %p366, %p367
    %p369 = scmp.ne.s32.totalorder %s357, %s358
    %p370 = scmp.eq.s32.totalorder %s29, 7
    %p371 = por %p369, %p370
    %p373 = scmp.ne.s32.totalorder %s358, %s372
    %p374 = scmp.eq.s32.totalorder %s29, 0
    %p375 = por %p373, %p374
    %s377 = sadd.s32 %s376, 1
    %p380 = scmp.eq.s32.totalorder %s23, 7
    %p381 = scmp.ne.s32.totalorder %s376, %s378
    %p382 = scmp.eq.s32.totalorder %s23, 0
    %p383 = por %p381, %p382
    %p384 = scmp.ne.s32.totalorder %s376, %s378
    %p385 = scmp.eq.s32.totalorder %s28, 7
    %p386 = por %p384, %p385
    %p387 = scmp.ne.s32.totalorder %s378, %s379
    %p388 = scmp.eq.s32.totalorder %s28, 0
    %p389 = por %p387, %p388
    %p390 = scmp.ne.s32.totalorder %s378, %s379
    %p391 = scmp.eq.s32.totalorder %s29, 7
    %p392 = por %p390, %p391
    %p394 = scmp.ne.s32.totalorder %s379, %s393
    %p395 = scmp.eq.s32.totalorder %s29, 0
    %p396 = por %p394, %p395
    %s398 = sadd.s32 %s397, 1
    %p401 = scmp.eq.s32.totalorder %s23, 7
    %p402 = scmp.ne.s32.totalorder %s397, %s399
    %p403 = scmp.eq.s32.totalorder %s23, 0
    %p404 = por %p402, %p403
    %p405 = scmp.ne.s32.totalorder %s397, %s399
    %p406 = scmp.eq.s32.totalorder %s28, 7
    %p407 = por %p405, %p406
    %p408 = scmp.ne.s32.totalorder %s399, %s400
    %p409 = scmp.eq.s32.totalorder %s28, 0
    %p410 = por %p408, %p409
    %p411 = scmp.ne.s32.totalorder %s399, %s400
    %p412 = scmp.eq.s32.totalorder %s29, 7
    %p413 = por %p411, %p412
    %p415 = scmp.ne.s32.totalorder %s400, %s414
    %p416 = scmp.eq.s32.totalorder %s29, 0
    %p417 = por %p415, %p416
    %s418 = ssub.s32 %s30, %s42
    %p419 = scmp.eq.s32.totalorder %s418, 0
    %s421 = sadd.s32 %s420, 1
    %s422 = scalar_select %p419, %s420, %s421
    %p425 = pneg %p419
    %p426 = scmp.eq.s32.totalorder %s23, 7
    %p427 = por %p425, %p426
    %p428 = scmp.ne.s32.totalorder %s420, %s423
    %p429 = scmp.eq.s32.totalorder %s23, 0
    %p430 = por %p428, %p429
    %p431 = scmp.ne.s32.totalorder %s420, %s423
    %p432 = scmp.eq.s32.totalorder %s28, 7
    %p433 = por %p431, %p432
    %p434 = scmp.ne.s32.totalorder %s423, %s424
    %p435 = scmp.eq.s32.totalorder %s28, 0
    %p436 = por %p434, %p435
    %p437 = scmp.ne.s32.totalorder %s423, %s424
    %p438 = scmp.eq.s32.totalorder %s29, 7
    %p439 = por %p437, %p438
    %p441 = scmp.ne.s32.totalorder %s424, %s440
    %p442 = scmp.eq.s32.totalorder %s29, 0
    %p443 = por %p441, %p442
    %p444 = scmp.le.s32.totalorder 1, %s23
    %p445 = scmp.lt.s32.totalorder %s23, 9
    %p446 = pnand %p444, %p445
    %p447 = pneg %p446
    // Predicated region
    $region9: #{tpu_custom_call.1} parent=5 // pred_check
      _
    $region10: #{tpu_custom_call.1} parent=5 // pred_check_branch
      %449 = sbr.rel (%p446) target = $region12
    $region11: #{tpu_custom_call.1} parent=5 // pred_region
      %s450 = ssub.s32 %s23, 1
      // Predicated region
      $region13: #{tpu_custom_call.1} parent=11 // pred_check
        %p451 = pneg %p116
      $region14: #{tpu_custom_call.1} parent=11 // pred_check_branch
        %453 = sbr.rel (%p451) target = $region16
      $region15: #{tpu_custom_call.1} parent=11 // pred_region
        _
      $region16: #{tpu_custom_call.1} parent=11 // pred_fallthru
        _
      // Predicated region
      $region17: #{tpu_custom_call.1} parent=11 // pred_check
        %p454 = pneg %p137
      $region18: #{tpu_custom_call.1} parent=11 // pred_check_branch
        %456 = sbr.rel (%p454) target = $region20
      $region19: #{tpu_custom_call.1} parent=11 // pred_region
        _
      $region20: #{tpu_custom_call.1} parent=11 // pred_fallthru
        _
      // Predicated region
      $region21: #{tpu_custom_call.1} parent=11 // pred_check
        %p457 = pneg %p158
      $region22: #{tpu_custom_call.1} parent=11 // pred_check_branch
        %459 = sbr.rel (%p457) target = $region24
      $region23: #{tpu_custom_call.1} parent=11 // pred_region
        _
      $region24: #{tpu_custom_call.1} parent=11 // pred_fallthru
        _
      // Predicated region
      $region25: #{tpu_custom_call.1} parent=11 // pred_check
        %p460 = pneg %p179
      $region26: #{tpu_custom_call.1} parent=11 // pred_check_branch
        %462 = sbr.rel (%p460) target = $region28
      $region27: #{tpu_custom_call.1} parent=11 // pred_region
        _
      $region28: #{tpu_custom_call.1} parent=11 // pred_fallthru
        _
      // Predicated region
      $region29: #{tpu_custom_call.1} parent=11 // pred_check
        %p463 = pneg %p200
      $region30: #{tpu_custom_call.1} parent=11 // pred_check_branch
        %465 = sbr.rel (%p463) target = $region32
      $region31: #{tpu_custom_call.1} parent=11 // pred_region
        _
      $region32: #{tpu_custom_call.1} parent=11 // pred_fallthru
        _
      // Predicated region
      $region33: #{tpu_custom_call.1} parent=11 // pred_check
        %p466 = pneg %p221
      $region34: #{tpu_custom_call.1} parent=11 // pred_check_branch
        %468 = sbr.rel (%p466) target = $region36
      $region35: #{tpu_custom_call.1} parent=11 // pred_region
        _
      $region36: #{tpu_custom_call.1} parent=11 // pred_fallthru
        _
      // Predicated region
      $region37: #{tpu_custom_call.1} parent=11 // pred_check
        %p469 = pneg %p242
      $region38: #{tpu_custom_call.1} parent=11 // pred_check_branch
        %471 = sbr.rel (%p469) target = $region40
      $region39: #{tpu_custom_call.1} parent=11 // pred_region
        _
      $region40: #{tpu_custom_call.1} parent=11 // pred_fallthru
        _
      // Predicated region
      $region41: #{tpu_custom_call.1} parent=11 // pred_check
        %p472 = pneg %p263
      $region42: #{tpu_custom_call.1} parent=11 // pred_check_branch
        %474 = sbr.rel (%p472) target = $region44
      $region43: #{tpu_custom_call.1} parent=11 // pred_region
        _
      $region44: #{tpu_custom_call.1} parent=11 // pred_fallthru
        _
      // Predicated region
      $region45: #{tpu_custom_call.1} parent=11 // pred_check
        %p475 = pneg %p284
      $region46: #{tpu_custom_call.1} parent=11 // pred_check_branch
        %477 = sbr.rel (%p475) target = $region48
      $region47: #{tpu_custom_call.1} parent=11 // pred_region
        _
      $region48: #{tpu_custom_call.1} parent=11 // pred_fallthru
        _
      // Predicated region
      $region49: #{tpu_custom_call.1} parent=11 // pred_check
        %p478 = pneg %p305
      $region50: #{tpu_custom_call.1} parent=11 // pred_check_branch
        %480 = sbr.rel (%p478) target = $region52
      $region51: #{tpu_custom_call.1} parent=11 // pred_region
        _
      $region52: #{tpu_custom_call.1} parent=11 // pred_fallthru
        _
      // Predicated region
      $region53: #{tpu_custom_call.1} parent=11 // pred_check
        %p481 = pneg %p326
      $region54: #{tpu_custom_call.1} parent=11 // pred_check_branch
        %483 = sbr.rel (%p481) target = $region56
      $region55: #{tpu_custom_call.1} parent=11 // pred_region
        _
      $region56: #{tpu_custom_call.1} parent=11 // pred_fallthru
        _
      // Predicated region
      $region57: #{tpu_custom_call.1} parent=11 // pred_check
        %p484 = pneg %p347
      $region58: #{tpu_custom_call.1} parent=11 // pred_check_branch
        %486 = sbr.rel (%p484) target = $region60
      $region59: #{tpu_custom_call.1} parent=11 // pred_region
        _
      $region60: #{tpu_custom_call.1} parent=11 // pred_fallthru
        _
      // Predicated region
      $region61: #{tpu_custom_call.1} parent=11 // pred_check
        %p487 = pneg %p368
      $region62: #{tpu_custom_call.1} parent=11 // pred_check_branch
        %489 = sbr.rel (%p487) target = $region64
      $region63: #{tpu_custom_call.1} parent=11 // pred_region
        _
      $region64: #{tpu_custom_call.1} parent=11 // pred_fallthru
        _
      // Predicated region
      $region65: #{tpu_custom_call.1} parent=11 // pred_check
        %p490 = pneg %p389
      $region66: #{tpu_custom_call.1} parent=11 // pred_check_branch
        %492 = sbr.rel (%p490) target = $region68
      $region67: #{tpu_custom_call.1} parent=11 // pred_region
        _
      $region68: #{tpu_custom_call.1} parent=11 // pred_fallthru
        _
      // Predicated region
      $region69: #{tpu_custom_call.1} parent=11 // pred_check
        %p493 = pneg %p410
      $region70: #{tpu_custom_call.1} parent=11 // pred_check_branch
        %495 = sbr.rel (%p493) target = $region72
      $region71: #{tpu_custom_call.1} parent=11 // pred_region
        _
      $region72: #{tpu_custom_call.1} parent=11 // pred_fallthru
        _
    $region12: #{tpu_custom_call.1} parent=5 // pred_fallthru
      _
    %p496 = scmp.lt.s32.totalorder %s23, 8
    // Predicated region
    $region73: #{tpu_custom_call.1} parent=5 // pred_check
      %p497 = pneg %p496
    $region74: #{tpu_custom_call.1} parent=5 // pred_check_branch
      %499 = sbr.rel (%p497) target = $region76
    $region75: #{tpu_custom_call.1} parent=5 // pred_region
      // Predicated region
      $region77: #{tpu_custom_call.1} parent=75 // pred_check
        %p500 = pneg %p59
      $region78: #{tpu_custom_call.1} parent=75 // pred_check_branch
        %502 = sbr.rel (%p500) target = $region80
      $region79: #{tpu_custom_call.1} parent=75 // pred_region
        %s503 = smul.u32 %s30, 2
        %s504 = sadd.s32 %s503, %s31
        %s505 = smul.u32 16, %s504
        %p506 = scmp.lt.s32.totalorder %s505, 127
        %s507 = scalar_select %p506, %s505, 127
        %s508 = smul.addr %s507, 8
        %s509 = scalar_lea.vmem %s0, %s508
        %s510 = smul.u32 %s30, 2
        %s511 = sadd.s32 %s510, %s31
        %s512 = smul.u32 16, %s511
      $region80: #{tpu_custom_call.1} parent=75 // pred_fallthru
        _
      // Predicated region
      $region81: #{tpu_custom_call.1} parent=75 // pred_check
        %p513 = pneg %p89
      $region82: #{tpu_custom_call.1} parent=75 // pred_check_branch
        %515 = sbr.rel (%p513) target = $region84
      $region83: #{tpu_custom_call.1} parent=75 // pred_region
        %s516 = smul.u32 %s30, 2
        %s517 = sadd.s32 %s516, %s31
        %p518 = scmp.lt.s32.totalorder %s517, 7
        %s519 = scalar_select %p518, %s517, 7
        %s520 = scalar_lea.vmem %s1, %s519
        %s521 = smul.u32 %s30, 2
        %s522 = sadd.s32 %s521, %s31
      $region84: #{tpu_custom_call.1} parent=75 // pred_fallthru
        _
    $region76: #{tpu_custom_call.1} parent=5 // pred_fallthru
      _
    %p523 = scmp.le.s32.totalorder 1, %s23
    %p524 = scmp.lt.s32.totalorder %s23, 9
    %p525 = pnand %p523, %p524
    %p526 = pneg %p525
    // Predicated region
    $region85: #{tpu_custom_call.1} parent=5 // pred_check
      _
    $region86: #{tpu_custom_call.1} parent=5 // pred_check_branch
      %528 = sbr.rel (%p525) target = $region88
    $region87: #{tpu_custom_call.1} parent=5 // pred_region
      %s529 = ssub.s32 %s23, 1
      %s530 = smul.u32 %s32, 2
      %s531 = sadd.s32 %s530, %s33
      %s532 = smul.u32 16, %s531
      %p533 = scmp.lt.s32.totalorder %s532, 127
      %s534 = scalar_select %p533, %s532, 127
      %s535 = smul.addr %s534, 8
      %s536 = scalar_lea.vmem %s0, %s535
      %p537 = pneg %p65
      %p538 = pneg %p62
      %s539 = smul.u32 %s32, 2
      %s540 = sadd.s32 %s539, %s33
      %p541 = scmp.lt.s32.totalorder %s540, 7
      %s542 = scalar_select %p541, %s540, 7
      %s543 = scalar_lea.vmem %s1, %s542
      %p544 = pneg %p95
      %p545 = pneg %p92
      %p546 = pneg %p116
      %p547 = pneg %p113
      %p548 = pneg %p137
      %p549 = pneg %p134
      %p550 = pneg %p158
      %p551 = pneg %p155
      %p552 = pneg %p179
      %p553 = pneg %p176
      %p554 = pneg %p200
      %p555 = pneg %p197
      %p556 = pneg %p221
      %p557 = pneg %p218
      %p558 = pneg %p242
      %p559 = pneg %p239
      %p560 = pneg %p263
      %p561 = pneg %p260
      %p562 = pneg %p284
      %p563 = pneg %p281
      %p564 = pneg %p305
      %p565 = pneg %p302
      %p566 = pneg %p326
      %p567 = pneg %p323
      %p568 = pneg %p347
      %p569 = pneg %p344
      %p570 = pneg %p368
      %p571 = pneg %p365
      %p572 = pneg %p389
      %p573 = pneg %p386
      %p574 = pneg %p410
      %p575 = pneg %p407
      %p576 = pneg %p436
      %p577 = pneg %p433
      %p578 = scmp.lt.s32.totalorder %s32, 3
      %s579 = scalar_select %p578, %s32, 3
      %s580 = smul.addr %s579, 8
      %s581 = scalar_lea.vmem %s17, %s580
      %s582 = smul.u32 %s32, 2
      %s583 = sadd.s32 %s582, %s33
      %s584 = smul.u32 16, %s583
      %p585 = scmp.lt.s32.totalorder %s584, 127
      %s586 = scalar_select %p585, %s584, 127
      %s587 = smul.addr %s586, 8
      %s588 = scalar_lea.vmem %s0, %s587
      %s589 = smul.u32 %s32, 2
      %s590 = sadd.s32 %s589, %s33
      %s591 = smul.u32 16, %s590
      %s592 = smul.u32 %s32, 2
      %s593 = sadd.s32 %s592, %s33
      %p594 = scmp.lt.s32.totalorder %s593, 7
      %s595 = scalar_select %p594, %s593, 7
      %s596 = scalar_lea.vmem %s1, %s595
      %s597 = smul.u32 %s32, 2
      %s598 = sadd.s32 %s597, %s33
      %p599 = scmp.lt.s32.totalorder %s32, 3
      %s600 = scalar_select %p599, %s32, 3
      %s601 = smul.addr %s600, 8
      %s602 = scalar_lea.vmem %s17, %s601
      %p604 = scmp.eq.s32.totalorder %s33, 0
      // Predicated region
      $region89: #{tpu_custom_call.1} parent=87 // pred_check
        %p605 = pneg %p604
      $region90: #{tpu_custom_call.1} parent=87 // pred_check_branch
        %607 = sbr.rel (%p605) target = $region92
      $region91: #{tpu_custom_call.1} parent=87 // pred_region
        %608 = vst [vmem:[#allocation2] sm:$0xff] 0.0
      $region92: #{tpu_custom_call.1} parent=87 // pred_fallthru
        _
      %v609 = vld [vmem:[%s2] sm:$0xff]
      %v610 = vld [vmem:[%s2 + $0x8] sm:$0xff]
      %v611 = vld [vmem:[%s2 + $0x10] sm:$0xff]
      %v612 = vld [vmem:[%s2 + $0x18] sm:$0xff]
      %v613 = vpack.c.bf16 %v610, %v609
      %v614 = vpack.c.bf16 %v612, %v611
      %v615 = vunpack.c.l.bf16 %v613
      %v616 = vunpack.c.h.bf16 %v613
      %v617 = vunpack.c.l.bf16 %v614
      %v618 = vunpack.c.h.bf16 %v614
      %v619 = vsub.f32 %v609, %v615
      %v620 = vsub.f32 %v610, %v616
      %v621 = vsub.f32 %v611, %v617
      %v622 = vsub.f32 %v612, %v618
      %v623 = vpack.c.bf16 %v620, %v619
      %v624 = vpack.c.bf16 %v622, %v621
      %v625 = vld [vmem:[%s588] sm:$0xff]
      %v626 = vld [vmem:[%s588 + $0x8] sm:$0xff]
      %v627 = vld [vmem:[%s588 + $0x10] sm:$0xff]
      %v628 = vld [vmem:[%s588 + $0x18] sm:$0xff]
      %v629 = vld [vmem:[%s588 + $0x20] sm:$0xff]
      %v630 = vld [vmem:[%s588 + $0x28] sm:$0xff]
      %v631 = vld [vmem:[%s588 + $0x30] sm:$0xff]
      %v632 = vld [vmem:[%s588 + $0x38] sm:$0xff]
      %v633 = vld [vmem:[%s588 + $0x40] sm:$0xff]
      %v634 = vld [vmem:[%s588 + $0x48] sm:$0xff]
      %v635 = vld [vmem:[%s588 + $0x50] sm:$0xff]
      %v636 = vld [vmem:[%s588 + $0x58] sm:$0xff]
      %v637 = vld [vmem:[%s588 + $0x60] sm:$0xff]
      %v638 = vld [vmem:[%s588 + $0x68] sm:$0xff]
      %v639 = vld [vmem:[%s588 + $0x70] sm:$0xff]
      %v640 = vld [vmem:[%s588 + $0x78] sm:$0xff]
      %641 = vrot.lane.b32.xlu0 %v625, 127
      %v642 = vpop.permute.xlu0 %641
      %643 = vrot.lane.b32.xlu0 %v626, 127
      %v644 = vpop.permute.xlu0 %643
      %645 = vrot.lane.b32.xlu0 %v627, 127
      %v646 = vpop.permute.xlu0 %645
      %647 = vrot.lane.b32.xlu0 %v628, 127
      %v648 = vpop.permute.xlu0 %647
      %649 = vrot.lane.b32.xlu0 %v629, 127
      %v650 = vpop.permute.xlu0 %649
      %651 = vrot.lane.b32.xlu0 %v630, 127
      %v652 = vpop.permute.xlu0 %651
      %653 = vrot.lane.b32.xlu0 %v631, 127
      %v654 = vpop.permute.xlu0 %653
      %655 = vrot.lane.b32.xlu0 %v632, 127
      %v656 = vpop.permute.xlu0 %655
      %657 = vrot.lane.b32.xlu0 %v633, 127
      %v658 = vpop.permute.xlu0 %657
      %659 = vrot.lane.b32.xlu0 %v634, 127
      %v660 = vpop.permute.xlu0 %659
      %661 = vrot.lane.b32.xlu0 %v635, 127
      %v662 = vpop.permute.xlu0 %661
      %663 = vrot.lane.b32.xlu0 %v636, 127
      %v664 = vpop.permute.xlu0 %663
      %665 = vrot.lane.b32.xlu0 %v637, 127
      %v666 = vpop.permute.xlu0 %665
      %667 = vrot.lane.b32.xlu0 %v638, 127
      %v668 = vpop.permute.xlu0 %667
      %669 = vrot.lane.b32.xlu0 %v639, 127
      %v670 = vpop.permute.xlu0 %669
      %671 = vrot.lane.b32.xlu0 %v640, 127
      %v672 = vpop.permute.xlu0 %671
      %v673 = vlaneseq
      %v674 = vand.u32 %v673, 127
      %675 = vset.pattern.permute.xlu0 0
      %676 = vperm.xlu0 %675, %v625
      %v677 = vpop.permute.xlu0 %676
      %678 = vset.pattern.permute.xlu0 0
      %679 = vperm.xlu0 %678, %v626
      %v680 = vpop.permute.xlu0 %679
      %681 = vset.pattern.permute.xlu0 0
      %682 = vperm.xlu0 %681, %v627
      %v683 = vpop.permute.xlu0 %682
      %684 = vset.pattern.permute.xlu0 0
      %685 = vperm.xlu0 %684, %v628
      %v686 = vpop.permute.xlu0 %685
      %687 = vset.pattern.permute.xlu0 0
      %688 = vperm.xlu0 %687, %v629
      %v689 = vpop.permute.xlu0 %688
      %690 = vset.pattern.permute.xlu0 0
      %691 = vperm.xlu0 %690, %v630
      %v692 = vpop.permute.xlu0 %691
      %693 = vset.pattern.permute.xlu0 0
      %694 = vperm.xlu0 %693, %v631
      %v695 = vpop.permute.xlu0 %694
      %696 = vset.pattern.permute.xlu0 0
      %697 = vperm.xlu0 %696, %v632
      %v698 = vpop.permute.xlu0 %697
      %699 = vset.pattern.permute.xlu0 0
      %700 = vperm.xlu0 %699, %v633
      %v701 = vpop.permute.xlu0 %700
      %702 = vset.pattern.permute.xlu0 0
      %703 = vperm.xlu0 %702, %v634
      %v704 = vpop.permute.xlu0 %703
      %705 = vset.pattern.permute.xlu0 0
      %706 = vperm.xlu0 %705, %v635
      %v707 = vpop.permute.xlu0 %706
      %708 = vset.pattern.permute.xlu0 0
      %709 = vperm.xlu0 %708, %v636
      %v710 = vpop.permute.xlu0 %709
      %711 = vset.pattern.permute.xlu0 0
      %712 = vperm.xlu0 %711, %v637
      %v713 = vpop.permute.xlu0 %712
      %714 = vset.pattern.permute.xlu0 0
      %715 = vperm.xlu0 %714, %v638
      %v716 = vpop.permute.xlu0 %715
      %717 = vset.pattern.permute.xlu0 0
      %718 = vperm.xlu0 %717, %v639
      %v719 = vpop.permute.xlu0 %718
      %720 = vset.pattern.permute.xlu0 0
      %721 = vperm.xlu0 %720, %v640
      %v722 = vpop.permute.xlu0 %721
      %723 = vset.pattern.permute.xlu0 0
      %724 = vperm.xlu0 %723, %v642
      %v725 = vpop.permute.xlu0 %724
      %726 = vset.pattern.permute.xlu0 0
      %727 = vperm.xlu0 %726, %v644
      %v728 = vpop.permute.xlu0 %727
      %729 = vset.pattern.permute.xlu0 0
      %730 = vperm.xlu0 %729, %v646
      %v731 = vpop.permute.xlu0 %730
      %732 = vset.pattern.permute.xlu0 0
      %733 = vperm.xlu0 %732, %v648
      %v734 = vpop.permute.xlu0 %733
      %735 = vset.pattern.permute.xlu0 0
      %736 = vperm.xlu0 %735, %v650
      %v737 = vpop.permute.xlu0 %736
      %738 = vset.pattern.permute.xlu0 0
      %739 = vperm.xlu0 %738, %v652
      %v740 = vpop.permute.xlu0 %739
      %741 = vset.pattern.permute.xlu0 0
      %742 = vperm.xlu0 %741, %v654
      %v743 = vpop.permute.xlu0 %742
      %744 = vset.pattern.permute.xlu0 0
      %745 = vperm.xlu0 %744, %v656
      %v746 = vpop.permute.xlu0 %745
      %747 = vset.pattern.permute.xlu0 0
      %748 = vperm.xlu0 %747, %v658
      %v749 = vpop.permute.xlu0 %748
      %750 = vset.pattern.permute.xlu0 0
      %751 = vperm.xlu0 %750, %v660
      %v752 = vpop.permute.xlu0 %751
      %753 = vset.pattern.permute.xlu0 0
      %754 = vperm.xlu0 %753, %v662
      %v755 = vpop.permute.xlu0 %754
      %756 = vset.pattern.permute.xlu0 0
      %757 = vperm.xlu0 %756, %v664
      %v758 = vpop.permute.xlu0 %757
      %759 = vset.pattern.permute.xlu0 0
      %760 = vperm.xlu0 %759, %v666
      %v761 = vpop.permute.xlu0 %760
      %762 = vset.pattern.permute.xlu0 0
      %763 = vperm.xlu0 %762, %v668
      %v764 = vpop.permute.xlu0 %763
      %765 = vset.pattern.permute.xlu0 0
      %766 = vperm.xlu0 %765, %v670
      %v767 = vpop.permute.xlu0 %766
      %768 = vset.pattern.permute.xlu0 0
      %769 = vperm.xlu0 %768, %v672
      %v770 = vpop.permute.xlu0 %769
      %vm771 = vcmp.eq.s32.totalorder %v674, %v677
      %vm772 = vcmp.eq.s32.totalorder %v674, %v680
      %vm773 = vcmp.eq.s32.totalorder %v674, %v683
      %vm774 = vcmp.eq.s32.totalorder %v674, %v686
      %vm775 = vcmp.eq.s32.totalorder %v674, %v689
      %vm776 = vcmp.eq.s32.totalorder %v674, %v692
      %vm777 = vcmp.eq.s32.totalorder %v674, %v695
      %vm778 = vcmp.eq.s32.totalorder %v674, %v698
      %vm779 = vcmp.eq.s32.totalorder %v674, %v701
      %vm780 = vcmp.eq.s32.totalorder %v674, %v704
      %vm781 = vcmp.eq.s32.totalorder %v674, %v707
      %vm782 = vcmp.eq.s32.totalorder %v674, %v710
      %vm783 = vcmp.eq.s32.totalorder %v674, %v713
      %vm784 = vcmp.eq.s32.totalorder %v674, %v716
      %vm785 = vcmp.eq.s32.totalorder %v674, %v719
      %vm786 = vcmp.eq.s32.totalorder %v674, %v722
      %vm787 = vcmp.eq.s32.totalorder %v674, %v725
      %vm788 = vcmp.eq.s32.totalorder %v674, %v728
      %vm789 = vcmp.eq.s32.totalorder %v674, %v731
      %vm790 = vcmp.eq.s32.totalorder %v674, %v734
      %vm791 = vcmp.eq.s32.totalorder %v674, %v737
      %vm792 = vcmp.eq.s32.totalorder %v674, %v740
      %vm793 = vcmp.eq.s32.totalorder %v674, %v743
      %vm794 = vcmp.eq.s32.totalorder %v674, %v746
      %vm795 = vcmp.eq.s32.totalorder %v674, %v749
      %vm796 = vcmp.eq.s32.totalorder %v674, %v752
      %vm797 = vcmp.eq.s32.totalorder %v674, %v755
      %vm798 = vcmp.eq.s32.totalorder %v674, %v758
      %vm799 = vcmp.eq.s32.totalorder %v674, %v761
      %vm800 = vcmp.eq.s32.totalorder %v674, %v764
      %vm801 = vcmp.eq.s32.totalorder %v674, %v767
      %vm802 = vcmp.eq.s32.totalorder %v674, %v770
      %v803 = vsel %vm771, 1, 0
      %v804 = vsel %vm772, 1, 0
      %v805 = vsel %vm773, 1, 0
      %v806 = vsel %vm774, 1, 0
      %v807 = vsel %vm775, 1, 0
      %v808 = vsel %vm776, 1, 0
      %v809 = vsel %vm777, 1, 0
      %v810 = vsel %vm778, 1, 0
      %v811 = vsel %vm779, 1, 0
      %v812 = vsel %vm780, 1, 0
      %v813 = vsel %vm781, 1, 0
      %v814 = vsel %vm782, 1, 0
      %v815 = vsel %vm783, 1, 0
      %v816 = vsel %vm784, 1, 0
      %v817 = vsel %vm785, 1, 0
      %v818 = vsel %vm786, 1, 0
      %v819 = vsel %vm787, 1, 0
      %v820 = vsel %vm788, 1, 0
      %v821 = vsel %vm789, 1, 0
      %v822 = vsel %vm790, 1, 0
      %v823 = vsel %vm791, 1, 0
      %v824 = vsel %vm792, 1, 0
      %v825 = vsel %vm793, 1, 0
      %v826 = vsel %vm794, 1, 0
      %v827 = vsel %vm795, 1, 0
      %v828 = vsel %vm796, 1, 0
      %v829 = vsel %vm797, 1, 0
      %v830 = vsel %vm798, 1, 0
      %v831 = vsel %vm799, 1, 0
      %v832 = vsel %vm800, 1, 0
      %v833 = vsel %vm801, 1, 0
      %v834 = vsel %vm802, 1, 0
      %v835 = vcvt.s32.f32 %v803
      %v836 = vcvt.s32.f32 %v804
      %v837 = vcvt.s32.f32 %v805
      %v838 = vcvt.s32.f32 %v806
      %v839 = vcvt.s32.f32 %v807
      %v840 = vcvt.s32.f32 %v808
      %v841 = vcvt.s32.f32 %v809
      %v842 = vcvt.s32.f32 %v810
      %v843 = vcvt.s32.f32 %v811
      %v844 = vcvt.s32.f32 %v812
      %v845 = vcvt.s32.f32 %v813
      %v846 = vcvt.s32.f32 %v814
      %v847 = vcvt.s32.f32 %v815
      %v848 = vcvt.s32.f32 %v816
      %v849 = vcvt.s32.f32 %v817
      %v850 = vcvt.s32.f32 %v818
      %v851 = vcvt.s32.f32 %v819
      %v852 = vcvt.s32.f32 %v820
      %v853 = vcvt.s32.f32 %v821
      %v854 = vcvt.s32.f32 %v822
      %v855 = vcvt.s32.f32 %v823
      %v856 = vcvt.s32.f32 %v824
      %v857 = vcvt.s32.f32 %v825
      %v858 = vcvt.s32.f32 %v826
      %v859 = vcvt.s32.f32 %v827
      %v860 = vcvt.s32.f32 %v828
      %v861 = vcvt.s32.f32 %v829
      %v862 = vcvt.s32.f32 %v830
      %v863 = vcvt.s32.f32 %v831
      %v864 = vcvt.s32.f32 %v832
      %v865 = vcvt.s32.f32 %v833
      %v866 = vcvt.s32.f32 %v834
      %v867 = vpack.c.bf16 %v836, %v835
      %v868 = vpack.c.bf16 %v838, %v837
      %v869 = vpack.c.bf16 %v840, %v839
      %v870 = vpack.c.bf16 %v842, %v841
      %v871 = vpack.c.bf16 %v844, %v843
      %v872 = vpack.c.bf16 %v846, %v845
      %v873 = vpack.c.bf16 %v848, %v847
      %v874 = vpack.c.bf16 %v850, %v849
      %v875 = vpack.c.bf16 %v852, %v851
      %v876 = vpack.c.bf16 %v854, %v853
      %v877 = vpack.c.bf16 %v856, %v855
      %v878 = vpack.c.bf16 %v858, %v857
      %v879 = vpack.c.bf16 %v860, %v859
      %v880 = vpack.c.bf16 %v862, %v861
      %v881 = vpack.c.bf16 %v864, %v863
      %v882 = vpack.c.bf16 %v866, %v865
      %vm883 = vcmask 261120
      %v885 = vsel %vm883, %v867, 0
      %v888 = vsel %vm883, %v868, 0
      %v891 = vsel %vm883, %v869, 0
      %v894 = vsel %vm883, %v870, 0
      %v897 = vsel %vm883, %v871, 0
      %v900 = vsel %vm883, %v872, 0
      %v903 = vsel %vm883, %v873, 0
      %v906 = vsel %vm883, %v874, 0
      %v909 = vsel %vm883, %v875, 0
      %v912 = vsel %vm883, %v876, 0
      %v915 = vsel %vm883, %v877, 0
      %v918 = vsel %vm883, %v878, 0
      %v921 = vsel %vm883, %v879, 0
      %v924 = vsel %vm883, %v880, 0
      %v927 = vsel %vm883, %v881, 0
      %v930 = vsel %vm883, %v882, 0
      %932 = vmatprep.subr.bf16.mxu0 0
      %933 = vmatpush1.bf16.msra.mxu0 %v623
      %934 = vmatprep.subr.bf16.mxu0 0
      %935 = vmatpush1.bf16.msra.mxu0 %v624
      %936 = vmatprep.subr.bf16.mxu0 0
      %937 = vmatpush1.bf16.msra.mxu0 0
      %938 = vmatprep.subr.bf16.mxu0 0
      %939 = vmatpush1.bf16.msra.mxu0 0
      %940 = vmatprep.subr.bf16.mxu0 0
      %941 = vmatpush1.bf16.msra.mxu0 0
      %942 = vmatprep.subr.bf16.mxu0 0
      %943 = vmatpush1.bf16.msra.mxu0 0
      %944 = vmatprep.subr.bf16.mxu0 0
      %945 = vmatpush1.bf16.msra.mxu0 0
      %946 = vmatprep.subr.bf16.mxu0 0
      %947 = vmatpush1.bf16.msra.mxu0 0
      %948 = vmatprep.subr.bf16.mxu0 0
      %949 = vmatpush1.bf16.msra.mxu0 0
      %950 = vmatprep.subr.bf16.mxu0 0
      %951 = vmatpush1.bf16.msra.mxu0 0
      %952 = vmatprep.subr.bf16.mxu0 0
      %953 = vmatpush1.bf16.msra.mxu0 0
      %954 = vmatprep.subr.bf16.mxu0 0
      %955 = vmatpush1.bf16.msra.mxu0 0
      %956 = vmatprep.subr.bf16.mxu0 0
      %957 = vmatpush1.bf16.msra.mxu0 0
      %958 = vmatprep.subr.bf16.mxu0 0
      %959 = vmatpush1.bf16.msra.mxu0 0
      %960 = vmatprep.subr.bf16.mxu0 0
      %961 = vmatpush1.bf16.msra.mxu0 0
      %962 = vmatprep.subr.bf16.mxu0 0
      %963 = vmatpush1.bf16.msra.mxu0 0
      %964 = vmatprep.mubr.bf16.mxu0 0
      %965 = vmatmul.mubr.bf16.gmra.mrb[0].mxu0 %v885
      %v966 = vpop.f32.mrb[0].mxu0
      %v967 = vadd.f32 0.0, %v966
      %v968 = vpop.f32.mrb[0].mxu0
      %v969 = vpop.f32.mrb[0].mxu0
      %v970 = vadd.f32 0.0, %v969
      %v971 = vpop.f32.mrb[0].mxu0
      %972 = vmatprep.mubr.bf16.mxu0 0
      %973 = vmatmul.mubr.bf16.gmra.mrb[0].mxu0 %v888
      %v974 = vpop.f32.mrb[0].mxu0
      %v975 = vadd.f32 0.0, %v974
      %v976 = vpop.f32.mrb[0].mxu0
      %v977 = vpop.f32.mrb[0].mxu0
      %v978 = vadd.f32 0.0, %v977
      %v979 = vpop.f32.mrb[0].mxu0
      %980 = vmatprep.mubr.bf16.mxu0 0
      %981 = vmatmul.mubr.bf16.gmra.mrb[0].mxu0 %v891
      %v982 = vpop.f32.mrb[0].mxu0
      %v983 = vadd.f32 0.0, %v982
      %v984 = vpop.f32.mrb[0].mxu0
      %v985 = vpop.f32.mrb[0].mxu0
      %v986 = vadd.f32 0.0, %v985
      %v987 = vpop.f32.mrb[0].mxu0
      %988 = vmatprep.mubr.bf16.mxu0 0
      %989 = vmatmul.mubr.bf16.gmra.mrb[0].mxu0 %v894
      %v990 = vpop.f32.mrb[0].mxu0
      %v991 = vadd.f32 0.0, %v990
      %v992 = vpop.f32.mrb[0].mxu0
      %v993 = vpop.f32.mrb[0].mxu0
      %v994 = vadd.f32 0.0, %v993
      %v995 = vpop.f32.mrb[0].mxu0
      %996 = vmatprep.mubr.bf16.mxu0 0
      %997 = vmatmul.mubr.bf16.gmra.mrb[0].mxu0 %v897
      %v998 = vpop.f32.mrb[0].mxu0
      %v999 = vadd.f32 0.0, %v998
      %v1000 = vpop.f32.mrb[0].mxu0
      %v1001 = vpop.f32.mrb[0].mxu0
      %v1002 = vadd.f32 0.0, %v1001
      %v1003 = vpop.f32.mrb[0].mxu0
      %1004 = vmatprep.mubr.bf16.mxu0 0
      %1005 = vmatmul.mubr.bf16.gmra.mrb[0].mxu0 %v900
      %v1006 = vpop.f32.mrb[0].mxu0
      %v1007 = vadd.f32 0.0, %v1006
      %v1008 = vpop.f32.mrb[0].mxu0
      %v1009 = vpop.f32.mrb[0].mxu0
      %v1010 = vadd.f32 0.0, %v1009
      %v1011 = vpop.f32.mrb[0].mxu0
      %1012 = vmatprep.mubr.bf16.mxu0 0
      %1013 = vmatmul.mubr.bf16.gmra.mrb[0].mxu0 %v903
      %v1014 = vpop.f32.mrb[0].mxu0
      %v1015 = vadd.f32 0.0, %v1014
      %v1016 = vpop.f32.mrb[0].mxu0
      %v1017 = vpop.f32.mrb[0].mxu0
      %v1018 = vadd.f32 0.0, %v1017
      %v1019 = vpop.f32.mrb[0].mxu0
      %1020 = vmatprep.mubr.bf16.mxu0 0
      %1021 = vmatmul.mubr.bf16.gmra.mrb[0].mxu0 %v906
      %v1022 = vpop.f32.mrb[0].mxu0
      %v1023 = vadd.f32 0.0, %v1022
      %v1024 = vpop.f32.mrb[0].mxu0
      %v1025 = vpop.f32.mrb[0].mxu0
      %v1026 = vadd.f32 0.0, %v1025
      %v1027 = vpop.f32.mrb[0].mxu0
      %1028 = vmatprep.mubr.bf16.mxu0 0
      %1029 = vmatmul.mubr.bf16.gmra.mrb[0].mxu0 %v909
      %v1030 = vpop.f32.mrb[0].mxu0
      %v1031 = vadd.f32 0.0, %v1030
      %v1032 = vpop.f32.mrb[0].mxu0
      %v1033 = vpop.f32.mrb[0].mxu0
      %v1034 = vadd.f32 0.0, %v1033
      %v1035 = vpop.f32.mrb[0].mxu0
      %1036 = vmatprep.mubr.bf16.mxu0 0
      %1037 = vmatmul.mubr.bf16.gmra.mrb[0].mxu0 %v912
      %v1038 = vpop.f32.mrb[0].mxu0
      %v1039 = vadd.f32 0.0, %v1038
      %v1040 = vpop.f32.mrb[0].mxu0
      %v1041 = vpop.f32.mrb[0].mxu0
      %v1042 = vadd.f32 0.0, %v1041
      %v1043 = vpop.f32.mrb[0].mxu0
      %1044 = vmatprep.mubr.bf16.mxu0 0
      %1045 = vmatmul.mubr.bf16.gmra.mrb[0].mxu0 %v915
      %v1046 = vpop.f32.mrb[0].mxu0
      %v1047 = vadd.f32 0.0, %v1046
      %v1048 = vpop.f32.mrb[0].mxu0
      %v1049 = vpop.f32.mrb[0].mxu0
      %v1050 = vadd.f32 0.0, %v1049
      %v1051 = vpop.f32.mrb[0].mxu0
      %1052 = vmatprep.mubr.bf16.mxu0 0
      %1053 = vmatmul.mubr.bf16.gmra.mrb[0].mxu0 %v918
      %v1054 = vpop.f32.mrb[0].mxu0
      %v1055 = vadd.f32 0.0, %v1054
      %v1056 = vpop.f32.mrb[0].mxu0
      %v1057 = vpop.f32.mrb[0].mxu0
      %v1058 = vadd.f32 0.0, %v1057
      %v1059 = vpop.f32.mrb[0].mxu0
      %1060 = vmatprep.mubr.bf16.mxu0 0
      %1061 = vmatmul.mubr.bf16.gmra.mrb[0].mxu0 %v921
      %v1062 = vpop.f32.mrb[0].mxu0
      %v1063 = vadd.f32 0.0, %v1062
      %v1064 = vpop.f32.mrb[0].mxu0
      %v1065 = vpop.f32.mrb[0].mxu0
      %v1066 = vadd.f32 0.0, %v1065
      %v1067 = vpop.f32.mrb[0].mxu0
      %1068 = vmatprep.mubr.bf16.mxu0 0
      %1069 = vmatmul.mubr.bf16.gmra.mrb[0].mxu0 %v924
      %v1070 = vpop.f32.mrb[0].mxu0
      %v1071 = vadd.f32 0.0, %v1070
      %v1072 = vpop.f32.mrb[0].mxu0
      %v1073 = vpop.f32.mrb[0].mxu0
      %v1074 = vadd.f32 0.0, %v1073
      %v1075 = vpop.f32.mrb[0].mxu0
      %1076 = vmatprep.mubr.bf16.mxu0 0
      %1077 = vmatmul.mubr.bf16.gmra.mrb[0].mxu0 %v927
      %v1078 = vpop.f32.mrb[0].mxu0
      %v1079 = vadd.f32 0.0, %v1078
      %v1080 = vpop.f32.mrb[0].mxu0
      %v1081 = vpop.f32.mrb[0].mxu0
      %v1082 = vadd.f32 0.0, %v1081
      %v1083 = vpop.f32.mrb[0].mxu0
      %1084 = vmatprep.mubr.bf16.mxu0 0
      %1085 = vmatmul.mubr.bf16.gmra.mrb[0].mxu0 %v930
      %v1086 = vpop.f32.mrb[0].mxu0
      %v1087 = vadd.f32 0.0, %v1086
      %v1088 = vpop.f32.mrb[0].mxu0
      %v1089 = vpop.f32.mrb[0].mxu0
      %v1090 = vadd.f32 0.0, %v1089
      %v1091 = vpop.f32.mrb[0].mxu0
      %1092 = vdwg.mxu0
      %1093 = vmatprep.subr.bf16.mxu0 0
      %1094 = vmatpush1.bf16.msra.mxu0 %v613
      %1095 = vmatprep.subr.bf16.mxu0 0
      %1096 = vmatpush1.bf16.msra.mxu0 %v614
      %1097 = vmatprep.subr.bf16.mxu0 0
      %1098 = vmatpush1.bf16.msra.mxu0 0
      %1099 = vmatprep.subr.bf16.mxu0 0
      %1100 = vmatpush1.bf16.msra.mxu0 0
      %1101 = vmatprep.subr.bf16.mxu0 0
      %1102 = vmatpush1.bf16.msra.mxu0 0
      %1103 = vmatprep.subr.bf16.mxu0 0
      %1104 = vmatpush1.bf16.msra.mxu0 0
      %1105 = vmatprep.subr.bf16.mxu0 0
      %1106 = vmatpush1.bf16.msra.mxu0 0
      %1107 = vmatprep.subr.bf16.mxu0 0
      %1108 = vmatpush1.bf16.msra.mxu0 0
      %1109 = vmatprep.subr.bf16.mxu0 0
      %1110 = vmatpush1.bf16.msra.mxu0 0
      %1111 = vmatprep.subr.bf16.mxu0 0
      %1112 = vmatpush1.bf16.msra.mxu0 0
      %1113 = vmatprep.subr.bf16.mxu0 0
      %1114 = vmatpush1.bf16.msra.mxu0 0
      %1115 = vmatprep.subr.bf16.mxu0 0
      %1116 = vmatpush1.bf16.msra.mxu0 0
      %1117 = vmatprep.subr.bf16.mxu0 0
      %1118 = vmatpush1.bf16.msra.mxu0 0
      %1119 = vmatprep.subr.bf16.mxu0 0
      %1120 = vmatpush1.bf16.msra.mxu0 0
      %1121 = vmatprep.subr.bf16.mxu0 0
      %1122 = vmatpush1.bf16.msra.mxu0 0
      %1123 = vmatprep.subr.bf16.mxu0 0
      %1124 = vmatpush1.bf16.msra.mxu0 0
      %1125 = vmatprep.mubr.bf16.mxu0 0
      %1126 = vmatmul.mubr.bf16.gmra.mrb[0].mxu0 %v885
      %v1127 = vpop.f32.mrb[0].mxu0
      %v1128 = vadd.f32 %v967, %v1127
      %v1129 = vpop.f32.mrb[0].mxu0
      %v1130 = vpop.f32.mrb[0].mxu0
      %v1131 = vadd.f32 %v970, %v1130
      %v1132 = vpop.f32.mrb[0].mxu0
      %1133 = vmatprep.mubr.bf16.mxu0 0
      %1134 = vmatmul.mubr.bf16.gmra.mrb[0].mxu0 %v888
      %v1135 = vpop.f32.mrb[0].mxu0
      %v1136 = vadd.f32 %v975, %v1135
      %v1137 = vpop.f32.mrb[0].mxu0
      %v1138 = vpop.f32.mrb[0].mxu0
      %v1139 = vadd.f32 %v978, %v1138
      %v1140 = vpop.f32.mrb[0].mxu0
      %1141 = vmatprep.mubr.bf16.mxu0 0
      %1142 = vmatmul.mubr.bf16.gmra.mrb[0].mxu0 %v891
      %v1143 = vpop.f32.mrb[0].mxu0
      %v1144 = vadd.f32 %v983, %v1143
      %v1145 = vpop.f32.mrb[0].mxu0
      %v1146 = vpop.f32.mrb[0].mxu0
      %v1147 = vadd.f32 %v986, %v1146
      %v1148 = vpop.f32.mrb[0].mxu0
      %1149 = vmatprep.mubr.bf16.mxu0 0
      %1150 = vmatmul.mubr.bf16.gmra.mrb[0].mxu0 %v894
      %v1151 = vpop.f32.mrb[0].mxu0
      %v1152 = vadd.f32 %v991, %v1151
      %v1153 = vpop.f32.mrb[0].mxu0
      %v1154 = vpop.f32.mrb[0].mxu0
      %v1155 = vadd.f32 %v994, %v1154
      %v1156 = vpop.f32.mrb[0].mxu0
      %1157 = vmatprep.mubr.bf16.mxu0 0
      %1158 = vmatmul.mubr.bf16.gmra.mrb[0].mxu0 %v897
      %v1159 = vpop.f32.mrb[0].mxu0
      %v1160 = vadd.f32 %v999, %v1159
      %v1161 = vpop.f32.mrb[0].mxu0
      %v1162 = vpop.f32.mrb[0].mxu0
      %v1163 = vadd.f32 %v1002, %v1162
      %v1164 = vpop.f32.mrb[0].mxu0
      %1165 = vmatprep.mubr.bf16.mxu0 0
      %1166 = vmatmul.mubr.bf16.gmra.mrb[0].mxu0 %v900
      %v1167 = vpop.f32.mrb[0].mxu0
      %v1168 = vadd.f32 %v1007, %v1167
      %v1169 = vpop.f32.mrb[0].mxu0
      %v1170 = vpop.f32.mrb[0].mxu0
      %v1171 = vadd.f32 %v1010, %v1170
      %v1172 = vpop.f32.mrb[0].mxu0
      %1173 = vmatprep.mubr.bf16.mxu0 0
      %1174 = vmatmul.mubr.bf16.gmra.mrb[0].mxu0 %v903
      %v1175 = vpop.f32.mrb[0].mxu0
      %v1176 = vadd.f32 %v1015, %v1175
      %v1177 = vpop.f32.mrb[0].mxu0
      %v1178 = vpop.f32.mrb[0].mxu0
      %v1179 = vadd.f32 %v1018, %v1178
      %v1180 = vpop.f32.mrb[0].mxu0
      %1181 = vmatprep.mubr.bf16.mxu0 0
      %1182 = vmatmul.mubr.bf16.gmra.mrb[0].mxu0 %v906
      %v1183 = vpop.f32.mrb[0].mxu0
      %v1184 = vadd.f32 %v1023, %v1183
      %v1185 = vpop.f32.mrb[0].mxu0
      %v1186 = vpop.f32.mrb[0].mxu0
      %v1187 = vadd.f32 %v1026, %v1186
      %v1188 = vpop.f32.mrb[0].mxu0
      %1189 = vmatprep.mubr.bf16.mxu0 0
      %1190 = vmatmul.mubr.bf16.gmra.mrb[0].mxu0 %v909
      %v1191 = vpop.f32.mrb[0].mxu0
      %v1192 = vadd.f32 %v1031, %v1191
      %v1193 = vpop.f32.mrb[0].mxu0
      %v1194 = vpop.f32.mrb[0].mxu0
      %v1195 = vadd.f32 %v1034, %v1194
      %v1196 = vpop.f32.mrb[0].mxu0
      %1197 = vmatprep.mubr.bf16.mxu0 0
      %1198 = vmatmul.mubr.bf16.gmra.mrb[0].mxu0 %v912
      %v1199 = vpop.f32.mrb[0].mxu0
      %v1200 = vadd.f32 %v1039, %v1199
      %v1201 = vpop.f32.mrb[0].mxu0
      %v1202 = vpop.f32.mrb[0].mxu0
      %v1203 = vadd.f32 %v1042, %v1202
      %v1204 = vpop.f32.mrb[0].mxu0
      %1205 = vmatprep.mubr.bf16.mxu0 0
      %1206 = vmatmul.mubr.bf16.gmra.mrb[0].mxu0 %v915
      %v1207 = vpop.f32.mrb[0].mxu0
      %v1208 = vadd.f32 %v1047, %v1207
      %v1209 = vpop.f32.mrb[0].mxu0
      %v1210 = vpop.f32.mrb[0].mxu0
      %v1211 = vadd.f32 %v1050, %v1210
      %v1212 = vpop.f32.mrb[0].mxu0
      %1213 = vmatprep.mubr.bf16.mxu0 0
      %1214 = vmatmul.mubr.bf16.gmra.mrb[0].mxu0 %v918
      %v1215 = vpop.f32.mrb[0].mxu0
      %v1216 = vadd.f32 %v1055, %v1215
      %v1217 = vpop.f32.mrb[0].mxu0
      %v1218 = vpop.f32.mrb[0].mxu0
      %v1219 = vadd.f32 %v1058, %v1218
      %v1220 = vpop.f32.mrb[0].mxu0
      %1221 = vmatprep.mubr.bf16.mxu0 0
      %1222 = vmatmul.mubr.bf16.gmra.mrb[0].mxu0 %v921
      %v1223 = vpop.f32.mrb[0].mxu0
      %v1224 = vadd.f32 %v1063, %v1223
      %v1225 = vpop.f32.mrb[0].mxu0
      %v1226 = vpop.f32.mrb[0].mxu0
      %v1227 = vadd.f32 %v1066, %v1226
      %v1228 = vpop.f32.mrb[0].mxu0
      %1229 = vmatprep.mubr.bf16.mxu0 0
      %1230 = vmatmul.mubr.bf16.gmra.mrb[0].mxu0 %v924
      %v1231 = vpop.f32.mrb[0].mxu0
      %v1232 = vadd.f32 %v1071, %v1231
      %v1233 = vpop.f32.mrb[0].mxu0
      %v1234 = vpop.f32.mrb[0].mxu0
      %v1235 = vadd.f32 %v1074, %v1234
      %v1236 = vpop.f32.mrb[0].mxu0
      %1237 = vmatprep.mubr.bf16.mxu0 0
      %1238 = vmatmul.mubr.bf16.gmra.mrb[0].mxu0 %v927
      %v1239 = vpop.f32.mrb[0].mxu0
      %v1240 = vadd.f32 %v1079, %v1239
      %v1241 = vpop.f32.mrb[0].mxu0
      %v1242 = vpop.f32.mrb[0].mxu0
      %v1243 = vadd.f32 %v1082, %v1242
      %v1244 = vpop.f32.mrb[0].mxu0
      %1245 = vmatprep.mubr.bf16.mxu0 0
      %1246 = vmatmul.mubr.bf16.gmra.mrb[0].mxu0 %v930
      %v1247 = vpop.f32.mrb[0].mxu0
      %v1248 = vadd.f32 %v1087, %v1247
      %v1249 = vpop.f32.mrb[0].mxu0
      %v1250 = vpop.f32.mrb[0].mxu0
      %v1251 = vadd.f32 %v1090, %v1250
      %v1252 = vpop.f32.mrb[0].mxu0
      %1253 = vdwg.mxu0
      %v1254 = vsub.f32 %v1128, %v1192
      %v1255 = vsub.f32 %v1131, %v1195
      %v1256 = vsub.f32 %v1136, %v1200
      %v1257 = vsub.f32 %v1139, %v1203
      %v1258 = vsub.f32 %v1144, %v1208
      %v1259 = vsub.f32 %v1147, %v1211
      %v1260 = vsub.f32 %v1152, %v1216
      %v1261 = vsub.f32 %v1155, %v1219
      %v1262 = vsub.f32 %v1160, %v1224
      %v1263 = vsub.f32 %v1163, %v1227
      %v1264 = vsub.f32 %v1168, %v1232
      %v1265 = vsub.f32 %v1171, %v1235
      %v1266 = vsub.f32 %v1176, %v1240
      %v1267 = vsub.f32 %v1179, %v1243
      %v1268 = vsub.f32 %v1184, %v1248
      %v1269 = vsub.f32 %v1187, %v1251
      %vm1270 = vcmp.ge.s32.totalorder %v674, 16
      %vm1271 = vcmp.lt.s32.totalorder %v674, 19
      %vm1272 = vmand %vm1270, %vm1271
      %v1273 = vsel %vm1272, 1, 0
      %v1274 = vcvt.s32.f32 %v1273
      %v1275 = vmul.f32 %v1254, %v1254
      %v1276 = vmul.f32 %v1255, %v1255
      %v1277 = vmul.f32 %v1256, %v1256
      %v1278 = vmul.f32 %v1257, %v1257
      %v1279 = vmul.f32 %v1258, %v1258
      %v1280 = vmul.f32 %v1259, %v1259
      %v1281 = vmul.f32 %v1260, %v1260
      %v1282 = vmul.f32 %v1261, %v1261
      %v1283 = vmul.f32 %v1262, %v1262
      %v1284 = vmul.f32 %v1263, %v1263
      %v1285 = vmul.f32 %v1264, %v1264
      %v1286 = vmul.f32 %v1265, %v1265
      %v1287 = vmul.f32 %v1266, %v1266
      %v1288 = vmul.f32 %v1267, %v1267
      %v1289 = vmul.f32 %v1268, %v1268
      %v1290 = vmul.f32 %v1269, %v1269
      %v1291 = vmul.f32 %v1275, %v1274
      %v1292 = vmul.f32 %v1276, %v1274
      %v1293 = vmul.f32 %v1277, %v1274
      %v1294 = vmul.f32 %v1278, %v1274
      %v1295 = vmul.f32 %v1279, %v1274
      %v1296 = vmul.f32 %v1280, %v1274
      %v1297 = vmul.f32 %v1281, %v1274
      %v1298 = vmul.f32 %v1282, %v1274
      %v1299 = vmul.f32 %v1283, %v1274
      %v1300 = vmul.f32 %v1284, %v1274
      %v1301 = vmul.f32 %v1285, %v1274
      %v1302 = vmul.f32 %v1286, %v1274
      %v1303 = vmul.f32 %v1287, %v1274
      %v1304 = vmul.f32 %v1288, %v1274
      %v1305 = vmul.f32 %v1289, %v1274
      %v1306 = vmul.f32 %v1290, %v1274
      %vm1307 = vcmask 162816
      %v1308 = vsel %vm1307, %v1291, 0.0
      %1309 = vadd.xlane.f32.xlu0 %v1308
      %v1310 = vpop.xlane.xlu0 %1309
      %v1311 = vsel %vm1307, %v1292, 0.0
      %1312 = vadd.xlane.f32.xlu0 %v1311
      %v1313 = vpop.xlane.xlu0 %1312
      %v1314 = vsel %vm1307, %v1293, 0.0
      %1315 = vadd.xlane.f32.xlu0 %v1314
      %v1316 = vpop.xlane.xlu0 %1315
      %v1317 = vsel %vm1307, %v1294, 0.0
      %1318 = vadd.xlane.f32.xlu0 %v1317
      %v1319 = vpop.xlane.xlu0 %1318
      %v1320 = vsel %vm1307, %v1295, 0.0
      %1321 = vadd.xlane.f32.xlu0 %v1320
      %v1322 = vpop.xlane.xlu0 %1321
      %v1323 = vsel %vm1307, %v1296, 0.0
      %1324 = vadd.xlane.f32.xlu0 %v1323
      %v1325 = vpop.xlane.xlu0 %1324
      %v1326 = vsel %vm1307, %v1297, 0.0
      %1327 = vadd.xlane.f32.xlu0 %v1326
      %v1328 = vpop.xlane.xlu0 %1327
      %v1329 = vsel %vm1307, %v1298, 0.0
      %1330 = vadd.xlane.f32.xlu0 %v1329
      %v1331 = vpop.xlane.xlu0 %1330
      %v1332 = vsel %vm1307, %v1299, 0.0
      %1333 = vadd.xlane.f32.xlu0 %v1332
      %v1334 = vpop.xlane.xlu0 %1333
      %v1335 = vsel %vm1307, %v1300, 0.0
      %1336 = vadd.xlane.f32.xlu0 %v1335
      %v1337 = vpop.xlane.xlu0 %1336
      %v1338 = vsel %vm1307, %v1301, 0.0
      %1339 = vadd.xlane.f32.xlu0 %v1338
      %v1340 = vpop.xlane.xlu0 %1339
      %v1341 = vsel %vm1307, %v1302, 0.0
      %1342 = vadd.xlane.f32.xlu0 %v1341
      %v1343 = vpop.xlane.xlu0 %1342
      %v1344 = vsel %vm1307, %v1303, 0.0
      %1345 = vadd.xlane.f32.xlu0 %v1344
      %v1346 = vpop.xlane.xlu0 %1345
      %v1347 = vsel %vm1307, %v1304, 0.0
      %1348 = vadd.xlane.f32.xlu0 %v1347
      %v1349 = vpop.xlane.xlu0 %1348
      %v1350 = vsel %vm1307, %v1305, 0.0
      %1351 = vadd.xlane.f32.xlu0 %v1350
      %v1352 = vpop.xlane.xlu0 %1351
      %v1353 = vsel %vm1307, %v1306, 0.0
      %1354 = vadd.xlane.f32.xlu0 %v1353
      %v1355 = vpop.xlane.xlu0 %1354
      %v1356 = vld [vmem:[%s3] sm:$0xff]
      %v1357 = vld [vmem:[%s3 + $0x8] sm:$0xff]
      %v1358 = vld [vmem:[%s3 + $0x10] sm:$0xf]
      %v1359 = vld [vmem:[%s4] sm:$0xff]
      %v1360 = vld [vmem:[%s4 + $0x8] sm:$0xff]
      %v1361 = vld [vmem:[%s4 + $0x10] sm:$0xf]
      %v1363 = vsel %vm1307, %v1192, 0
      %v1366 = vsel %vm1307, %v1195, 0
      %v1369 = vsel %vm1307, %v1200, 0
      %v1372 = vsel %vm1307, %v1203, 0
      %v1375 = vsel %vm1307, %v1208, 0
      %v1378 = vsel %vm1307, %v1211, 0
      %v1381 = vsel %vm1307, %v1216, 0
      %v1384 = vsel %vm1307, %v1219, 0
      %v1387 = vsel %vm1307, %v1224, 0
      %v1390 = vsel %vm1307, %v1227, 0
      %v1393 = vsel %vm1307, %v1232, 0
      %v1396 = vsel %vm1307, %v1235, 0
      %v1399 = vsel %vm1307, %v1240, 0
      %v1402 = vsel %vm1307, %v1243, 0
      %v1405 = vsel %vm1307, %v1248, 0
      %v1408 = vsel %vm1307, %v1251, 0
      %vm1410 = vcmask 1043456
      %v1412 = vsel %vm1410, %v1361, 0
      %1414 = vmatprep.subr.mxu0 0.0
      %1415 = vmatpush1.msra.mxu0 %v1359
      %1416 = vmatprep.subr.mxu0 0.0
      %1417 = vmatpush1.msra.mxu0 %v1360
      %1418 = vmatprep.subr.mxu0 0.0
      %1419 = vmatpush1.msra.mxu0 %v1412
      %1420 = vmatprep.subr.mxu0 0.0
      %1421 = vmatpush1.msra.mxu0 0.0
      %1422 = vmatprep.subr.mxu0 0.0
      %1423 = vmatpush1.msra.mxu0 0.0
      %1424 = vmatprep.subr.mxu0 0.0
      %1425 = vmatpush1.msra.mxu0 0.0
      %1426 = vmatprep.subr.mxu0 0.0
      %1427 = vmatpush1.msra.mxu0 0.0
      %1428 = vmatprep.subr.mxu0 0.0
      %1429 = vmatpush1.msra.mxu0 0.0
      %1430 = vmatprep.subr.mxu0 0.0
      %1431 = vmatpush1.msra.mxu0 0.0
      %1432 = vmatprep.subr.mxu0 0.0
      %1433 = vmatpush1.msra.mxu0 0.0
      %1434 = vmatprep.subr.mxu0 0.0
      %1435 = vmatpush1.msra.mxu0 0.0
      %1436 = vmatprep.subr.mxu0 0.0
      %1437 = vmatpush1.msra.mxu0 0.0
      %1438 = vmatprep.subr.mxu0 0.0
      %1439 = vmatpush1.msra.mxu0 0.0
      %1440 = vmatprep.subr.mxu0 0.0
      %1441 = vmatpush1.msra.mxu0 0.0
      %1442 = vmatprep.subr.mxu0 0.0
      %1443 = vmatpush1.msra.mxu0 0.0
      %1444 = vmatprep.subr.mxu0 0.0
      %1445 = vmatpush1.msra.mxu0 0.0
      %1446 = vmatprep.subr.mxu0 0.0
      %1447 = vmatpush1.msra.mxu0 0.0
      %1448 = vmatprep.subr.mxu0 0.0
      %1449 = vmatpush1.msra.mxu0 0.0
      %1450 = vmatprep.subr.mxu0 0.0
      %1451 = vmatpush1.msra.mxu0 0.0
      %1452 = vmatprep.subr.mxu0 0.0
      %1453 = vmatpush1.msra.mxu0 0.0
      %1454 = vmatprep.subr.mxu0 0.0
      %1455 = vmatpush1.msra.mxu0 0.0
      %1456 = vmatprep.subr.mxu0 0.0
      %1457 = vmatpush1.msra.mxu0 0.0
      %1458 = vmatprep.subr.mxu0 0.0
      %1459 = vmatpush1.msra.mxu0 0.0
      %1460 = vmatprep.subr.mxu0 0.0
      %1461 = vmatpush1.msra.mxu0 0.0
      %1462 = vmatprep.subr.mxu0 0.0
      %1463 = vmatpush1.msra.mxu0 0.0
      %1464 = vmatprep.subr.mxu0 0.0
      %1465 = vmatpush1.msra.mxu0 0.0
      %1466 = vmatprep.subr.mxu0 0.0
      %1467 = vmatpush1.msra.mxu0 0.0
      %1468 = vmatprep.subr.mxu0 0.0
      %1469 = vmatpush1.msra.mxu0 0.0
      %1470 = vmatprep.subr.mxu0 0.0
      %1471 = vmatpush1.msra.mxu0 0.0
      %1472 = vmatprep.subr.mxu0 0.0
      %1473 = vmatpush1.msra.mxu0 0.0
      %1474 = vmatprep.subr.mxu0 0.0
      %1475 = vmatpush1.msra.mxu0 0.0
      %1476 = vmatprep.subr.mxu0 0.0
      %1477 = vmatpush1.msra.mxu0 0.0
      %1478 = vmatprep.mubr.f32.mxu0 0.0
      %1479 = vmatmul.mubr.f32.gmra.mrb[0].mxu0 %v1363
      %v1480 = vpop.f32.mrb[0].mxu0
      %v1481 = vadd.f32 0.0, %v1480
      %v1482 = vpop.f32.mrb[0].mxu0
      %1483 = vmatprep.mubr.f32.mxu0 0.0
      %1484 = vmatmul.mubr.f32.gmra.mrb[0].mxu0 %v1366
      %v1485 = vpop.f32.mrb[0].mxu0
      %v1486 = vadd.f32 0.0, %v1485
      %v1487 = vpop.f32.mrb[0].mxu0
      %1488 = vmatprep.mubr.f32.mxu0 0.0
      %1489 = vmatmul.mubr.f32.gmra.mrb[0].mxu0 %v1369
      %v1490 = vpop.f32.mrb[0].mxu0
      %v1491 = vadd.f32 0.0, %v1490
      %v1492 = vpop.f32.mrb[0].mxu0
      %1493 = vmatprep.mubr.f32.mxu0 0.0
      %1494 = vmatmul.mubr.f32.gmra.mrb[0].mxu0 %v1372
      %v1495 = vpop.f32.mrb[0].mxu0
      %v1496 = vadd.f32 0.0, %v1495
      %v1497 = vpop.f32.mrb[0].mxu0
      %1498 = vmatprep.mubr.f32.mxu0 0.0
      %1499 = vmatmul.mubr.f32.gmra.mrb[0].mxu0 %v1375
      %v1500 = vpop.f32.mrb[0].mxu0
      %v1501 = vadd.f32 0.0, %v1500
      %v1502 = vpop.f32.mrb[0].mxu0
      %1503 = vmatprep.mubr.f32.mxu0 0.0
      %1504 = vmatmul.mubr.f32.gmra.mrb[0].mxu0 %v1378
      %v1505 = vpop.f32.mrb[0].mxu0
      %v1506 = vadd.f32 0.0, %v1505
      %v1507 = vpop.f32.mrb[0].mxu0
      %1508 = vmatprep.mubr.f32.mxu0 0.0
      %1509 = vmatmul.mubr.f32.gmra.mrb[0].mxu0 %v1381
      %v1510 = vpop.f32.mrb[0].mxu0
      %v1511 = vadd.f32 0.0, %v1510
      %v1512 = vpop.f32.mrb[0].mxu0
      %1513 = vmatprep.mubr.f32.mxu0 0.0
      %1514 = vmatmul.mubr.f32.gmra.mrb[0].mxu0 %v1384
      %v1515 = vpop.f32.mrb[0].mxu0
      %v1516 = vadd.f32 0.0, %v1515
      %v1517 = vpop.f32.mrb[0].mxu0
      %1518 = vmatprep.mubr.f32.mxu0 0.0
      %1519 = vmatmul.mubr.f32.gmra.mrb[0].mxu0 %v1387
      %v1520 = vpop.f32.mrb[0].mxu0
      %v1521 = vadd.f32 0.0, %v1520
      %v1522 = vpop.f32.mrb[0].mxu0
      %1523 = vmatprep.mubr.f32.mxu0 0.0
      %1524 = vmatmul.mubr.f32.gmra.mrb[0].mxu0 %v1390
      %v1525 = vpop.f32.mrb[0].mxu0
      %v1526 = vadd.f32 0.0, %v1525
      %v1527 = vpop.f32.mrb[0].mxu0
      %1528 = vmatprep.mubr.f32.mxu0 0.0
      %1529 = vmatmul.mubr.f32.gmra.mrb[0].mxu0 %v1393
      %v1530 = vpop.f32.mrb[0].mxu0
      %v1531 = vadd.f32 0.0, %v1530
      %v1532 = vpop.f32.mrb[0].mxu0
      %1533 = vmatprep.mubr.f32.mxu0 0.0
      %1534 = vmatmul.mubr.f32.gmra.mrb[0].mxu0 %v1396
      %v1535 = vpop.f32.mrb[0].mxu0
      %v1536 = vadd.f32 0.0, %v1535
      %v1537 = vpop.f32.mrb[0].mxu0
      %1538 = vmatprep.mubr.f32.mxu0 0.0
      %1539 = vmatmul.mubr.f32.gmra.mrb[0].mxu0 %v1399
      %v1540 = vpop.f32.mrb[0].mxu0
      %v1541 = vadd.f32 0.0, %v1540
      %v1542 = vpop.f32.mrb[0].mxu0
      %1543 = vmatprep.mubr.f32.mxu0 0.0
      %1544 = vmatmul.mubr.f32.gmra.mrb[0].mxu0 %v1402
      %v1545 = vpop.f32.mrb[0].mxu0
      %v1546 = vadd.f32 0.0, %v1545
      %v1547 = vpop.f32.mrb[0].mxu0
      %1548 = vmatprep.mubr.f32.mxu0 0.0
      %1549 = vmatmul.mubr.f32.gmra.mrb[0].mxu0 %v1405
      %v1550 = vpop.f32.mrb[0].mxu0
      %v1551 = vadd.f32 0.0, %v1550
      %v1552 = vpop.f32.mrb[0].mxu0
      %1553 = vmatprep.mubr.f32.mxu0 0.0
      %1554 = vmatmul.mubr.f32.gmra.mrb[0].mxu0 %v1408
      %v1555 = vpop.f32.mrb[0].mxu0
      %v1556 = vadd.f32 0.0, %v1555
      %v1557 = vpop.f32.mrb[0].mxu0
      %1558 = vdwg.mxu0
      %v1560 = vsel %vm1307, %v1128, 0
      %v1563 = vsel %vm1307, %v1131, 0
      %v1566 = vsel %vm1307, %v1136, 0
      %v1569 = vsel %vm1307, %v1139, 0
      %v1572 = vsel %vm1307, %v1144, 0
      %v1575 = vsel %vm1307, %v1147, 0
      %v1578 = vsel %vm1307, %v1152, 0
      %v1581 = vsel %vm1307, %v1155, 0
      %v1584 = vsel %vm1307, %v1160, 0
      %v1587 = vsel %vm1307, %v1163, 0
      %v1590 = vsel %vm1307, %v1168, 0
      %v1593 = vsel %vm1307, %v1171, 0
      %v1596 = vsel %vm1307, %v1176, 0
      %v1599 = vsel %vm1307, %v1179, 0
      %v1602 = vsel %vm1307, %v1184, 0
      %v1605 = vsel %vm1307, %v1187, 0
      %v1608 = vsel %vm1410, %v1358, 0
      %1610 = vmatprep.subr.mxu0 0.0
      %1611 = vmatpush1.msra.mxu0 %v1356
      %1612 = vmatprep.subr.mxu0 0.0
      %1613 = vmatpush1.msra.mxu0 %v1357
      %1614 = vmatprep.subr.mxu0 0.0
      %1615 = vmatpush1.msra.mxu0 %v1608
      %1616 = vmatprep.subr.mxu0 0.0
      %1617 = vmatpush1.msra.mxu0 0.0
      %1618 = vmatprep.subr.mxu0 0.0
      %1619 = vmatpush1.msra.mxu0 0.0
      %1620 = vmatprep.subr.mxu0 0.0
      %1621 = vmatpush1.msra.mxu0 0.0
      %1622 = vmatprep.subr.mxu0 0.0
      %1623 = vmatpush1.msra.mxu0 0.0
      %1624 = vmatprep.subr.mxu0 0.0
      %1625 = vmatpush1.msra.mxu0 0.0
      %1626 = vmatprep.subr.mxu0 0.0
      %1627 = vmatpush1.msra.mxu0 0.0
      %1628 = vmatprep.subr.mxu0 0.0
      %1629 = vmatpush1.msra.mxu0 0.0
      %1630 = vmatprep.subr.mxu0 0.0
      %1631 = vmatpush1.msra.mxu0 0.0
      %1632 = vmatprep.subr.mxu0 0.0
      %1633 = vmatpush1.msra.mxu0 0.0
      %1634 = vmatprep.subr.mxu0 0.0
      %1635 = vmatpush1.msra.mxu0 0.0
      %1636 = vmatprep.subr.mxu0 0.0
      %1637 = vmatpush1.msra.mxu0 0.0
      %1638 = vmatprep.subr.mxu0 0.0
      %1639 = vmatpush1.msra.mxu0 0.0
      %1640 = vmatprep.subr.mxu0 0.0
      %1641 = vmatpush1.msra.mxu0 0.0
      %1642 = vmatprep.subr.mxu0 0.0
      %1643 = vmatpush1.msra.mxu0 0.0
      %1644 = vmatprep.subr.mxu0 0.0
      %1645 = vmatpush1.msra.mxu0 0.0
      %1646 = vmatprep.subr.mxu0 0.0
      %1647 = vmatpush1.msra.mxu0 0.0
      %1648 = vmatprep.subr.mxu0 0.0
      %1649 = vmatpush1.msra.mxu0 0.0
      %1650 = vmatprep.subr.mxu0 0.0
      %1651 = vmatpush1.msra.mxu0 0.0
      %1652 = vmatprep.subr.mxu0 0.0
      %1653 = vmatpush1.msra.mxu0 0.0
      %1654 = vmatprep.subr.mxu0 0.0
      %1655 = vmatpush1.msra.mxu0 0.0
      %1656 = vmatprep.subr.mxu0 0.0
      %1657 = vmatpush1.msra.mxu0 0.0
      %1658 = vmatprep.subr.mxu0 0.0
      %1659 = vmatpush1.msra.mxu0 0.0
      %1660 = vmatprep.subr.mxu0 0.0
      %1661 = vmatpush1.msra.mxu0 0.0
      %1662 = vmatprep.subr.mxu0 0.0
      %1663 = vmatpush1.msra.mxu0 0.0
      %1664 = vmatprep.subr.mxu0 0.0
      %1665 = vmatpush1.msra.mxu0 0.0
      %1666 = vmatprep.subr.mxu0 0.0
      %1667 = vmatpush1.msra.mxu0 0.0
      %1668 = vmatprep.subr.mxu0 0.0
      %1669 = vmatpush1.msra.mxu0 0.0
      %1670 = vmatprep.subr.mxu0 0.0
      %1671 = vmatpush1.msra.mxu0 0.0
      %1672 = vmatprep.subr.mxu0 0.0
      %1673 = vmatpush1.msra.mxu0 0.0
      %1674 = vmatprep.mubr.f32.mxu0 0.0
      %1675 = vmatmul.mubr.f32.gmra.mrb[0].mxu0 %v1560
      %v1676 = vpop.f32.mrb[0].mxu0
      %v1677 = vadd.f32 %v1481, %v1676
      %v1678 = vpop.f32.mrb[0].mxu0
      %1679 = vmatprep.mubr.f32.mxu0 0.0
      %1680 = vmatmul.mubr.f32.gmra.mrb[0].mxu0 %v1563
      %v1681 = vpop.f32.mrb[0].mxu0
      %v1682 = vadd.f32 %v1486, %v1681
      %v1683 = vpop.f32.mrb[0].mxu0
      %1684 = vmatprep.mubr.f32.mxu0 0.0
      %1685 = vmatmul.mubr.f32.gmra.mrb[0].mxu0 %v1566
      %v1686 = vpop.f32.mrb[0].mxu0
      %v1687 = vadd.f32 %v1491, %v1686
      %v1688 = vpop.f32.mrb[0].mxu0
      %1689 = vmatprep.mubr.f32.mxu0 0.0
      %1690 = vmatmul.mubr.f32.gmra.mrb[0].mxu0 %v1569
      %v1691 = vpop.f32.mrb[0].mxu0
      %v1692 = vadd.f32 %v1496, %v1691
      %v1693 = vpop.f32.mrb[0].mxu0
      %1694 = vmatprep.mubr.f32.mxu0 0.0
      %1695 = vmatmul.mubr.f32.gmra.mrb[0].mxu0 %v1572
      %v1696 = vpop.f32.mrb[0].mxu0
      %v1697 = vadd.f32 %v1501, %v1696
      %v1698 = vpop.f32.mrb[0].mxu0
      %1699 = vmatprep.mubr.f32.mxu0 0.0
      %1700 = vmatmul.mubr.f32.gmra.mrb[0].mxu0 %v1575
      %v1701 = vpop.f32.mrb[0].mxu0
      %v1702 = vadd.f32 %v1506, %v1701
      %v1703 = vpop.f32.mrb[0].mxu0
      %1704 = vmatprep.mubr.f32.mxu0 0.0
      %1705 = vmatmul.mubr.f32.gmra.mrb[0].mxu0 %v1578
      %v1706 = vpop.f32.mrb[0].mxu0
      %v1707 = vadd.f32 %v1511, %v1706
      %v1708 = vpop.f32.mrb[0].mxu0
      %1709 = vmatprep.mubr.f32.mxu0 0.0
      %1710 = vmatmul.mubr.f32.gmra.mrb[0].mxu0 %v1581
      %v1711 = vpop.f32.mrb[0].mxu0
      %v1712 = vadd.f32 %v1516, %v1711
      %v1713 = vpop.f32.mrb[0].mxu0
      %1714 = vmatprep.mubr.f32.mxu0 0.0
      %1715 = vmatmul.mubr.f32.gmra.mrb[0].mxu0 %v1584
      %v1716 = vpop.f32.mrb[0].mxu0
      %v1717 = vadd.f32 %v1521, %v1716
      %v1718 = vpop.f32.mrb[0].mxu0
      %1719 = vmatprep.mubr.f32.mxu0 0.0
      %1720 = vmatmul.mubr.f32.gmra.mrb[0].mxu0 %v1587
      %v1721 = vpop.f32.mrb[0].mxu0
      %v1722 = vadd.f32 %v1526, %v1721
      %v1723 = vpop.f32.mrb[0].mxu0
      %1724 = vmatprep.mubr.f32.mxu0 0.0
      %1725 = vmatmul.mubr.f32.gmra.mrb[0].mxu0 %v1590
      %v1726 = vpop.f32.mrb[0].mxu0
      %v1727 = vadd.f32 %v1531, %v1726
      %v1728 = vpop.f32.mrb[0].mxu0
      %1729 = vmatprep.mubr.f32.mxu0 0.0
      %1730 = vmatmul.mubr.f32.gmra.mrb[0].mxu0 %v1593
      %v1731 = vpop.f32.mrb[0].mxu0
      %v1732 = vadd.f32 %v1536, %v1731
      %v1733 = vpop.f32.mrb[0].mxu0
      %1734 = vmatprep.mubr.f32.mxu0 0.0
      %1735 = vmatmul.mubr.f32.gmra.mrb[0].mxu0 %v1596
      %v1736 = vpop.f32.mrb[0].mxu0
      %v1737 = vadd.f32 %v1541, %v1736
      %v1738 = vpop.f32.mrb[0].mxu0
      %1739 = vmatprep.mubr.f32.mxu0 0.0
      %1740 = vmatmul.mubr.f32.gmra.mrb[0].mxu0 %v1599
      %v1741 = vpop.f32.mrb[0].mxu0
      %v1742 = vadd.f32 %v1546, %v1741
      %v1743 = vpop.f32.mrb[0].mxu0
      %1744 = vmatprep.mubr.f32.mxu0 0.0
      %1745 = vmatmul.mubr.f32.gmra.mrb[0].mxu0 %v1602
      %v1746 = vpop.f32.mrb[0].mxu0
      %v1747 = vadd.f32 %v1551, %v1746
      %v1748 = vpop.f32.mrb[0].mxu0
      %1749 = vmatprep.mubr.f32.mxu0 0.0
      %1750 = vmatmul.mubr.f32.gmra.mrb[0].mxu0 %v1605
      %v1751 = vpop.f32.mrb[0].mxu0
      %v1752 = vadd.f32 %v1556, %v1751
      %v1753 = vpop.f32.mrb[0].mxu0
      %1754 = vdwg.mxu0
      %v1755 = vld [vmem:[%s5] sm:$0x1]
      %v1757 = vlaneseq
      %v1758 = vshrl.u32 %v1757, 7
      %v1759 = vsub.s32 0, %v1758
      %v1760 = vrot.slane %v1755, %v1759
      %v1762 = vmul.f32 %v1310, %v1760
      %v1763 = vmul.f32 %v1313, %v1760
      %v1764 = vmul.f32 %v1316, %v1760
      %v1765 = vmul.f32 %v1319, %v1760
      %v1766 = vmul.f32 %v1322, %v1760
      %v1767 = vmul.f32 %v1325, %v1760
      %v1768 = vmul.f32 %v1328, %v1760
      %v1769 = vmul.f32 %v1331, %v1760
      %v1770 = vmul.f32 %v1334, %v1760
      %v1771 = vmul.f32 %v1337, %v1760
      %v1772 = vmul.f32 %v1340, %v1760
      %v1773 = vmul.f32 %v1343, %v1760
      %v1774 = vmul.f32 %v1346, %v1760
      %v1775 = vmul.f32 %v1349, %v1760
      %v1776 = vmul.f32 %v1352, %v1760
      %v1777 = vmul.f32 %v1355, %v1760
      %v1778 = vadd.f32 %v1677, %v1762
      %v1779 = vadd.f32 %v1682, %v1763
      %v1780 = vadd.f32 %v1687, %v1764
      %v1781 = vadd.f32 %v1692, %v1765
      %v1782 = vadd.f32 %v1697, %v1766
      %v1783 = vadd.f32 %v1702, %v1767
      %v1784 = vadd.f32 %v1707, %v1768
      %v1785 = vadd.f32 %v1712, %v1769
      %v1786 = vadd.f32 %v1717, %v1770
      %v1787 = vadd.f32 %v1722, %v1771
      %v1788 = vadd.f32 %v1727, %v1772
      %v1789 = vadd.f32 %v1732, %v1773
      %v1790 = vadd.f32 %v1737, %v1774
      %v1791 = vadd.f32 %v1742, %v1775
      %v1792 = vadd.f32 %v1747, %v1776
      %v1793 = vadd.f32 %v1752, %v1777
      %v1794 = vld [vmem:[%s6] sm:$0x1]
      %v1796 = vlaneseq
      %v1797 = vshrl.u32 %v1796, 7
      %v1798 = vsub.s32 0, %v1797
      %v1799 = vrot.slane %v1794, %v1798
      %v1801 = vadd.f32 %v1778, %v1799
      %v1802 = vadd.f32 %v1779, %v1799
      %v1803 = vadd.f32 %v1780, %v1799
      %v1804 = vadd.f32 %v1781, %v1799
      %v1805 = vadd.f32 %v1782, %v1799
      %v1806 = vadd.f32 %v1783, %v1799
      %v1807 = vadd.f32 %v1784, %v1799
      %v1808 = vadd.f32 %v1785, %v1799
      %v1809 = vadd.f32 %v1786, %v1799
      %v1810 = vadd.f32 %v1787, %v1799
      %v1811 = vadd.f32 %v1788, %v1799
      %v1812 = vadd.f32 %v1789, %v1799
      %v1813 = vadd.f32 %v1790, %v1799
      %v1814 = vadd.f32 %v1791, %v1799
      %v1815 = vadd.f32 %v1792, %v1799
      %v1816 = vadd.f32 %v1793, %v1799
      %v1817 = vxor.u32 %v1801, 2147483648
      %v1818 = vxor.u32 %v1802, 2147483648
      %v1819 = vxor.u32 %v1803, 2147483648
      %v1820 = vxor.u32 %v1804, 2147483648
      %v1821 = vxor.u32 %v1805, 2147483648
      %v1822 = vxor.u32 %v1806, 2147483648
      %v1823 = vxor.u32 %v1807, 2147483648
      %v1824 = vxor.u32 %v1808, 2147483648
      %v1825 = vxor.u32 %v1809, 2147483648
      %v1826 = vxor.u32 %v1810, 2147483648
      %v1827 = vxor.u32 %v1811, 2147483648
      %v1828 = vxor.u32 %v1812, 2147483648
      %v1829 = vxor.u32 %v1813, 2147483648
      %v1830 = vxor.u32 %v1814, 2147483648
      %v1831 = vxor.u32 %v1815, 2147483648
      %v1832 = vxor.u32 %v1816, 2147483648
      %v1833 = vmul.f32 %v1817, 1.442695
      %v1834 = vpow.pop %v1833
      %v1835 = vmul.f32 %v1818, 1.442695
      %v1836 = vpow.pop %v1835
      %v1837 = vmul.f32 %v1819, 1.442695
      %v1838 = vpow.pop %v1837
      %v1839 = vmul.f32 %v1820, 1.442695
      %v1840 = vpow.pop %v1839
      %v1841 = vmul.f32 %v1821, 1.442695
      %v1842 = vpow.pop %v1841
      %v1843 = vmul.f32 %v1822, 1.442695
      %v1844 = vpow.pop %v1843
      %v1845 = vmul.f32 %v1823, 1.442695
      %v1846 = vpow.pop %v1845
      %v1847 = vmul.f32 %v1824, 1.442695
      %v1848 = vpow.pop %v1847
      %v1849 = vmul.f32 %v1825, 1.442695
      %v1850 = vpow.pop %v1849
      %v1851 = vmul.f32 %v1826, 1.442695
      %v1852 = vpow.pop %v1851
      %v1853 = vmul.f32 %v1827, 1.442695
      %v1854 = vpow.pop %v1853
      %v1855 = vmul.f32 %v1828, 1.442695
      %v1856 = vpow.pop %v1855
      %v1857 = vmul.f32 %v1829, 1.442695
      %v1858 = vpow.pop %v1857
      %v1859 = vmul.f32 %v1830, 1.442695
      %v1860 = vpow.pop %v1859
      %v1861 = vmul.f32 %v1831, 1.442695
      %v1862 = vpow.pop %v1861
      %v1863 = vmul.f32 %v1832, 1.442695
      %v1864 = vpow.pop %v1863
      %v1865 = vadd.f32 %v1834, 1.0
      %v1866 = vadd.f32 %v1836, 1.0
      %v1867 = vadd.f32 %v1838, 1.0
      %v1868 = vadd.f32 %v1840, 1.0
      %v1869 = vadd.f32 %v1842, 1.0
      %v1870 = vadd.f32 %v1844, 1.0
      %v1871 = vadd.f32 %v1846, 1.0
      %v1872 = vadd.f32 %v1848, 1.0
      %v1873 = vadd.f32 %v1850, 1.0
      %v1874 = vadd.f32 %v1852, 1.0
      %v1875 = vadd.f32 %v1854, 1.0
      %v1876 = vadd.f32 %v1856, 1.0
      %v1877 = vadd.f32 %v1858, 1.0
      %v1878 = vadd.f32 %v1860, 1.0
      %v1879 = vadd.f32 %v1862, 1.0
      %v1880 = vadd.f32 %v1864, 1.0
      %v1881 = vrcp.pop %v1865
      %v1882 = vmul.f32 1.0, %v1881
      %v1883 = vrcp.pop %v1866
      %v1884 = vmul.f32 1.0, %v1883
      %v1885 = vrcp.pop %v1867
      %v1886 = vmul.f32 1.0, %v1885
      %v1887 = vrcp.pop %v1868
      %v1888 = vmul.f32 1.0, %v1887
      %v1889 = vrcp.pop %v1869
      %v1890 = vmul.f32 1.0, %v1889
      %v1891 = vrcp.pop %v1870
      %v1892 = vmul.f32 1.0, %v1891
      %v1893 = vrcp.pop %v1871
      %v1894 = vmul.f32 1.0, %v1893
      %v1895 = vrcp.pop %v1872
      %v1896 = vmul.f32 1.0, %v1895
      %v1897 = vrcp.pop %v1873
      %v1898 = vmul.f32 1.0, %v1897
      %v1899 = vrcp.pop %v1874
      %v1900 = vmul.f32 1.0, %v1899
      %v1901 = vrcp.pop %v1875
      %v1902 = vmul.f32 1.0, %v1901
      %v1903 = vrcp.pop %v1876
      %v1904 = vmul.f32 1.0, %v1903
      %v1905 = vrcp.pop %v1877
      %v1906 = vmul.f32 1.0, %v1905
      %v1907 = vrcp.pop %v1878
      %v1908 = vmul.f32 1.0, %v1907
      %v1909 = vrcp.pop %v1879
      %v1910 = vmul.f32 1.0, %v1909
      %v1911 = vrcp.pop %v1880
      %v1912 = vmul.f32 1.0, %v1911
      %v1913 = vmul.f32 %v1801, %v1882
      %v1914 = vmul.f32 %v1802, %v1884
      %v1915 = vmul.f32 %v1803, %v1886
      %v1916 = vmul.f32 %v1804, %v1888
      %v1917 = vmul.f32 %v1805, %v1890
      %v1918 = vmul.f32 %v1806, %v1892
      %v1919 = vmul.f32 %v1807, %v1894
      %v1920 = vmul.f32 %v1808, %v1896
      %v1921 = vmul.f32 %v1809, %v1898
      %v1922 = vmul.f32 %v1810, %v1900
      %v1923 = vmul.f32 %v1811, %v1902
      %v1924 = vmul.f32 %v1812, %v1904
      %v1925 = vmul.f32 %v1813, %v1906
      %v1926 = vmul.f32 %v1814, %v1908
      %v1927 = vmul.f32 %v1815, %v1910
      %v1928 = vmul.f32 %v1816, %v1912
      %v1929 = vld [vmem:[%s7] sm:$0xff]
      %v1930 = vld [vmem:[%s7 + $0x8] sm:$0xff]
      %v1931 = vld [vmem:[%s7 + $0x10] sm:$0xff]
      %v1932 = vld [vmem:[%s7 + $0x18] sm:$0xff]
      %v1933 = vld [vmem:[%s8] sm:$0x1]
      %v1935 = vlaneseq
      %v1936 = vshrl.u32 %v1935, 7
      %v1937 = vsub.s32 0, %v1936
      %v1938 = vrot.slane %v1933, %v1937
      %v1941 = vsel %vm883, %v1913, 0
      %v1944 = vsel %vm883, %v1914, 0
      %v1947 = vsel %vm883, %v1915, 0
      %v1950 = vsel %vm883, %v1916, 0
      %v1953 = vsel %vm883, %v1917, 0
      %v1956 = vsel %vm883, %v1918, 0
      %v1959 = vsel %vm883, %v1919, 0
      %v1962 = vsel %vm883, %v1920, 0
      %v1965 = vsel %vm883, %v1921, 0
      %v1968 = vsel %vm883, %v1922, 0
      %v1971 = vsel %vm883, %v1923, 0
      %v1974 = vsel %vm883, %v1924, 0
      %v1977 = vsel %vm883, %v1925, 0
      %v1980 = vsel %vm883, %v1926, 0
      %v1983 = vsel %vm883, %v1927, 0
      %v1986 = vsel %vm883, %v1928, 0
      %1988 = vmatprep.subr.mxu0 0.0
      %1989 = vmatpush1.msra.mxu0 %v1929
      %1990 = vmatprep.subr.mxu0 0.0
      %1991 = vmatpush1.msra.mxu0 %v1930
      %1992 = vmatprep.subr.mxu0 0.0
      %1993 = vmatpush1.msra.mxu0 %v1931
      %1994 = vmatprep.subr.mxu0 0.0
      %1995 = vmatpush1.msra.mxu0 %v1932
      %1996 = vmatprep.subr.mxu0 0.0
      %1997 = vmatpush1.msra.mxu0 0.0
      %1998 = vmatprep.subr.mxu0 0.0
      %1999 = vmatpush1.msra.mxu0 0.0
      %2000 = vmatprep.subr.mxu0 0.0
      %2001 = vmatpush1.msra.mxu0 0.0
      %2002 = vmatprep.subr.mxu0 0.0
      %2003 = vmatpush1.msra.mxu0 0.0
      %2004 = vmatprep.subr.mxu0 0.0
      %2005 = vmatpush1.msra.mxu0 0.0
      %2006 = vmatprep.subr.mxu0 0.0
      %2007 = vmatpush1.msra.mxu0 0.0
      %2008 = vmatprep.subr.mxu0 0.0
      %2009 = vmatpush1.msra.mxu0 0.0
      %2010 = vmatprep.subr.mxu0 0.0
      %2011 = vmatpush1.msra.mxu0 0.0
      %2012 = vmatprep.subr.mxu0 0.0
      %2013 = vmatpush1.msra.mxu0 0.0
      %2014 = vmatprep.subr.mxu0 0.0
      %2015 = vmatpush1.msra.mxu0 0.0
      %2016 = vmatprep.subr.mxu0 0.0
      %2017 = vmatpush1.msra.mxu0 0.0
      %2018 = vmatprep.subr.mxu0 0.0
      %2019 = vmatpush1.msra.mxu0 0.0
      %2020 = vmatprep.subr.mxu0 0.0
      %2021 = vmatpush1.msra.mxu0 0.0
      %2022 = vmatprep.subr.mxu0 0.0
      %2023 = vmatpush1.msra.mxu0 0.0
      %2024 = vmatprep.subr.mxu0 0.0
      %2025 = vmatpush1.msra.mxu0 0.0
      %2026 = vmatprep.subr.mxu0 0.0
      %2027 = vmatpush1.msra.mxu0 0.0
      %2028 = vmatprep.subr.mxu0 0.0
      %2029 = vmatpush1.msra.mxu0 0.0
      %2030 = vmatprep.subr.mxu0 0.0
      %2031 = vmatpush1.msra.mxu0 0.0
      %2032 = vmatprep.subr.mxu0 0.0
      %2033 = vmatpush1.msra.mxu0 0.0
      %2034 = vmatprep.subr.mxu0 0.0
      %2035 = vmatpush1.msra.mxu0 0.0
      %2036 = vmatprep.subr.mxu0 0.0
      %2037 = vmatpush1.msra.mxu0 0.0
      %2038 = vmatprep.subr.mxu0 0.0
      %2039 = vmatpush1.msra.mxu0 0.0
      %2040 = vmatprep.subr.mxu0 0.0
      %2041 = vmatpush1.msra.mxu0 0.0
      %2042 = vmatprep.subr.mxu0 0.0
      %2043 = vmatpush1.msra.mxu0 0.0
      %2044 = vmatprep.subr.mxu0 0.0
      %2045 = vmatpush1.msra.mxu0 0.0
      %2046 = vmatprep.subr.mxu0 0.0
      %2047 = vmatpush1.msra.mxu0 0.0
      %2048 = vmatprep.subr.mxu0 0.0
      %2049 = vmatpush1.msra.mxu0 0.0
      %2050 = vmatprep.subr.mxu0 0.0
      %2051 = vmatpush1.msra.mxu0 0.0
      %2052 = vmatprep.mubr.f32.mxu0 0.0
      %2053 = vmatmul.mubr.f32.gmra.mrb[0].mxu0 %v1941
      %v2054 = vpop.f32.mrb[0].mxu0
      %v2055 = vadd.f32 %v1938, %v2054
      %v2056 = vpop.f32.mrb[0].mxu0
      %2057 = vmatprep.mubr.f32.mxu0 0.0
      %2058 = vmatmul.mubr.f32.gmra.mrb[0].mxu0 %v1944
      %v2059 = vpop.f32.mrb[0].mxu0
      %v2060 = vadd.f32 %v1938, %v2059
      %v2061 = vpop.f32.mrb[0].mxu0
      %2062 = vmatprep.mubr.f32.mxu0 0.0
      %2063 = vmatmul.mubr.f32.gmra.mrb[0].mxu0 %v1947
      %v2064 = vpop.f32.mrb[0].mxu0
      %v2065 = vadd.f32 %v1938, %v2064
      %v2066 = vpop.f32.mrb[0].mxu0
      %2067 = vmatprep.mubr.f32.mxu0 0.0
      %2068 = vmatmul.mubr.f32.gmra.mrb[0].mxu0 %v1950
      %v2069 = vpop.f32.mrb[0].mxu0
      %v2070 = vadd.f32 %v1938, %v2069
      %v2071 = vpop.f32.mrb[0].mxu0
      %2072 = vmatprep.mubr.f32.mxu0 0.0
      %2073 = vmatmul.mubr.f32.gmra.mrb[0].mxu0 %v1953
      %v2074 = vpop.f32.mrb[0].mxu0
      %v2075 = vadd.f32 %v1938, %v2074
      %v2076 = vpop.f32.mrb[0].mxu0
      %2077 = vmatprep.mubr.f32.mxu0 0.0
      %2078 = vmatmul.mubr.f32.gmra.mrb[0].mxu0 %v1956
      %v2079 = vpop.f32.mrb[0].mxu0
      %v2080 = vadd.f32 %v1938, %v2079
      %v2081 = vpop.f32.mrb[0].mxu0
      %2082 = vmatprep.mubr.f32.mxu0 0.0
      %2083 = vmatmul.mubr.f32.gmra.mrb[0].mxu0 %v1959
      %v2084 = vpop.f32.mrb[0].mxu0
      %v2085 = vadd.f32 %v1938, %v2084
      %v2086 = vpop.f32.mrb[0].mxu0
      %2087 = vmatprep.mubr.f32.mxu0 0.0
      %2088 = vmatmul.mubr.f32.gmra.mrb[0].mxu0 %v1962
      %v2089 = vpop.f32.mrb[0].mxu0
      %v2090 = vadd.f32 %v1938, %v2089
      %v2091 = vpop.f32.mrb[0].mxu0
      %2092 = vmatprep.mubr.f32.mxu0 0.0
      %2093 = vmatmul.mubr.f32.gmra.mrb[0].mxu0 %v1965
      %v2094 = vpop.f32.mrb[0].mxu0
      %v2095 = vadd.f32 %v1938, %v2094
      %v2096 = vpop.f32.mrb[0].mxu0
      %2097 = vmatprep.mubr.f32.mxu0 0.0
      %2098 = vmatmul.mubr.f32.gmra.mrb[0].mxu0 %v1968
      %v2099 = vpop.f32.mrb[0].mxu0
      %v2100 = vadd.f32 %v1938, %v2099
      %v2101 = vpop.f32.mrb[0].mxu0
      %2102 = vmatprep.mubr.f32.mxu0 0.0
      %2103 = vmatmul.mubr.f32.gmra.mrb[0].mxu0 %v1971
      %v2104 = vpop.f32.mrb[0].mxu0
      %v2105 = vadd.f32 %v1938, %v2104
      %v2106 = vpop.f32.mrb[0].mxu0
      %2107 = vmatprep.mubr.f32.mxu0 0.0
      %2108 = vmatmul.mubr.f32.gmra.mrb[0].mxu0 %v1974
      %v2109 = vpop.f32.mrb[0].mxu0
      %v2110 = vadd.f32 %v1938, %v2109
      %v2111 = vpop.f32.mrb[0].mxu0
      %2112 = vmatprep.mubr.f32.mxu0 0.0
      %2113 = vmatmul.mubr.f32.gmra.mrb[0].mxu0 %v1977
      %v2114 = vpop.f32.mrb[0].mxu0
      %v2115 = vadd.f32 %v1938, %v2114
      %v2116 = vpop.f32.mrb[0].mxu0
      %2117 = vmatprep.mubr.f32.mxu0 0.0
      %2118 = vmatmul.mubr.f32.gmra.mrb[0].mxu0 %v1980
      %v2119 = vpop.f32.mrb[0].mxu0
      %v2120 = vadd.f32 %v1938, %v2119
      %v2121 = vpop.f32.mrb[0].mxu0
      %2122 = vmatprep.mubr.f32.mxu0 0.0
      %2123 = vmatmul.mubr.f32.gmra.mrb[0].mxu0 %v1983
      %v2124 = vpop.f32.mrb[0].mxu0
      %v2125 = vadd.f32 %v1938, %v2124
      %v2126 = vpop.f32.mrb[0].mxu0
      %2127 = vmatprep.mubr.f32.mxu0 0.0
      %2128 = vmatmul.mubr.f32.gmra.mrb[0].mxu0 %v1986
      %v2129 = vpop.f32.mrb[0].mxu0
      %v2130 = vadd.f32 %v1938, %v2129
      %v2131 = vpop.f32.mrb[0].mxu0
      %2132 = vdwg.mxu0
      %v2133 = vxor.u32 %v2055, 2147483648
      %v2134 = vxor.u32 %v2060, 2147483648
      %v2135 = vxor.u32 %v2065, 2147483648
      %v2136 = vxor.u32 %v2070, 2147483648
      %v2137 = vxor.u32 %v2075, 2147483648
      %v2138 = vxor.u32 %v2080, 2147483648
      %v2139 = vxor.u32 %v2085, 2147483648
      %v2140 = vxor.u32 %v2090, 2147483648
      %v2141 = vxor.u32 %v2095, 2147483648
      %v2142 = vxor.u32 %v2100, 2147483648
      %v2143 = vxor.u32 %v2105, 2147483648
      %v2144 = vxor.u32 %v2110, 2147483648
      %v2145 = vxor.u32 %v2115, 2147483648
      %v2146 = vxor.u32 %v2120, 2147483648
      %v2147 = vxor.u32 %v2125, 2147483648
      %v2148 = vxor.u32 %v2130, 2147483648
      %v2149 = vmul.f32 %v2133, 1.442695
      %v2150 = vpow.pop %v2149
      %v2151 = vmul.f32 %v2134, 1.442695
      %v2152 = vpow.pop %v2151
      %v2153 = vmul.f32 %v2135, 1.442695
      %v2154 = vpow.pop %v2153
      %v2155 = vmul.f32 %v2136, 1.442695
      %v2156 = vpow.pop %v2155
      %v2157 = vmul.f32 %v2137, 1.442695
      %v2158 = vpow.pop %v2157
      %v2159 = vmul.f32 %v2138, 1.442695
      %v2160 = vpow.pop %v2159
      %v2161 = vmul.f32 %v2139, 1.442695
      %v2162 = vpow.pop %v2161
      %v2163 = vmul.f32 %v2140, 1.442695
      %v2164 = vpow.pop %v2163
      %v2165 = vmul.f32 %v2141, 1.442695
      %v2166 = vpow.pop %v2165
      %v2167 = vmul.f32 %v2142, 1.442695
      %v2168 = vpow.pop %v2167
      %v2169 = vmul.f32 %v2143, 1.442695
      %v2170 = vpow.pop %v2169
      %v2171 = vmul.f32 %v2144, 1.442695
      %v2172 = vpow.pop %v2171
      %v2173 = vmul.f32 %v2145, 1.442695
      %v2174 = vpow.pop %v2173
      %v2175 = vmul.f32 %v2146, 1.442695
      %v2176 = vpow.pop %v2175
      %v2177 = vmul.f32 %v2147, 1.442695
      %v2178 = vpow.pop %v2177
      %v2179 = vmul.f32 %v2148, 1.442695
      %v2180 = vpow.pop %v2179
      %v2181 = vadd.f32 %v2150, 1.0
      %v2182 = vadd.f32 %v2152, 1.0
      %v2183 = vadd.f32 %v2154, 1.0
      %v2184 = vadd.f32 %v2156, 1.0
      %v2185 = vadd.f32 %v2158, 1.0
      %v2186 = vadd.f32 %v2160, 1.0
      %v2187 = vadd.f32 %v2162, 1.0
      %v2188 = vadd.f32 %v2164, 1.0
      %v2189 = vadd.f32 %v2166, 1.0
      %v2190 = vadd.f32 %v2168, 1.0
      %v2191 = vadd.f32 %v2170, 1.0
      %v2192 = vadd.f32 %v2172, 1.0
      %v2193 = vadd.f32 %v2174, 1.0
      %v2194 = vadd.f32 %v2176, 1.0
      %v2195 = vadd.f32 %v2178, 1.0
      %v2196 = vadd.f32 %v2180, 1.0
      %v2197 = vrcp.pop %v2181
      %v2198 = vmul.f32 1.0, %v2197
      %v2199 = vrcp.pop %v2182
      %v2200 = vmul.f32 1.0, %v2199
      %v2201 = vrcp.pop %v2183
      %v2202 = vmul.f32 1.0, %v2201
      %v2203 = vrcp.pop %v2184
      %v2204 = vmul.f32 1.0, %v2203
      %v2205 = vrcp.pop %v2185
      %v2206 = vmul.f32 1.0, %v2205
      %v2207 = vrcp.pop %v2186
      %v2208 = vmul.f32 1.0, %v2207
      %v2209 = vrcp.pop %v2187
      %v2210 = vmul.f32 1.0, %v2209
      %v2211 = vrcp.pop %v2188
      %v2212 = vmul.f32 1.0, %v2211
      %v2213 = vrcp.pop %v2189
      %v2214 = vmul.f32 1.0, %v2213
      %v2215 = vrcp.pop %v2190
      %v2216 = vmul.f32 1.0, %v2215
      %v2217 = vrcp.pop %v2191
      %v2218 = vmul.f32 1.0, %v2217
      %v2219 = vrcp.pop %v2192
      %v2220 = vmul.f32 1.0, %v2219
      %v2221 = vrcp.pop %v2193
      %v2222 = vmul.f32 1.0, %v2221
      %v2223 = vrcp.pop %v2194
      %v2224 = vmul.f32 1.0, %v2223
      %v2225 = vrcp.pop %v2195
      %v2226 = vmul.f32 1.0, %v2225
      %v2227 = vrcp.pop %v2196
      %v2228 = vmul.f32 1.0, %v2227
      %v2229 = vmul.f32 %v2055, %v2198
      %v2230 = vmul.f32 %v2060, %v2200
      %v2231 = vmul.f32 %v2065, %v2202
      %v2232 = vmul.f32 %v2070, %v2204
      %v2233 = vmul.f32 %v2075, %v2206
      %v2234 = vmul.f32 %v2080, %v2208
      %v2235 = vmul.f32 %v2085, %v2210
      %v2236 = vmul.f32 %v2090, %v2212
      %v2237 = vmul.f32 %v2095, %v2214
      %v2238 = vmul.f32 %v2100, %v2216
      %v2239 = vmul.f32 %v2105, %v2218
      %v2240 = vmul.f32 %v2110, %v2220
      %v2241 = vmul.f32 %v2115, %v2222
      %v2242 = vmul.f32 %v2120, %v2224
      %v2243 = vmul.f32 %v2125, %v2226
      %v2244 = vmul.f32 %v2130, %v2228
      %v2245 = vld [vmem:[%s14] sm:$0xff]
      %v2246 = vld [vmem:[%s14 + $0x8] sm:$0xff]
      %v2247 = vld [vmem:[%s14 + $0x10] sm:$0xff]
      %v2248 = vld [vmem:[%s14 + $0x18] sm:$0xff]
      %v2249 = vld [vmem:[%s15] sm:$0x1]
      %v2251 = vlaneseq
      %v2252 = vshrl.u32 %v2251, 7
      %v2253 = vsub.s32 0, %v2252
      %v2254 = vrot.slane %v2249, %v2253
      %v2257 = vsel %vm883, %v2229, 0
      %v2260 = vsel %vm883, %v2230, 0
      %v2263 = vsel %vm883, %v2231, 0
      %v2266 = vsel %vm883, %v2232, 0
      %v2269 = vsel %vm883, %v2233, 0
      %v2272 = vsel %vm883, %v2234, 0
      %v2275 = vsel %vm883, %v2235, 0
      %v2278 = vsel %vm883, %v2236, 0
      %v2281 = vsel %vm883, %v2237, 0
      %v2284 = vsel %vm883, %v2238, 0
      %v2287 = vsel %vm883, %v2239, 0
      %v2290 = vsel %vm883, %v2240, 0
      %v2293 = vsel %vm883, %v2241, 0
      %v2296 = vsel %vm883, %v2242, 0
      %v2299 = vsel %vm883, %v2243, 0
      %v2302 = vsel %vm883, %v2244, 0
      %2304 = vmatprep.subr.mxu0 0.0
      %2305 = vmatpush1.msra.mxu0 %v2245
      %2306 = vmatprep.subr.mxu0 0.0
      %2307 = vmatpush1.msra.mxu0 %v2246
      %2308 = vmatprep.subr.mxu0 0.0
      %2309 = vmatpush1.msra.mxu0 %v2247
      %2310 = vmatprep.subr.mxu0 0.0
      %2311 = vmatpush1.msra.mxu0 %v2248
      %2312 = vmatprep.subr.mxu0 0.0
      %2313 = vmatpush1.msra.mxu0 0.0
      %2314 = vmatprep.subr.mxu0 0.0
      %2315 = vmatpush1.msra.mxu0 0.0
      %2316 = vmatprep.subr.mxu0 0.0
      %2317 = vmatpush1.msra.mxu0 0.0
      %2318 = vmatprep.subr.mxu0 0.0
      %2319 = vmatpush1.msra.mxu0 0.0
      %2320 = vmatprep.subr.mxu0 0.0
      %2321 = vmatpush1.msra.mxu0 0.0
      %2322 = vmatprep.subr.mxu0 0.0
      %2323 = vmatpush1.msra.mxu0 0.0
      %2324 = vmatprep.subr.mxu0 0.0
      %2325 = vmatpush1.msra.mxu0 0.0
      %2326 = vmatprep.subr.mxu0 0.0
      %2327 = vmatpush1.msra.mxu0 0.0
      %2328 = vmatprep.subr.mxu0 0.0
      %2329 = vmatpush1.msra.mxu0 0.0
      %2330 = vmatprep.subr.mxu0 0.0
      %2331 = vmatpush1.msra.mxu0 0.0
      %2332 = vmatprep.subr.mxu0 0.0
      %2333 = vmatpush1.msra.mxu0 0.0
      %2334 = vmatprep.subr.mxu0 0.0
      %2335 = vmatpush1.msra.mxu0 0.0
      %2336 = vmatprep.subr.mxu0 0.0
      %2337 = vmatpush1.msra.mxu0 0.0
      %2338 = vmatprep.subr.mxu0 0.0
      %2339 = vmatpush1.msra.mxu0 0.0
      %2340 = vmatprep.subr.mxu0 0.0
      %2341 = vmatpush1.msra.mxu0 0.0
      %2342 = vmatprep.subr.mxu0 0.0
      %2343 = vmatpush1.msra.mxu0 0.0
      %2344 = vmatprep.subr.mxu0 0.0
      %2345 = vmatpush1.msra.mxu0 0.0
      %2346 = vmatprep.subr.mxu0 0.0
      %2347 = vmatpush1.msra.mxu0 0.0
      %2348 = vmatprep.subr.mxu0 0.0
      %2349 = vmatpush1.msra.mxu0 0.0
      %2350 = vmatprep.subr.mxu0 0.0
      %2351 = vmatpush1.msra.mxu0 0.0
      %2352 = vmatprep.subr.mxu0 0.0
      %2353 = vmatpush1.msra.mxu0 0.0
      %2354 = vmatprep.subr.mxu0 0.0
      %2355 = vmatpush1.msra.mxu0 0.0
      %2356 = vmatprep.subr.mxu0 0.0
      %2357 = vmatpush1.msra.mxu0 0.0
      %2358 = vmatprep.subr.mxu0 0.0
      %2359 = vmatpush1.msra.mxu0 0.0
      %2360 = vmatprep.subr.mxu0 0.0
      %2361 = vmatpush1.msra.mxu0 0.0
      %2362 = vmatprep.subr.mxu0 0.0
      %2363 = vmatpush1.msra.mxu0 0.0
      %2364 = vmatprep.subr.mxu0 0.0
      %2365 = vmatpush1.msra.mxu0 0.0
      %2366 = vmatprep.subr.mxu0 0.0
      %2367 = vmatpush1.msra.mxu0 0.0
      %2368 = vmatprep.mubr.f32.mxu0 0.0
      %2369 = vmatmul.mubr.f32.gmra.mrb[0].mxu0 %v2257
      %v2370 = vpop.f32.mrb[0].mxu0
      %v2371 = vadd.f32 %v2254, %v2370
      %v2372 = vpop.f32.mrb[0].mxu0
      %2373 = vmatprep.mubr.f32.mxu0 0.0
      %2374 = vmatmul.mubr.f32.gmra.mrb[0].mxu0 %v2260
      %v2375 = vpop.f32.mrb[0].mxu0
      %v2376 = vadd.f32 %v2254, %v2375
      %v2377 = vpop.f32.mrb[0].mxu0
      %2378 = vmatprep.mubr.f32.mxu0 0.0
      %2379 = vmatmul.mubr.f32.gmra.mrb[0].mxu0 %v2263
      %v2380 = vpop.f32.mrb[0].mxu0
      %v2381 = vadd.f32 %v2254, %v2380
      %v2382 = vpop.f32.mrb[0].mxu0
      %2383 = vmatprep.mubr.f32.mxu0 0.0
      %2384 = vmatmul.mubr.f32.gmra.mrb[0].mxu0 %v2266
      %v2385 = vpop.f32.mrb[0].mxu0
      %v2386 = vadd.f32 %v2254, %v2385
      %v2387 = vpop.f32.mrb[0].mxu0
      %2388 = vmatprep.mubr.f32.mxu0 0.0
      %2389 = vmatmul.mubr.f32.gmra.mrb[0].mxu0 %v2269
      %v2390 = vpop.f32.mrb[0].mxu0
      %v2391 = vadd.f32 %v2254, %v2390
      %v2392 = vpop.f32.mrb[0].mxu0
      %2393 = vmatprep.mubr.f32.mxu0 0.0
      %2394 = vmatmul.mubr.f32.gmra.mrb[0].mxu0 %v2272
      %v2395 = vpop.f32.mrb[0].mxu0
      %v2396 = vadd.f32 %v2254, %v2395
      %v2397 = vpop.f32.mrb[0].mxu0
      %2398 = vmatprep.mubr.f32.mxu0 0.0
      %2399 = vmatmul.mubr.f32.gmra.mrb[0].mxu0 %v2275
      %v2400 = vpop.f32.mrb[0].mxu0
      %v2401 = vadd.f32 %v2254, %v2400
      %v2402 = vpop.f32.mrb[0].mxu0
      %2403 = vmatprep.mubr.f32.mxu0 0.0
      %2404 = vmatmul.mubr.f32.gmra.mrb[0].mxu0 %v2278
      %v2405 = vpop.f32.mrb[0].mxu0
      %v2406 = vadd.f32 %v2254, %v2405
      %v2407 = vpop.f32.mrb[0].mxu0
      %2408 = vmatprep.mubr.f32.mxu0 0.0
      %2409 = vmatmul.mubr.f32.gmra.mrb[0].mxu0 %v2281
      %v2410 = vpop.f32.mrb[0].mxu0
      %v2411 = vadd.f32 %v2254, %v2410
      %v2412 = vpop.f32.mrb[0].mxu0
      %2413 = vmatprep.mubr.f32.mxu0 0.0
      %2414 = vmatmul.mubr.f32.gmra.mrb[0].mxu0 %v2284
      %v2415 = vpop.f32.mrb[0].mxu0
      %v2416 = vadd.f32 %v2254, %v2415
      %v2417 = vpop.f32.mrb[0].mxu0
      %2418 = vmatprep.mubr.f32.mxu0 0.0
      %2419 = vmatmul.mubr.f32.gmra.mrb[0].mxu0 %v2287
      %v2420 = vpop.f32.mrb[0].mxu0
      %v2421 = vadd.f32 %v2254, %v2420
      %v2422 = vpop.f32.mrb[0].mxu0
      %2423 = vmatprep.mubr.f32.mxu0 0.0
      %2424 = vmatmul.mubr.f32.gmra.mrb[0].mxu0 %v2290
      %v2425 = vpop.f32.mrb[0].mxu0
      %v2426 = vadd.f32 %v2254, %v2425
      %v2427 = vpop.f32.mrb[0].mxu0
      %2428 = vmatprep.mubr.f32.mxu0 0.0
      %2429 = vmatmul.mubr.f32.gmra.mrb[0].mxu0 %v2293
      %v2430 = vpop.f32.mrb[0].mxu0
      %v2431 = vadd.f32 %v2254, %v2430
      %v2432 = vpop.f32.mrb[0].mxu0
      %2433 = vmatprep.mubr.f32.mxu0 0.0
      %2434 = vmatmul.mubr.f32.gmra.mrb[0].mxu0 %v2296
      %v2435 = vpop.f32.mrb[0].mxu0
      %v2436 = vadd.f32 %v2254, %v2435
      %v2437 = vpop.f32.mrb[0].mxu0
      %2438 = vmatprep.mubr.f32.mxu0 0.0
      %2439 = vmatmul.mubr.f32.gmra.mrb[0].mxu0 %v2299
      %v2440 = vpop.f32.mrb[0].mxu0
      %v2441 = vadd.f32 %v2254, %v2440
      %v2442 = vpop.f32.mrb[0].mxu0
      %2443 = vmatprep.mubr.f32.mxu0 0.0
      %2444 = vmatmul.mubr.f32.gmra.mrb[0].mxu0 %v2302
      %v2445 = vpop.f32.mrb[0].mxu0
      %v2446 = vadd.f32 %v2254, %v2445
      %v2447 = vpop.f32.mrb[0].mxu0
      %2448 = vdwg.mxu0
      %v2449 = vxor.u32 %v2371, 2147483648
      %v2450 = vxor.u32 %v2376, 2147483648
      %v2451 = vxor.u32 %v2381, 2147483648
      %v2452 = vxor.u32 %v2386, 2147483648
      %v2453 = vxor.u32 %v2391, 2147483648
      %v2454 = vxor.u32 %v2396, 2147483648
      %v2455 = vxor.u32 %v2401, 2147483648
      %v2456 = vxor.u32 %v2406, 2147483648
      %v2457 = vxor.u32 %v2411, 2147483648
      %v2458 = vxor.u32 %v2416, 2147483648
      %v2459 = vxor.u32 %v2421, 2147483648
      %v2460 = vxor.u32 %v2426, 2147483648
      %v2461 = vxor.u32 %v2431, 2147483648
      %v2462 = vxor.u32 %v2436, 2147483648
      %v2463 = vxor.u32 %v2441, 2147483648
      %v2464 = vxor.u32 %v2446, 2147483648
      %v2465 = vmul.f32 %v2449, 1.442695
      %v2466 = vpow.pop %v2465
      %v2467 = vmul.f32 %v2450, 1.442695
      %v2468 = vpow.pop %v2467
      %v2469 = vmul.f32 %v2451, 1.442695
      %v2470 = vpow.pop %v2469
      %v2471 = vmul.f32 %v2452, 1.442695
      %v2472 = vpow.pop %v2471
      %v2473 = vmul.f32 %v2453, 1.442695
      %v2474 = vpow.pop %v2473
      %v2475 = vmul.f32 %v2454, 1.442695
      %v2476 = vpow.pop %v2475
      %v2477 = vmul.f32 %v2455, 1.442695
      %v2478 = vpow.pop %v2477
      %v2479 = vmul.f32 %v2456, 1.442695
      %v2480 = vpow.pop %v2479
      %v2481 = vmul.f32 %v2457, 1.442695
      %v2482 = vpow.pop %v2481
      %v2483 = vmul.f32 %v2458, 1.442695
      %v2484 = vpow.pop %v2483
      %v2485 = vmul.f32 %v2459, 1.442695
      %v2486 = vpow.pop %v2485
      %v2487 = vmul.f32 %v2460, 1.442695
      %v2488 = vpow.pop %v2487
      %v2489 = vmul.f32 %v2461, 1.442695
      %v2490 = vpow.pop %v2489
      %v2491 = vmul.f32 %v2462, 1.442695
      %v2492 = vpow.pop %v2491
      %v2493 = vmul.f32 %v2463, 1.442695
      %v2494 = vpow.pop %v2493
      %v2495 = vmul.f32 %v2464, 1.442695
      %v2496 = vpow.pop %v2495
      %v2497 = vadd.f32 %v2466, 1.0
      %v2498 = vadd.f32 %v2468, 1.0
      %v2499 = vadd.f32 %v2470, 1.0
      %v2500 = vadd.f32 %v2472, 1.0
      %v2501 = vadd.f32 %v2474, 1.0
      %v2502 = vadd.f32 %v2476, 1.0
      %v2503 = vadd.f32 %v2478, 1.0
      %v2504 = vadd.f32 %v2480, 1.0
      %v2505 = vadd.f32 %v2482, 1.0
      %v2506 = vadd.f32 %v2484, 1.0
      %v2507 = vadd.f32 %v2486, 1.0
      %v2508 = vadd.f32 %v2488, 1.0
      %v2509 = vadd.f32 %v2490, 1.0
      %v2510 = vadd.f32 %v2492, 1.0
      %v2511 = vadd.f32 %v2494, 1.0
      %v2512 = vadd.f32 %v2496, 1.0
      %v2513 = vrcp.pop %v2497
      %v2514 = vmul.f32 1.0, %v2513
      %v2515 = vrcp.pop %v2498
      %v2516 = vmul.f32 1.0, %v2515
      %v2517 = vrcp.pop %v2499
      %v2518 = vmul.f32 1.0, %v2517
      %v2519 = vrcp.pop %v2500
      %v2520 = vmul.f32 1.0, %v2519
      %v2521 = vrcp.pop %v2501
      %v2522 = vmul.f32 1.0, %v2521
      %v2523 = vrcp.pop %v2502
      %v2524 = vmul.f32 1.0, %v2523
      %v2525 = vrcp.pop %v2503
      %v2526 = vmul.f32 1.0, %v2525
      %v2527 = vrcp.pop %v2504
      %v2528 = vmul.f32 1.0, %v2527
      %v2529 = vrcp.pop %v2505
      %v2530 = vmul.f32 1.0, %v2529
      %v2531 = vrcp.pop %v2506
      %v2532 = vmul.f32 1.0, %v2531
      %v2533 = vrcp.pop %v2507
      %v2534 = vmul.f32 1.0, %v2533
      %v2535 = vrcp.pop %v2508
      %v2536 = vmul.f32 1.0, %v2535
      %v2537 = vrcp.pop %v2509
      %v2538 = vmul.f32 1.0, %v2537
      %v2539 = vrcp.pop %v2510
      %v2540 = vmul.f32 1.0, %v2539
      %v2541 = vrcp.pop %v2511
      %v2542 = vmul.f32 1.0, %v2541
      %v2543 = vrcp.pop %v2512
      %v2544 = vmul.f32 1.0, %v2543
      %v2545 = vmul.f32 %v2371, %v2514
      %v2546 = vmul.f32 %v2376, %v2516
      %v2547 = vmul.f32 %v2381, %v2518
      %v2548 = vmul.f32 %v2386, %v2520
      %v2549 = vmul.f32 %v2391, %v2522
      %v2550 = vmul.f32 %v2396, %v2524
      %v2551 = vmul.f32 %v2401, %v2526
      %v2552 = vmul.f32 %v2406, %v2528
      %v2553 = vmul.f32 %v2411, %v2530
      %v2554 = vmul.f32 %v2416, %v2532
      %v2555 = vmul.f32 %v2421, %v2534
      %v2556 = vmul.f32 %v2426, %v2536
      %v2557 = vmul.f32 %v2431, %v2538
      %v2558 = vmul.f32 %v2436, %v2540
      %v2559 = vmul.f32 %v2441, %v2542
      %v2560 = vmul.f32 %v2446, %v2544
      %v2561 = vld [vmem:[%s16] sm:$0x1]
      %v2563 = vlaneseq
      %v2564 = vshrl.u32 %v2563, 7
      %v2565 = vsub.s32 0, %v2564
      %v2566 = vrot.slane %v2561, %v2565
      %v2568 = vmul.f32 %v2545, %v2566
      %v2569 = vmul.f32 %v2546, %v2566
      %v2570 = vmul.f32 %v2547, %v2566
      %v2571 = vmul.f32 %v2548, %v2566
      %v2572 = vmul.f32 %v2549, %v2566
      %v2573 = vmul.f32 %v2550, %v2566
      %v2574 = vmul.f32 %v2551, %v2566
      %v2575 = vmul.f32 %v2552, %v2566
      %v2576 = vmul.f32 %v2553, %v2566
      %v2577 = vmul.f32 %v2554, %v2566
      %v2578 = vmul.f32 %v2555, %v2566
      %v2579 = vmul.f32 %v2556, %v2566
      %v2580 = vmul.f32 %v2557, %v2566
      %v2581 = vmul.f32 %v2558, %v2566
      %v2582 = vmul.f32 %v2559, %v2566
      %v2583 = vmul.f32 %v2560, %v2566
      %v2584 = vsel %vm883, %v2568, 0.0
      %2585 = vadd.xlane.f32.xlu0 %v2584
      %v2586 = vpop.xlane.xlu0 %2585
      %v2587 = vsel %vm883, %v2569, 0.0
      %2588 = vadd.xlane.f32.xlu0 %v2587
      %v2589 = vpop.xlane.xlu0 %2588
      %v2590 = vsel %vm883, %v2570, 0.0
      %2591 = vadd.xlane.f32.xlu0 %v2590
      %v2592 = vpop.xlane.xlu0 %2591
      %v2593 = vsel %vm883, %v2571, 0.0
      %2594 = vadd.xlane.f32.xlu0 %v2593
      %v2595 = vpop.xlane.xlu0 %2594
      %v2596 = vsel %vm883, %v2572, 0.0
      %2597 = vadd.xlane.f32.xlu0 %v2596
      %v2598 = vpop.xlane.xlu0 %2597
      %v2599 = vsel %vm883, %v2573, 0.0
      %2600 = vadd.xlane.f32.xlu0 %v2599
      %v2601 = vpop.xlane.xlu0 %2600
      %v2602 = vsel %vm883, %v2574, 0.0
      %2603 = vadd.xlane.f32.xlu0 %v2602
      %v2604 = vpop.xlane.xlu0 %2603
      %v2605 = vsel %vm883, %v2575, 0.0
      %2606 = vadd.xlane.f32.xlu0 %v2605
      %v2607 = vpop.xlane.xlu0 %2606
      %v2608 = vsel %vm883, %v2576, 0.0
      %2609 = vadd.xlane.f32.xlu0 %v2608
      %v2610 = vpop.xlane.xlu0 %2609
      %v2611 = vsel %vm883, %v2577, 0.0
      %2612 = vadd.xlane.f32.xlu0 %v2611
      %v2613 = vpop.xlane.xlu0 %2612
      %v2614 = vsel %vm883, %v2578, 0.0
      %2615 = vadd.xlane.f32.xlu0 %v2614
      %v2616 = vpop.xlane.xlu0 %2615
      %v2617 = vsel %vm883, %v2579, 0.0
      %2618 = vadd.xlane.f32.xlu0 %v2617
      %v2619 = vpop.xlane.xlu0 %2618
      %v2620 = vsel %vm883, %v2580, 0.0
      %2621 = vadd.xlane.f32.xlu0 %v2620
      %v2622 = vpop.xlane.xlu0 %2621
      %v2623 = vsel %vm883, %v2581, 0.0
      %2624 = vadd.xlane.f32.xlu0 %v2623
      %v2625 = vpop.xlane.xlu0 %2624
      %v2626 = vsel %vm883, %v2582, 0.0
      %2627 = vadd.xlane.f32.xlu0 %v2626
      %v2628 = vpop.xlane.xlu0 %2627
      %v2629 = vsel %vm883, %v2583, 0.0
      %2630 = vadd.xlane.f32.xlu0 %v2629
      %v2631 = vpop.xlane.xlu0 %2630
      %v2632 = vmul.f32 %v1254, %v2586
      %v2633 = vmul.f32 %v1255, %v2589
      %v2634 = vmul.f32 %v1256, %v2592
      %v2635 = vmul.f32 %v1257, %v2595
      %v2636 = vmul.f32 %v1258, %v2598
      %v2637 = vmul.f32 %v1259, %v2601
      %v2638 = vmul.f32 %v1260, %v2604
      %v2639 = vmul.f32 %v1261, %v2607
      %v2640 = vmul.f32 %v1262, %v2610
      %v2641 = vmul.f32 %v1263, %v2613
      %v2642 = vmul.f32 %v1264, %v2616
      %v2643 = vmul.f32 %v1265, %v2619
      %v2644 = vmul.f32 %v1266, %v2622
      %v2645 = vmul.f32 %v1267, %v2625
      %v2646 = vmul.f32 %v1268, %v2628
      %v2647 = vmul.f32 %v1269, %v2631
      %2664 = vrot.lane.b32.xlu0 %v2632, 32
      %v2665 = vpop.permute.xlu0 %2664
      %2666 = vrot.lane.b32.xlu0 %v2633, 32
      %v2667 = vpop.permute.xlu0 %2666
      %2668 = vrot.lane.b32.xlu0 %v2634, 32
      %v2669 = vpop.permute.xlu0 %2668
      %2670 = vrot.lane.b32.xlu0 %v2635, 32
      %v2671 = vpop.permute.xlu0 %2670
      %2672 = vrot.lane.b32.xlu0 %v2636, 32
      %v2673 = vpop.permute.xlu0 %2672
      %2674 = vrot.lane.b32.xlu0 %v2637, 32
      %v2675 = vpop.permute.xlu0 %2674
      %2676 = vrot.lane.b32.xlu0 %v2638, 32
      %v2677 = vpop.permute.xlu0 %2676
      %2678 = vrot.lane.b32.xlu0 %v2639, 32
      %v2679 = vpop.permute.xlu0 %2678
      %2680 = vrot.lane.b32.xlu0 %v2640, 32
      %v2681 = vpop.permute.xlu0 %2680
      %2682 = vrot.lane.b32.xlu0 %v2641, 32
      %v2683 = vpop.permute.xlu0 %2682
      %2684 = vrot.lane.b32.xlu0 %v2642, 32
      %v2685 = vpop.permute.xlu0 %2684
      %2686 = vrot.lane.b32.xlu0 %v2643, 32
      %v2687 = vpop.permute.xlu0 %2686
      %2688 = vrot.lane.b32.xlu0 %v2644, 32
      %v2689 = vpop.permute.xlu0 %2688
      %2690 = vrot.lane.b32.xlu0 %v2645, 32
      %v2691 = vpop.permute.xlu0 %2690
      %2692 = vrot.lane.b32.xlu0 %v2646, 32
      %v2693 = vpop.permute.xlu0 %2692
      %2694 = vrot.lane.b32.xlu0 %v2647, 32
      %v2695 = vpop.permute.xlu0 %2694
      %v2712 = vsel %vm883, %v2229, %v2665
      %v2713 = vsel %vm883, %v2230, %v2667
      %v2714 = vsel %vm883, %v2231, %v2669
      %v2715 = vsel %vm883, %v2232, %v2671
      %v2716 = vsel %vm883, %v2233, %v2673
      %v2717 = vsel %vm883, %v2234, %v2675
      %v2718 = vsel %vm883, %v2235, %v2677
      %v2719 = vsel %vm883, %v2236, %v2679
      %v2720 = vsel %vm883, %v2237, %v2681
      %v2721 = vsel %vm883, %v2238, %v2683
      %v2722 = vsel %vm883, %v2239, %v2685
      %v2723 = vsel %vm883, %v2240, %v2687
      %v2724 = vsel %vm883, %v2241, %v2689
      %v2725 = vsel %vm883, %v2242, %v2691
      %v2726 = vsel %vm883, %v2243, %v2693
      %v2727 = vsel %vm883, %v2244, %v2695
      %vm2728 = vcmask 424960
      %v2729 = vsel %vm2728, %v2712, 0.0
      %v2730 = vsel %vm2728, %v2713, 0.0
      %v2731 = vsel %vm2728, %v2714, 0.0
      %v2732 = vsel %vm2728, %v2715, 0.0
      %v2733 = vsel %vm2728, %v2716, 0.0
      %v2734 = vsel %vm2728, %v2717, 0.0
      %v2735 = vsel %vm2728, %v2718, 0.0
      %v2736 = vsel %vm2728, %v2719, 0.0
      %v2737 = vsel %vm2728, %v2720, 0.0
      %v2738 = vsel %vm2728, %v2721, 0.0
      %v2739 = vsel %vm2728, %v2722, 0.0
      %v2740 = vsel %vm2728, %v2723, 0.0
      %v2741 = vsel %vm2728, %v2724, 0.0
      %v2742 = vsel %vm2728, %v2725, 0.0
      %v2743 = vsel %vm2728, %v2726, 0.0
      %v2744 = vsel %vm2728, %v2727, 0.0
      %v2745 = vpack.c.bf16 %v2730, %v2729
      %v2746 = vpack.c.bf16 %v2732, %v2731
      %v2747 = vpack.c.bf16 %v2734, %v2733
      %v2748 = vpack.c.bf16 %v2736, %v2735
      %v2749 = vpack.c.bf16 %v2738, %v2737
      %v2750 = vpack.c.bf16 %v2740, %v2739
      %v2751 = vpack.c.bf16 %v2742, %v2741
      %v2752 = vpack.c.bf16 %v2744, %v2743
      %v2753 = vunpack.c.l.bf16 %v2745
      %v2754 = vunpack.c.h.bf16 %v2745
      %v2755 = vunpack.c.l.bf16 %v2746
      %v2756 = vunpack.c.h.bf16 %v2746
      %v2757 = vunpack.c.l.bf16 %v2747
      %v2758 = vunpack.c.h.bf16 %v2747
      %v2759 = vunpack.c.l.bf16 %v2748
      %v2760 = vunpack.c.h.bf16 %v2748
      %v2761 = vunpack.c.l.bf16 %v2749
      %v2762 = vunpack.c.h.bf16 %v2749
      %v2763 = vunpack.c.l.bf16 %v2750
      %v2764 = vunpack.c.h.bf16 %v2750
      %v2765 = vunpack.c.l.bf16 %v2751
      %v2766 = vunpack.c.h.bf16 %v2751
      %v2767 = vunpack.c.l.bf16 %v2752
      %v2768 = vunpack.c.h.bf16 %v2752
      %v2769 = vsub.f32 %v2729, %v2753
      %v2770 = vsub.f32 %v2730, %v2754
      %v2771 = vsub.f32 %v2731, %v2755
      %v2772 = vsub.f32 %v2732, %v2756
      %v2773 = vsub.f32 %v2733, %v2757
      %v2774 = vsub.f32 %v2734, %v2758
      %v2775 = vsub.f32 %v2735, %v2759
      %v2776 = vsub.f32 %v2736, %v2760
      %v2777 = vsub.f32 %v2737, %v2761
      %v2778 = vsub.f32 %v2738, %v2762
      %v2779 = vsub.f32 %v2739, %v2763
      %v2780 = vsub.f32 %v2740, %v2764
      %v2781 = vsub.f32 %v2741, %v2765
      %v2782 = vsub.f32 %v2742, %v2766
      %v2783 = vsub.f32 %v2743, %v2767
      %v2784 = vsub.f32 %v2744, %v2768
      %v2785 = vpack.c.bf16 %v2770, %v2769
      %v2786 = vpack.c.bf16 %v2772, %v2771
      %v2787 = vpack.c.bf16 %v2774, %v2773
      %v2788 = vpack.c.bf16 %v2776, %v2775
      %v2789 = vpack.c.bf16 %v2778, %v2777
      %v2790 = vpack.c.bf16 %v2780, %v2779
      %v2791 = vpack.c.bf16 %v2782, %v2781
      %v2792 = vpack.c.bf16 %v2784, %v2783
      %v2793 = vld [vmem:[%s596] sm:$0x1]
      %v2794 = vlaneseq
      %v2795 = vshrl.u32 %v2794, 7
      %s2796 = smul.u32 %s32, 8
      %v2797 = vstv %s2796
      %v2798 = vadd.s32 %v2795, %v2797
      %v2799 = vlaneseq
      %v2800 = vshrl.u32 %v2799, 7
      %v2801 = vsub.s32 0, %v2800
      %v2802 = vrot.slane %v2793, %v2801
      %vm2803 = vcmp.eq.s32.totalorder %v2798, %v2802
      %v2804 = vsel %vm2803, 1, 0
      %v2805 = vcvt.s32.f32 %v2804
      %v2806 = vpack.c.bf16 %v2805, %v2805
      %v2807 = vld [vmem:[#allocation2] sm:$0xff]
      %2808 = vmatprep.subr.bf16.mxu0 0
      %2809 = vmatpush1.bf16.msra.mxu0 %v2785
      %2810 = vmatprep.subr.bf16.mxu0 0
      %2811 = vmatpush1.bf16.msra.mxu0 %v2786
      %2812 = vmatprep.subr.bf16.mxu0 0
      %2813 = vmatpush1.bf16.msra.mxu0 %v2787
      %2814 = vmatprep.subr.bf16.mxu0 0
      %2815 = vmatpush1.bf16.msra.mxu0 %v2788
      %2816 = vmatprep.subr.bf16.mxu0 0
      %2817 = vmatpush1.bf16.msra.mxu0 %v2789
      %2818 = vmatprep.subr.bf16.mxu0 0
      %2819 = vmatpush1.bf16.msra.mxu0 %v2790
      %2820 = vmatprep.subr.bf16.mxu0 0
      %2821 = vmatpush1.bf16.msra.mxu0 %v2791
      %2822 = vmatprep.subr.bf16.mxu0 0
      %2823 = vmatpush1.bf16.msra.mxu0 %v2792
      %2824 = vmatprep.subr.bf16.mxu0 0
      %2825 = vmatpush1.bf16.msra.mxu0 0
      %2826 = vmatprep.subr.bf16.mxu0 0
      %2827 = vmatpush1.bf16.msra.mxu0 0
      %2828 = vmatprep.subr.bf16.mxu0 0
      %2829 = vmatpush1.bf16.msra.mxu0 0
      %2830 = vmatprep.subr.bf16.mxu0 0
      %2831 = vmatpush1.bf16.msra.mxu0 0
      %2832 = vmatprep.subr.bf16.mxu0 0
      %2833 = vmatpush1.bf16.msra.mxu0 0
      %2834 = vmatprep.subr.bf16.mxu0 0
      %2835 = vmatpush1.bf16.msra.mxu0 0
      %2836 = vmatprep.subr.bf16.mxu0 0
      %2837 = vmatpush1.bf16.msra.mxu0 0
      %2838 = vmatprep.subr.bf16.mxu0 0
      %2839 = vmatpush1.bf16.msra.mxu0 0
      %2840 = vmatprep.mubr.bf16.mxu0 0
      %2841 = vmatmul.mubr.bf16.gmra.mrb[0].mxu0 %v2806
      %v2842 = vpop.f32.mrb[0].mxu0
      %v2843 = vadd.f32 0.0, %v2842
      %v2844 = vpop.f32.mrb[0].mxu0
      %v2845 = vpop.f32.mrb[0].mxu0
      %v2846 = vpop.f32.mrb[0].mxu0
      %2847 = vdwg.mxu0
      %2848 = vmatprep.subr.bf16.mxu0 0
      %2849 = vmatpush1.bf16.msra.mxu0 %v2745
      %2850 = vmatprep.subr.bf16.mxu0 0
      %2851 = vmatpush1.bf16.msra.mxu0 %v2746
      %2852 = vmatprep.subr.bf16.mxu0 0
      %2853 = vmatpush1.bf16.msra.mxu0 %v2747
      %2854 = vmatprep.subr.bf16.mxu0 0
      %2855 = vmatpush1.bf16.msra.mxu0 %v2748
      %2856 = vmatprep.subr.bf16.mxu0 0
      %2857 = vmatpush1.bf16.msra.mxu0 %v2749
      %2858 = vmatprep.subr.bf16.mxu0 0
      %2859 = vmatpush1.bf16.msra.mxu0 %v2750
      %2860 = vmatprep.subr.bf16.mxu0 0
      %2861 = vmatpush1.bf16.msra.mxu0 %v2751
      %2862 = vmatprep.subr.bf16.mxu0 0
      %2863 = vmatpush1.bf16.msra.mxu0 %v2752
      %2864 = vmatprep.subr.bf16.mxu0 0
      %2865 = vmatpush1.bf16.msra.mxu0 0
      %2866 = vmatprep.subr.bf16.mxu0 0
      %2867 = vmatpush1.bf16.msra.mxu0 0
      %2868 = vmatprep.subr.bf16.mxu0 0
      %2869 = vmatpush1.bf16.msra.mxu0 0
      %2870 = vmatprep.subr.bf16.mxu0 0
      %2871 = vmatpush1.bf16.msra.mxu0 0
      %2872 = vmatprep.subr.bf16.mxu0 0
      %2873 = vmatpush1.bf16.msra.mxu0 0
      %2874 = vmatprep.subr.bf16.mxu0 0
      %2875 = vmatpush1.bf16.msra.mxu0 0
      %2876 = vmatprep.subr.bf16.mxu0 0
      %2877 = vmatpush1.bf16.msra.mxu0 0
      %2878 = vmatprep.subr.bf16.mxu0 0
      %2879 = vmatpush1.bf16.msra.mxu0 0
      %2880 = vmatprep.mubr.bf16.mxu0 0
      %2881 = vmatmul.mubr.bf16.gmra.mrb[0].mxu0 %v2806
      %v2882 = vpop.f32.mrb[0].mxu0
      %v2883 = vadd.f32 %v2843, %v2882
      %v2884 = vpop.f32.mrb[0].mxu0
      %v2885 = vpop.f32.mrb[0].mxu0
      %v2886 = vpop.f32.mrb[0].mxu0
      %2887 = vdwg.mxu0
      %v2888 = vadd.f32 %v2807, %v2883
      %2889 = vst [vmem:[#allocation2] sm:$0xff] %v2888
      %p2890 = scmp.eq.s32.totalorder %s33, 1
      // Predicated region
      $region93: #{tpu_custom_call.1} parent=87 // pred_check
        %p2891 = pneg %p2890
      $region94: #{tpu_custom_call.1} parent=87 // pred_check_branch
        %2893 = sbr.rel (%p2891) target = $region96
      $region95: #{tpu_custom_call.1} parent=87 // pred_region
        %s2894 = scalar_lea.vmem %s2, %s2796
        %v2895 = vld [vmem:[%s2894] sm:$0xff]
        %v2896 = vld [vmem:[#allocation2] sm:$0xff]
        %2898 = vset.pattern.permute.xlu0 19
        %2899 = vperm.xlu0 %2898, %v2895
        %v2900 = vpop.permute.xlu0 %2899
        %v2902 = vmul.f32 %v2896, %v2900
        %2904 = vrot.lane.b32.xlu0 %v2902, 96
        %v2905 = vpop.permute.xlu0 %2904
        %v2907 = vadd.f32 %v2895, %v2905
        %v2908 = vld [vmem:[%s9] sm:$0xff]
        %v2909 = vld [vmem:[%s9 + $0x8] sm:$0xff]
        %v2910 = vld [vmem:[%s10] sm:$0xff]
        %v2911 = vld [vmem:[%s10 + $0x8] sm:$0xff]
        %v2912 = vld [vmem:[%s10 + $0x10] sm:$0xff]
        %v2913 = vld [vmem:[%s10 + $0x18] sm:$0xff]
        %v2915 = vsel %vm883, %v2896, 0
        %2917 = vmatprep.subr.mxu0 0.0
        %2918 = vmatpush1.msra.mxu0 %v2910
        %2919 = vmatprep.subr.mxu0 0.0
        %2920 = vmatpush1.msra.mxu0 %v2911
        %2921 = vmatprep.subr.mxu0 0.0
        %2922 = vmatpush1.msra.mxu0 %v2912
        %2923 = vmatprep.subr.mxu0 0.0
        %2924 = vmatpush1.msra.mxu0 %v2913
        %2925 = vmatprep.subr.mxu0 0.0
        %2926 = vmatpush1.msra.mxu0 0.0
        %2927 = vmatprep.subr.mxu0 0.0
        %2928 = vmatpush1.msra.mxu0 0.0
        %2929 = vmatprep.subr.mxu0 0.0
        %2930 = vmatpush1.msra.mxu0 0.0
        %2931 = vmatprep.subr.mxu0 0.0
        %2932 = vmatpush1.msra.mxu0 0.0
        %2933 = vmatprep.subr.mxu0 0.0
        %2934 = vmatpush1.msra.mxu0 0.0
        %2935 = vmatprep.subr.mxu0 0.0
        %2936 = vmatpush1.msra.mxu0 0.0
        %2937 = vmatprep.subr.mxu0 0.0
        %2938 = vmatpush1.msra.mxu0 0.0
        %2939 = vmatprep.subr.mxu0 0.0
        %2940 = vmatpush1.msra.mxu0 0.0
        %2941 = vmatprep.subr.mxu0 0.0
        %2942 = vmatpush1.msra.mxu0 0.0
        %2943 = vmatprep.subr.mxu0 0.0
        %2944 = vmatpush1.msra.mxu0 0.0
        %2945 = vmatprep.subr.mxu0 0.0
        %2946 = vmatpush1.msra.mxu0 0.0
        %2947 = vmatprep.subr.mxu0 0.0
        %2948 = vmatpush1.msra.mxu0 0.0
        %2949 = vmatprep.subr.mxu0 0.0
        %2950 = vmatpush1.msra.mxu0 0.0
        %2951 = vmatprep.subr.mxu0 0.0
        %2952 = vmatpush1.msra.mxu0 0.0
        %2953 = vmatprep.subr.mxu0 0.0
        %2954 = vmatpush1.msra.mxu0 0.0
        %2955 = vmatprep.subr.mxu0 0.0
        %2956 = vmatpush1.msra.mxu0 0.0
        %2957 = vmatprep.subr.mxu0 0.0
        %2958 = vmatpush1.msra.mxu0 0.0
        %2959 = vmatprep.subr.mxu0 0.0
        %2960 = vmatpush1.msra.mxu0 0.0
        %2961 = vmatprep.subr.mxu0 0.0
        %2962 = vmatpush1.msra.mxu0 0.0
        %2963 = vmatprep.subr.mxu0 0.0
        %2964 = vmatpush1.msra.mxu0 0.0
        %2965 = vmatprep.subr.mxu0 0.0
        %2966 = vmatpush1.msra.mxu0 0.0
        %2967 = vmatprep.subr.mxu0 0.0
        %2968 = vmatpush1.msra.mxu0 0.0
        %2969 = vmatprep.subr.mxu0 0.0
        %2970 = vmatpush1.msra.mxu0 0.0
        %2971 = vmatprep.subr.mxu0 0.0
        %2972 = vmatpush1.msra.mxu0 0.0
        %2973 = vmatprep.subr.mxu0 0.0
        %2974 = vmatpush1.msra.mxu0 0.0
        %2975 = vmatprep.subr.mxu0 0.0
        %2976 = vmatpush1.msra.mxu0 0.0
        %2977 = vmatprep.subr.mxu0 0.0
        %2978 = vmatpush1.msra.mxu0 0.0
        %2979 = vmatprep.subr.mxu0 0.0
        %2980 = vmatpush1.msra.mxu0 0.0
        %2981 = vmatprep.mubr.f32.mxu0 0.0
        %2982 = vmatmul.mubr.f32.gmra.mrb[0].mxu0 %v2915
        %v2983 = vpop.f32.mrb[0].mxu0
        %v2984 = vadd.f32 0.0, %v2983
        %v2985 = vpop.f32.mrb[0].mxu0
        %2986 = vdwg.mxu0
        %vm2987 = vcmask 130048
        %v2988 = vsel %vm2987, %v2895, 0
        %2990 = vmatprep.subr.mxu0 0.0
        %2991 = vmatpush1.msra.mxu0 %v2908
        %2992 = vmatprep.subr.mxu0 0.0
        %2993 = vmatpush1.msra.mxu0 %v2909
        %2994 = vmatprep.subr.mxu0 0.0
        %2995 = vmatpush1.msra.mxu0 0.0
        %2996 = vmatprep.subr.mxu0 0.0
        %2997 = vmatpush1.msra.mxu0 0.0
        %2998 = vmatprep.subr.mxu0 0.0
        %2999 = vmatpush1.msra.mxu0 0.0
        %3000 = vmatprep.subr.mxu0 0.0
        %3001 = vmatpush1.msra.mxu0 0.0
        %3002 = vmatprep.subr.mxu0 0.0
        %3003 = vmatpush1.msra.mxu0 0.0
        %3004 = vmatprep.subr.mxu0 0.0
        %3005 = vmatpush1.msra.mxu0 0.0
        %3006 = vmatprep.subr.mxu0 0.0
        %3007 = vmatpush1.msra.mxu0 0.0
        %3008 = vmatprep.subr.mxu0 0.0
        %3009 = vmatpush1.msra.mxu0 0.0
        %3010 = vmatprep.subr.mxu0 0.0
        %3011 = vmatpush1.msra.mxu0 0.0
        %3012 = vmatprep.subr.mxu0 0.0
        %3013 = vmatpush1.msra.mxu0 0.0
        %3014 = vmatprep.subr.mxu0 0.0
        %3015 = vmatpush1.msra.mxu0 0.0
        %3016 = vmatprep.subr.mxu0 0.0
        %3017 = vmatpush1.msra.mxu0 0.0
        %3018 = vmatprep.subr.mxu0 0.0
        %3019 = vmatpush1.msra.mxu0 0.0
        %3020 = vmatprep.subr.mxu0 0.0
        %3021 = vmatpush1.msra.mxu0 0.0
        %3022 = vmatprep.subr.mxu0 0.0
        %3023 = vmatpush1.msra.mxu0 0.0
        %3024 = vmatprep.subr.mxu0 0.0
        %3025 = vmatpush1.msra.mxu0 0.0
        %3026 = vmatprep.subr.mxu0 0.0
        %3027 = vmatpush1.msra.mxu0 0.0
        %3028 = vmatprep.subr.mxu0 0.0
        %3029 = vmatpush1.msra.mxu0 0.0
        %3030 = vmatprep.subr.mxu0 0.0
        %3031 = vmatpush1.msra.mxu0 0.0
        %3032 = vmatprep.subr.mxu0 0.0
        %3033 = vmatpush1.msra.mxu0 0.0
        %3034 = vmatprep.subr.mxu0 0.0
        %3035 = vmatpush1.msra.mxu0 0.0
        %3036 = vmatprep.subr.mxu0 0.0
        %3037 = vmatpush1.msra.mxu0 0.0
        %3038 = vmatprep.subr.mxu0 0.0
        %3039 = vmatpush1.msra.mxu0 0.0
        %3040 = vmatprep.subr.mxu0 0.0
        %3041 = vmatpush1.msra.mxu0 0.0
        %3042 = vmatprep.subr.mxu0 0.0
        %3043 = vmatpush1.msra.mxu0 0.0
        %3044 = vmatprep.subr.mxu0 0.0
        %3045 = vmatpush1.msra.mxu0 0.0
        %3046 = vmatprep.subr.mxu0 0.0
        %3047 = vmatpush1.msra.mxu0 0.0
        %3048 = vmatprep.subr.mxu0 0.0
        %3049 = vmatpush1.msra.mxu0 0.0
        %3050 = vmatprep.subr.mxu0 0.0
        %3051 = vmatpush1.msra.mxu0 0.0
        %3052 = vmatprep.subr.mxu0 0.0
        %3053 = vmatpush1.msra.mxu0 0.0
        %3054 = vmatprep.mubr.f32.mxu0 0.0
        %3055 = vmatmul.mubr.f32.gmra.mrb[0].mxu0 %v2988
        %v3056 = vpop.f32.mrb[0].mxu0
        %v3057 = vadd.f32 %v2984, %v3056
        %v3058 = vpop.f32.mrb[0].mxu0
        %3059 = vdwg.mxu0
        %v3060 = vld [vmem:[%s11] sm:$0x1]
        %v3062 = vlaneseq
        %v3063 = vshrl.u32 %v3062, 7
        %v3064 = vsub.s32 0, %v3063
        %v3065 = vrot.slane %v3060, %v3064
        %v3067 = vadd.f32 %v3057, %v3065
        %v3068 = vxor.u32 %v3067, 2147483648
        %v3069 = vmul.f32 %v3068, 1.442695
        %v3070 = vpow.pop %v3069
        %v3071 = vadd.f32 %v3070, 1.0
        %v3072 = vrcp.pop %v3071
        %v3073 = vmul.f32 1.0, %v3072
        %v3074 = vmul.f32 %v3067, %v3073
        %v3075 = vld [vmem:[%s12] sm:$0xff]
        %v3076 = vld [vmem:[%s12 + $0x8] sm:$0xff]
        %v3077 = vld [vmem:[%s12 + $0x10] sm:$0xff]
        %v3078 = vld [vmem:[%s12 + $0x18] sm:$0xff]
        %v3080 = vsel %vm883, %v3074, 0
        %3082 = vmatprep.subr.mxu0 0.0
        %3083 = vmatpush1.msra.mxu0 %v3075
        %3084 = vmatprep.subr.mxu0 0.0
        %3085 = vmatpush1.msra.mxu0 %v3076
        %3086 = vmatprep.subr.mxu0 0.0
        %3087 = vmatpush1.msra.mxu0 %v3077
        %3088 = vmatprep.subr.mxu0 0.0
        %3089 = vmatpush1.msra.mxu0 %v3078
        %3090 = vmatprep.subr.mxu0 0.0
        %3091 = vmatpush1.msra.mxu0 0.0
        %3092 = vmatprep.subr.mxu0 0.0
        %3093 = vmatpush1.msra.mxu0 0.0
        %3094 = vmatprep.subr.mxu0 0.0
        %3095 = vmatpush1.msra.mxu0 0.0
        %3096 = vmatprep.subr.mxu0 0.0
        %3097 = vmatpush1.msra.mxu0 0.0
        %3098 = vmatprep.subr.mxu0 0.0
        %3099 = vmatpush1.msra.mxu0 0.0
        %3100 = vmatprep.subr.mxu0 0.0
        %3101 = vmatpush1.msra.mxu0 0.0
        %3102 = vmatprep.subr.mxu0 0.0
        %3103 = vmatpush1.msra.mxu0 0.0
        %3104 = vmatprep.subr.mxu0 0.0
        %3105 = vmatpush1.msra.mxu0 0.0
        %3106 = vmatprep.subr.mxu0 0.0
        %3107 = vmatpush1.msra.mxu0 0.0
        %3108 = vmatprep.subr.mxu0 0.0
        %3109 = vmatpush1.msra.mxu0 0.0
        %3110 = vmatprep.subr.mxu0 0.0
        %3111 = vmatpush1.msra.mxu0 0.0
        %3112 = vmatprep.subr.mxu0 0.0
        %3113 = vmatpush1.msra.mxu0 0.0
        %3114 = vmatprep.subr.mxu0 0.0
        %3115 = vmatpush1.msra.mxu0 0.0
        %3116 = vmatprep.subr.mxu0 0.0
        %3117 = vmatpush1.msra.mxu0 0.0
        %3118 = vmatprep.subr.mxu0 0.0
        %3119 = vmatpush1.msra.mxu0 0.0
        %3120 = vmatprep.subr.mxu0 0.0
        %3121 = vmatpush1.msra.mxu0 0.0
        %3122 = vmatprep.subr.mxu0 0.0
        %3123 = vmatpush1.msra.mxu0 0.0
        %3124 = vmatprep.subr.mxu0 0.0
        %3125 = vmatpush1.msra.mxu0 0.0
        %3126 = vmatprep.subr.mxu0 0.0
        %3127 = vmatpush1.msra.mxu0 0.0
        %3128 = vmatprep.subr.mxu0 0.0
        %3129 = vmatpush1.msra.mxu0 0.0
        %3130 = vmatprep.subr.mxu0 0.0
        %3131 = vmatpush1.msra.mxu0 0.0
        %3132 = vmatprep.subr.mxu0 0.0
        %3133 = vmatpush1.msra.mxu0 0.0
        %3134 = vmatprep.subr.mxu0 0.0
        %3135 = vmatpush1.msra.mxu0 0.0
        %3136 = vmatprep.subr.mxu0 0.0
        %3137 = vmatpush1.msra.mxu0 0.0
        %3138 = vmatprep.subr.mxu0 0.0
        %3139 = vmatpush1.msra.mxu0 0.0
        %3140 = vmatprep.subr.mxu0 0.0
        %3141 = vmatpush1.msra.mxu0 0.0
        %3142 = vmatprep.subr.mxu0 0.0
        %3143 = vmatpush1.msra.mxu0 0.0
        %3144 = vmatprep.subr.mxu0 0.0
        %3145 = vmatpush1.msra.mxu0 0.0
        %3146 = vmatprep.mubr.f32.mxu0 0.0
        %3147 = vmatmul.mubr.f32.gmra.mrb[0].mxu0 %v3080
        %v3148 = vpop.f32.mrb[0].mxu0
        %v3149 = vadd.f32 0.0, %v3148
        %v3150 = vpop.f32.mrb[0].mxu0
        %3151 = vdwg.mxu0
        %v3152 = vadd.f32 %v2895, %v3149
        %v3153 = vld [vmem:[%s13] sm:$0x1]
        %v3155 = vlaneseq
        %v3156 = vshrl.u32 %v3155, 7
        %v3157 = vsub.s32 0, %v3156
        %v3158 = vrot.slane %v3153, %v3157
        %v3160 = vadd.f32 %v3152, %v3158
        %v3161 = vsel %vm2987, %v3160, %v2907
        %vm3162 = vcmask 154624
        %3163 = vst.msk [vmem:[%s602] sm:$0xff] %vm3162, %v3161
      $region96: #{tpu_custom_call.1} parent=87 // pred_fallthru
        _
      %p3164 = scmp.lt.s32.totalorder %s32, 3
      %s3165 = scalar_select %p3164, %s32, 3
      %s3166 = smul.addr %s3165, 8
      %s3167 = scalar_lea.vmem %s17, %s3166
      // Predicated region
      $region97: #{tpu_custom_call.1} parent=87 // pred_check
        %p3168 = pneg %p433
      $region98: #{tpu_custom_call.1} parent=87 // pred_check_branch
        %3170 = sbr.rel (%p3168) target = $region100
      $region99: #{tpu_custom_call.1} parent=87 // pred_region
        _
      $region100: #{tpu_custom_call.1} parent=87 // pred_fallthru
        _
    $region88: #{tpu_custom_call.1} parent=5 // pred_fallthru
      _
    %p3171 = scmp.le.s32.totalorder 2, %s23
    // Predicated region
    $region101: #{tpu_custom_call.1} parent=5 // pred_check
      %p3172 = pneg %p3171
    $region102: #{tpu_custom_call.1} parent=5 // pred_check_branch
      %3174 = sbr.rel (%p3172) target = $region104
    $region103: #{tpu_custom_call.1} parent=5 // pred_region
      %s3175 = ssub.s32 %s23, 2
      // Predicated region
      $region105: #{tpu_custom_call.1} parent=103 // pred_check
        %p3176 = pneg %p439
      $region106: #{tpu_custom_call.1} parent=103 // pred_check_branch
        %3178 = sbr.rel (%p3176) target = $region108
      $region107: #{tpu_custom_call.1} parent=103 // pred_region
        %p3179 = scmp.lt.s32.totalorder %s34, 3
        %s3180 = scalar_select %p3179, %s34, 3
        %s3181 = smul.addr %s3180, 8
        %s3182 = scalar_lea.vmem %s17, %s3181
      $region108: #{tpu_custom_call.1} parent=103 // pred_fallthru
        _
    $region104: #{tpu_custom_call.1} parent=5 // pred_fallthru
      _
  $region6: #{tpu_custom_call.1} parent=0 // loop_footer
    %s27 = sadd.s32 1, %s23
  $region7: #{tpu_custom_call.1} parent=0 // loop_footer_branch
    %22 = sbr.rel target = $region3
  $region8: #{tpu_custom_call.1} parent=0 // loop_exit
    _

</llo_original>
